<compile_context>
chip_gen: v5e
topology: v5e:2x2
jax: 0.10.0
libtpu: 0.0.40
codegen_flags: <defaults>
</compile_context>

<pallas_src>
import functools
import random

import jax
import jax.numpy as jnp
from jax.experimental import pallas as pl
from jax.experimental.pallas import tpu as pltpu

LANE = 128        # TPU lane width: FC head outputs padded to this -> unmasked stores
SUBLANE = 8       # f32 sublane count: batch padded to a multiple of this
MAX_BTILE = 256   # max batch rows per grid tile (MXU height on v6e/v7x)


def _sigmoid(x):
    # sigmoid(x) = 0.5 * (1 + tanh(x/2)): one EUP push instead of exp + reciprocal.
    return 0.5 * jnp.tanh(0.5 * x) + 0.5


# ----------------------------------------------------------------------------
# LSTM step: gates = x @ W_ih + h @ W_hh + b, PyTorch (i, f, g, o) gate order.
# Weight refs are read at the use site (keeps vreg pressure low).
# ----------------------------------------------------------------------------
def _lstm_step(x, h, c, w_ih_ref, w_hh_ref, b_ref, H):
    if x.shape[-1] == 1:
        # K=1 input projection: broadcast multiply on the VPU, skip the MXU push.
        g_in = x * w_ih_ref[...]
    else:
        g_in = jnp.dot(x, w_ih_ref[...], preferred_element_type=jnp.float32)
    gates = (g_in
             + jnp.dot(h, w_hh_ref[...], preferred_element_type=jnp.float32)
             + b_ref[...])
    i = _sigmoid(gates[:, 0 * H:1 * H])
    f = _sigmoid(gates[:, 1 * H:2 * H])
    g = jnp.tanh(gates[:, 2 * H:3 * H])
    o = _sigmoid(gates[:, 3 * H:4 * H])
    c_new = f * c + i * g
    h_new = o * jnp.tanh(c_new)
    return h_new, c_new


# ----------------------------------------------------------------------------
# Fused kernel: both encoders + hidden/cell concat + both decoders (interleaved)
# ----------------------------------------------------------------------------
def seq2seq_kernel(log_ref, trace_ref, act_sfx_ref, time_sfx_ref,
                   w_ih_log_ref, w_hh_log_ref, b_log_ref,
                   w_ih_tr_ref, w_hh_tr_ref, b_tr_ref,
                   w_ih_act_ref, w_hh_act_ref, b_act_ref,
                   w_ih_time_ref, w_hh_time_ref, b_time_ref,
                   wfc_a_ref, bfc_a_ref, wfc_t_ref, bfc_t_ref,
                   act_out_ref, time_out_ref,
                   *, num_act, h_enc, h_dec, t_pre, t_suf, tf_act, tf_time):
    bt = log_ref.shape[1]

    # ---- two encoders (unrolled; state stays in vregs) ----
    zero = jnp.zeros((bt, h_enc), jnp.float32)
    h_l, c_l, h_t, c_t = zero, zero, zero, zero
    for t in range(t_pre):
        h_l, c_l = _lstm_step(log_ref[t], h_l, c_l,
                              w_ih_log_ref, w_hh_log_ref, b_log_ref, h_enc)
        h_t, c_t = _lstm_step(trace_ref[t], h_t, c_t,
                              w_ih_tr_ref, w_hh_tr_ref, b_tr_ref, h_enc)

    # One-time lane concat (off the per-step critical path).
    hidden = jnp.concatenate([h_l, h_t], axis=-1)      # (bt, 2*h_enc) == (bt, h_dec)
    cell = jnp.concatenate([c_l, c_t], axis=-1)

    trace_last = trace_ref[t_pre - 1]                  # (bt, num_act + 2)
    col = jax.lax.broadcasted_iota(jnp.int32, (bt, num_act), 1)

    # ---- both decoders, one merged unrolled loop (chains interleave on MXU/EUP) ----
    x_a = trace_last[:, :num_act]                      # (bt, num_act)
    x_tm = trace_last[:, num_act + 1:num_act + 2]      # (bt, 1): last trace feature
    h_a, c_a = hidden, cell
    h_d, c_d = hidden, cell

    for t in range(t_suf):
        h_a, c_a = _lstm_step(x_a, h_a, c_a,
                              w_ih_act_ref, w_hh_act_ref, b_act_ref, h_dec)
        h_d, c_d = _lstm_step(x_tm, h_d, c_d,
                              w_ih_time_ref, w_hh_time_ref, b_time_ref, h_dec)

        pred_a = (jnp.dot(h_a, wfc_a_ref[...], preferred_element_type=jnp.float32)
                  + bfc_a_ref[...])                    # (bt, LANE)
        pred_t = (jnp.dot(h_d, wfc_t_ref[...], preferred_element_type=jnp.float32)
                  + bfc_t_ref[...])                    # (bt, LANE)
        act_out_ref[t] = pred_a                        # lane-dense (bt,128) store
        time_out_ref[t] = pred_t

        if t + 1 < t_suf:                              # last step's next-input unused
            if tf_act[t]:
                # teacher = one_hot(suffix[t], num_act) with column 0 zeroed
                sfx = act_sfx_ref[t]                   # (bt, 1) int32
                x_a = ((col == sfx) & (col != 0)).astype(jnp.float32)
            else:
                # best_guess = one_hot(argmax(pred, 1)); best_guess[:, 0] = 0
                p = pred_a[:, :num_act]
                mx = jnp.max(p, axis=1, keepdims=True)
                cand = jnp.where(p == mx, col, num_act)          # sentinel non-max
                idx = jnp.min(cand, axis=1, keepdims=True)       # first argmax
                x_a = jnp.where((col == idx) & (col != 0), 1.0, 0.0)
            if tf_time[t]:
                x_tm = time_sfx_ref[t]                 # (bt, 1)
            else:
                x_tm = pred_t[:, :1]


# ----------------------------------------------------------------------------
# Host wrapper: pad / transpose, one pallas_call over a parallel batch grid
# ----------------------------------------------------------------------------
@functools.partial(jax.jit, static_argnames=("num_act", "tf_act", "tf_time"))
def seq2seq_cat_forward(weights, log_prefix, trace_prefix, act_suffix,
                        time_suffix, *, num_act, tf_act, tf_time):
    B, t_pre, d_log = log_prefix.shape
    d_trace = trace_prefix.shape[2]
    t_suf = act_suffix.shape[1]
    h_enc = weights["w_hh_log"].shape[0]
    h_dec = weights["w_hh_act"].shape[0]
    assert h_dec == 2 * h_enc, "decoder hidden must equal concat of the two encoders"

    b8 = ((B + SUBLANE - 1) // SUBLANE) * SUBLANE      # pad batch to sublanes
    btile = min(b8, MAX_BTILE)                         # batch rows per grid tile
    bp = ((B + btile - 1) // btile) * btile
    n_bt = bp // btile

    def pad_b(x_tm):                                   # (T, B, D) -> (T, bp, D)
        return jnp.pad(x_tm, ((0, 0), (0, bp - B), (0, 0)))

    log_tm = pad_b(jnp.transpose(log_prefix, (1, 0, 2)))
    trace_tm = pad_b(jnp.transpose(trace_prefix, (1, 0, 2)))
    act_sfx_tm = pad_b(jnp.transpose(act_suffix, (1, 0))[..., None].astype(jnp.int32))
    time_sfx_tm = pad_b(jnp.transpose(time_suffix, (1, 0))[..., None].astype(jnp.float32))

    kernel = functools.partial(
        seq2seq_kernel, num_act=num_act, h_enc=h_enc, h_dec=h_dec,
        t_pre=t_pre, t_suf=t_suf, tf_act=tuple(tf_act), tf_time=tuple(tf_time))

    def dspec(leading, d):                             # batch-tiled data arrays
        return pl.BlockSpec((leading, btile, d), lambda b: (0, b, 0))

    def wspec(arr):                                    # full-array weight blocks
        return pl.BlockSpec(arr.shape, lambda b: (0,) * arr.ndim)

    w_order = ("w_ih_log", "w_hh_log", "b_log",
               "w_ih_trace", "w_hh_trace", "b_trace",
               "w_ih_act", "w_hh_act", "b_act",
               "w_ih_time", "w_hh_time", "b_time",
               "wfc_act", "bfc_act", "wfc_time", "bfc_time")

    in_specs = ([dspec(t_pre, d_log), dspec(t_pre, d_trace),
                 dspec(t_suf, 1), dspec(t_suf, 1)]
                + [wspec(weights[k]) for k in w_order])

    act_out, time_out = pl.pallas_call(
        kernel,
        grid=(n_bt,),
        out_shape=(jax.ShapeDtypeStruct((t_suf, bp, LANE), jnp.float32),
                   jax.ShapeDtypeStruct((t_suf, bp, LANE), jnp.float32)),
        in_specs=in_specs,
        out_specs=(pl.BlockSpec((t_suf, btile, LANE), lambda b: (0, b, 0)),
                   pl.BlockSpec((t_suf, btile, LANE), lambda b: (0, b, 0))),
        compiler_params=pltpu.CompilerParams(dimension_semantics=("parallel",)),
    )(log_tm, trace_tm, act_sfx_tm, time_sfx_tm, *[weights[k] for k in w_order])

    act_pred = jnp.transpose(act_out[:, :B, :num_act], (1, 0, 2))   # (B, T, num_act)
    time_pred = jnp.transpose(time_out[:, :B, :1], (1, 0, 2))       # (B, T, 1)
    return act_pred, time_pred


# ----------------------------------------------------------------------------
# Deterministic parameter init (W_ih / W_hh kept separate; FC heads lane-padded)
# NOTE: each single bias b corresponds to PyTorch's b_ih + b_hh (sum when porting).
# ----------------------------------------------------------------------------
def _init(key, shape, scale=0.1):
    return jax.random.uniform(key, shape, jnp.float32, -scale, scale)


def make_params(key, num_act, h_enc, h_dec):
    ks = jax.random.split(key, 16)
    d_log, d_trace = num_act + 1, num_act + 2
    return dict(
        w_ih_log=_init(ks[0], (d_log, 4 * h_enc)),
        w_hh_log=_init(ks[1], (h_enc, 4 * h_enc)),
        b_log=_init(ks[2], (1, 4 * h_enc)),
        w_ih_trace=_init(ks[3], (d_trace, 4 * h_enc)),
        w_hh_trace=_init(ks[4], (h_enc, 4 * h_enc)),
        b_trace=_init(ks[5], (1, 4 * h_enc)),
        w_ih_act=_init(ks[6], (num_act, 4 * h_dec)),
        w_hh_act=_init(ks[7], (h_dec, 4 * h_dec)),
        b_act=_init(ks[8], (1, 4 * h_dec)),
        w_ih_time=_init(ks[9], (1, 4 * h_dec)),
        w_hh_time=_init(ks[10], (h_dec, 4 * h_dec)),
        b_time=_init(ks[11], (1, 4 * h_dec)),
        wfc_act=jnp.zeros((h_dec, LANE), jnp.float32).at[:, :num_act].set(
            _init(ks[12], (h_dec, num_act))),
        bfc_act=jnp.zeros((1, LANE), jnp.float32).at[:, :num_act].set(
            _init(ks[13], (1, num_act))),
        wfc_time=jnp.zeros((h_dec, LANE), jnp.float32).at[:, :1].set(
            _init(ks[14], (h_dec, 1))),
        bfc_time=jnp.zeros((1, LANE), jnp.float32).at[:, :1].set(
            _init(ks[15], (1, 1))),
    )


if __name__ == "__main__":
    num_act = 8          # includes padding / SOC / EOC / unknown labels
    B = 2
    prefix_len = 6
    suffix_len = 5
    H_enc = 32
    H_dec = 2 * H_enc    # decoders run on concat(log, trace) state

    key = jax.random.PRNGKey(0)
    k_par, k1, k2, k3, k4 = jax.random.split(key, 5)
    params = make_params(k_par, num_act, H_enc, H_dec)

    log_prefix = jax.random.uniform(k1, (B, prefix_len, num_act + 1), jnp.float32)
    trace_prefix = jax.random.uniform(k2, (B, prefix_len, num_act + 2), jnp.float32)
    act_suffix = jax.random.randint(k3, (B, suffix_len), 0, num_act, jnp.int32)
    time_suffix = jax.random.uniform(k4, (B, suffix_len), jnp.float32)

    # torch samples random.random() on the host per step; here the per-step flags are
    # host-sampled and baked in as static trace-time constants (ratio=1.0 -> all True,
    # deterministic, matches torch).
    teacher_force_ratio = 1.0
    rng = random.Random(0)
    tf_act = tuple(bool(rng.random() < teacher_force_ratio) for _ in range(suffix_len))
    tf_time = tuple(bool(rng.random() < teacher_force_ratio) for _ in range(suffix_len))

    act_pred, time_pred = seq2seq_cat_forward(
        params, log_prefix, trace_prefix, act_suffix, time_suffix,
        num_act=num_act, tf_act=tf_act, tf_time=tf_time)
    jax.block_until_ready((act_pred, time_pred))

    assert act_pred.shape == (B, suffix_len, num_act)
    assert time_pred.shape == (B, suffix_len, 1)
    assert bool(jnp.all(jnp.isfinite(act_pred))) and bool(jnp.all(jnp.isfinite(time_pred)))
    print("KERNEL_OK")
</pallas_src>

<mosaic_0001>
module attributes {stable_mosaic.version = 11 : i64} {
  func.func @seq2seq_kernel(%arg0: i32, %arg1: memref<6x8x9xf32, #tpu.memory_space<vmem>>, %arg2: memref<6x8x10xf32, #tpu.memory_space<vmem>>, %arg3: memref<5x8x1xi32, #tpu.memory_space<vmem>>, %arg4: memref<5x8x1xf32, #tpu.memory_space<vmem>>, %arg5: memref<9x128xf32, #tpu.memory_space<vmem>>, %arg6: memref<32x128xf32, #tpu.memory_space<vmem>>, %arg7: memref<1x128xf32, #tpu.memory_space<vmem>>, %arg8: memref<10x128xf32, #tpu.memory_space<vmem>>, %arg9: memref<32x128xf32, #tpu.memory_space<vmem>>, %arg10: memref<1x128xf32, #tpu.memory_space<vmem>>, %arg11: memref<8x256xf32, #tpu.memory_space<vmem>>, %arg12: memref<64x256xf32, #tpu.memory_space<vmem>>, %arg13: memref<1x256xf32, #tpu.memory_space<vmem>>, %arg14: memref<1x256xf32, #tpu.memory_space<vmem>>, %arg15: memref<64x256xf32, #tpu.memory_space<vmem>>, %arg16: memref<1x256xf32, #tpu.memory_space<vmem>>, %arg17: memref<64x128xf32, #tpu.memory_space<vmem>>, %arg18: memref<1x128xf32, #tpu.memory_space<vmem>>, %arg19: memref<64x128xf32, #tpu.memory_space<vmem>>, %arg20: memref<1x128xf32, #tpu.memory_space<vmem>>, %arg21: memref<5x8x128xf32, #tpu.memory_space<vmem>>, %arg22: memref<5x8x128xf32, #tpu.memory_space<vmem>>) attributes {dimension_semantics = [#tpu.dimension_semantics<parallel>], iteration_bounds = array<i64: 1>, scalar_prefetch = 0 : i64, scratch_operands = 0 : i64, tpu.core_type = #tpu.core_type<tc>, window_params = [{transform_indices = @transform_0, window_bounds = array<i64: 6, 8, 9>}, {transform_indices = @transform_1, window_bounds = array<i64: 6, 8, 10>}, {transform_indices = @transform_2, window_bounds = array<i64: 5, 8, 1>}, {transform_indices = @transform_3, window_bounds = array<i64: 5, 8, 1>}, {pipeline_mode = #tpu.pipeline_mode<synchronous>, transform_indices = @transform_4, window_bounds = array<i64: 9, 128>}, {pipeline_mode = #tpu.pipeline_mode<synchronous>, transform_indices = @transform_5, window_bounds = array<i64: 32, 128>}, {pipeline_mode = #tpu.pipeline_mode<synchronous>, transform_indices = @transform_6, window_bounds = array<i64: 1, 128>}, {pipeline_mode = #tpu.pipeline_mode<synchronous>, transform_indices = @transform_7, window_bounds = array<i64: 10, 128>}, {pipeline_mode = #tpu.pipeline_mode<synchronous>, transform_indices = @transform_8, window_bounds = array<i64: 32, 128>}, {pipeline_mode = #tpu.pipeline_mode<synchronous>, transform_indices = @transform_9, window_bounds = array<i64: 1, 128>}, {pipeline_mode = #tpu.pipeline_mode<synchronous>, transform_indices = @transform_10, window_bounds = array<i64: 8, 256>}, {pipeline_mode = #tpu.pipeline_mode<synchronous>, transform_indices = @transform_11, window_bounds = array<i64: 64, 256>}, {pipeline_mode = #tpu.pipeline_mode<synchronous>, transform_indices = @transform_12, window_bounds = array<i64: 1, 256>}, {pipeline_mode = #tpu.pipeline_mode<synchronous>, transform_indices = @transform_13, window_bounds = array<i64: 1, 256>}, {pipeline_mode = #tpu.pipeline_mode<synchronous>, transform_indices = @transform_14, window_bounds = array<i64: 64, 256>}, {pipeline_mode = #tpu.pipeline_mode<synchronous>, transform_indices = @transform_15, window_bounds = array<i64: 1, 256>}, {pipeline_mode = #tpu.pipeline_mode<synchronous>, transform_indices = @transform_16, window_bounds = array<i64: 64, 128>}, {pipeline_mode = #tpu.pipeline_mode<synchronous>, transform_indices = @transform_17, window_bounds = array<i64: 1, 128>}, {pipeline_mode = #tpu.pipeline_mode<synchronous>, transform_indices = @transform_18, window_bounds = array<i64: 64, 128>}, {pipeline_mode = #tpu.pipeline_mode<synchronous>, transform_indices = @transform_19, window_bounds = array<i64: 1, 128>}, {transform_indices = @transform_20, window_bounds = array<i64: 5, 8, 128>}, {transform_indices = @transform_21, window_bounds = array<i64: 5, 8, 128>}]} {
    %cst = arith.constant 0.000000e+00 : f32
    %0 = vector.broadcast %cst : f32 to vector<8x32xf32>
    %c0 = arith.constant 0 : index
    %c0_0 = arith.constant 0 : index
    %c0_1 = arith.constant 0 : index
    %1 = vector.load %arg1[%c0, %c0_0, %c0_1] : memref<6x8x9xf32, #tpu.memory_space<vmem>>, vector<1x8x9xf32>
    %2 = vector.shape_cast %1 : vector<1x8x9xf32> to vector<8x9xf32>
    %c0_2 = arith.constant 0 : index
    %c0_3 = arith.constant 0 : index
    %3 = vector.load %arg5[%c0_2, %c0_3] : memref<9x128xf32, #tpu.memory_space<vmem>>, vector<9x128xf32>
    %cst_4 = arith.constant dense<0.000000e+00> : vector<8x128xf32>
    %4 = tpu.matmul %2, %3, %cst_4 {dimension_numbers = #tpu.dot_dimension_numbers<[1], [0], [0], [1], [0, 0, 1, 1], [], []>} : vector<8x9xf32>, vector<9x128xf32>, vector<8x128xf32> -> vector<8x128xf32>
    %c0_5 = arith.constant 0 : index
    %c0_6 = arith.constant 0 : index
    %5 = vector.load %arg6[%c0_5, %c0_6] : memref<32x128xf32, #tpu.memory_space<vmem>>, vector<32x128xf32>
    %cst_7 = arith.constant dense<0.000000e+00> : vector<8x128xf32>
    %6 = tpu.matmul %0, %5, %cst_7 {dimension_numbers = #tpu.dot_dimension_numbers<[1], [0], [0], [1], [0, 0, 1, 1], [], []>} : vector<8x32xf32>, vector<32x128xf32>, vector<8x128xf32> -> vector<8x128xf32>
    %7 = arith.addf %4, %6 : vector<8x128xf32>
    %c0_8 = arith.constant 0 : index
    %c0_9 = arith.constant 0 : index
    %8 = vector.load %arg7[%c0_8, %c0_9] : memref<1x128xf32, #tpu.memory_space<vmem>>, vector<1x128xf32>
    %9 = vector.broadcast %8 : vector<1x128xf32> to vector<8x128xf32>
    %10 = arith.addf %7, %9 : vector<8x128xf32>
    %11 = vector.extract_strided_slice %10 {offsets = [0, 0], sizes = [8, 32], strides = [1, 1]} : vector<8x128xf32> to vector<8x32xf32>
    %cst_10 = arith.constant 5.000000e-01 : f32
    %12 = vector.broadcast %cst_10 : f32 to vector<8x32xf32>
    %13 = arith.mulf %12, %11 : vector<8x32xf32>
    %14 = math.tanh %13 : vector<8x32xf32>
    %cst_11 = arith.constant 5.000000e-01 : f32
    %15 = vector.broadcast %cst_11 : f32 to vector<8x32xf32>
    %16 = arith.mulf %15, %14 : vector<8x32xf32>
    %cst_12 = arith.constant 5.000000e-01 : f32
    %17 = vector.broadcast %cst_12 : f32 to vector<8x32xf32>
    %18 = arith.addf %16, %17 : vector<8x32xf32>
    %19 = vector.extract_strided_slice %10 {offsets = [0, 32], sizes = [8, 32], strides = [1, 1]} : vector<8x128xf32> to vector<8x32xf32>
    %cst_13 = arith.constant 5.000000e-01 : f32
    %20 = vector.broadcast %cst_13 : f32 to vector<8x32xf32>
    %21 = arith.mulf %20, %19 : vector<8x32xf32>
    %22 = math.tanh %21 : vector<8x32xf32>
    %cst_14 = arith.constant 5.000000e-01 : f32
    %23 = vector.broadcast %cst_14 : f32 to vector<8x32xf32>
    %24 = arith.mulf %23, %22 : vector<8x32xf32>
    %cst_15 = arith.constant 5.000000e-01 : f32
    %25 = vector.broadcast %cst_15 : f32 to vector<8x32xf32>
    %26 = arith.addf %24, %25 : vector<8x32xf32>
    %27 = vector.extract_strided_slice %10 {offsets = [0, 64], sizes = [8, 32], strides = [1, 1]} : vector<8x128xf32> to vector<8x32xf32>
    %28 = math.tanh %27 : vector<8x32xf32>
    %29 = vector.extract_strided_slice %10 {offsets = [0, 96], sizes = [8, 32], strides = [1, 1]} : vector<8x128xf32> to vector<8x32xf32>
    %cst_16 = arith.constant 5.000000e-01 : f32
    %30 = vector.broadcast %cst_16 : f32 to vector<8x32xf32>
    %31 = arith.mulf %30, %29 : vector<8x32xf32>
    %32 = math.tanh %31 : vector<8x32xf32>
    %cst_17 = arith.constant 5.000000e-01 : f32
    %33 = vector.broadcast %cst_17 : f32 to vector<8x32xf32>
    %34 = arith.mulf %33, %32 : vector<8x32xf32>
    %cst_18 = arith.constant 5.000000e-01 : f32
    %35 = vector.broadcast %cst_18 : f32 to vector<8x32xf32>
    %36 = arith.addf %34, %35 : vector<8x32xf32>
    %37 = arith.mulf %26, %0 : vector<8x32xf32>
    %38 = arith.mulf %18, %28 : vector<8x32xf32>
    %39 = arith.addf %37, %38 : vector<8x32xf32>
    %40 = math.tanh %39 : vector<8x32xf32>
    %41 = arith.mulf %36, %40 : vector<8x32xf32>
    %c0_19 = arith.constant 0 : index
    %c0_20 = arith.constant 0 : index
    %c0_21 = arith.constant 0 : index
    %42 = vector.load %arg2[%c0_19, %c0_20, %c0_21] : memref<6x8x10xf32, #tpu.memory_space<vmem>>, vector<1x8x10xf32>
    %43 = vector.shape_cast %42 : vector<1x8x10xf32> to vector<8x10xf32>
    %c0_22 = arith.constant 0 : index
    %c0_23 = arith.constant 0 : index
    %44 = vector.load %arg8[%c0_22, %c0_23] : memref<10x128xf32, #tpu.memory_space<vmem>>, vector<10x128xf32>
    %cst_24 = arith.constant dense<0.000000e+00> : vector<8x128xf32>
    %45 = tpu.matmul %43, %44, %cst_24 {dimension_numbers = #tpu.dot_dimension_numbers<[1], [0], [0], [1], [0, 0, 1, 1], [], []>} : vector<8x10xf32>, vector<10x128xf32>, vector<8x128xf32> -> vector<8x128xf32>
    %c0_25 = arith.constant 0 : index
    %c0_26 = arith.constant 0 : index
    %46 = vector.load %arg9[%c0_25, %c0_26] : memref<32x128xf32, #tpu.memory_space<vmem>>, vector<32x128xf32>
    %cst_27 = arith.constant dense<0.000000e+00> : vector<8x128xf32>
    %47 = tpu.matmul %0, %46, %cst_27 {dimension_numbers = #tpu.dot_dimension_numbers<[1], [0], [0], [1], [0, 0, 1, 1], [], []>} : vector<8x32xf32>, vector<32x128xf32>, vector<8x128xf32> -> vector<8x128xf32>
    %48 = arith.addf %45, %47 : vector<8x128xf32>
    %c0_28 = arith.constant 0 : index
    %c0_29 = arith.constant 0 : index
    %49 = vector.load %arg10[%c0_28, %c0_29] : memref<1x128xf32, #tpu.memory_space<vmem>>, vector<1x128xf32>
    %50 = vector.broadcast %49 : vector<1x128xf32> to vector<8x128xf32>
    %51 = arith.addf %48, %50 : vector<8x128xf32>
    %52 = vector.extract_strided_slice %51 {offsets = [0, 0], sizes = [8, 32], strides = [1, 1]} : vector<8x128xf32> to vector<8x32xf32>
    %cst_30 = arith.constant 5.000000e-01 : f32
    %53 = vector.broadcast %cst_30 : f32 to vector<8x32xf32>
    %54 = arith.mulf %53, %52 : vector<8x32xf32>
    %55 = math.tanh %54 : vector<8x32xf32>
    %cst_31 = arith.constant 5.000000e-01 : f32
    %56 = vector.broadcast %cst_31 : f32 to vector<8x32xf32>
    %57 = arith.mulf %56, %55 : vector<8x32xf32>
    %cst_32 = arith.constant 5.000000e-01 : f32
    %58 = vector.broadcast %cst_32 : f32 to vector<8x32xf32>
    %59 = arith.addf %57, %58 : vector<8x32xf32>
    %60 = vector.extract_strided_slice %51 {offsets = [0, 32], sizes = [8, 32], strides = [1, 1]} : vector<8x128xf32> to vector<8x32xf32>
    %cst_33 = arith.constant 5.000000e-01 : f32
    %61 = vector.broadcast %cst_33 : f32 to vector<8x32xf32>
    %62 = arith.mulf %61, %60 : vector<8x32xf32>
    %63 = math.tanh %62 : vector<8x32xf32>
    %cst_34 = arith.constant 5.000000e-01 : f32
    %64 = vector.broadcast %cst_34 : f32 to vector<8x32xf32>
    %65 = arith.mulf %64, %63 : vector<8x32xf32>
    %cst_35 = arith.constant 5.000000e-01 : f32
    %66 = vector.broadcast %cst_35 : f32 to vector<8x32xf32>
    %67 = arith.addf %65, %66 : vector<8x32xf32>
    %68 = vector.extract_strided_slice %51 {offsets = [0, 64], sizes = [8, 32], strides = [1, 1]} : vector<8x128xf32> to vector<8x32xf32>
    %69 = math.tanh %68 : vector<8x32xf32>
    %70 = vector.extract_strided_slice %51 {offsets = [0, 96], sizes = [8, 32], strides = [1, 1]} : vector<8x128xf32> to vector<8x32xf32>
    %cst_36 = arith.constant 5.000000e-01 : f32
    %71 = vector.broadcast %cst_36 : f32 to vector<8x32xf32>
    %72 = arith.mulf %71, %70 : vector<8x32xf32>
    %73 = math.tanh %72 : vector<8x32xf32>
    %cst_37 = arith.constant 5.000000e-01 : f32
    %74 = vector.broadcast %cst_37 : f32 to vector<8x32xf32>
    %75 = arith.mulf %74, %73 : vector<8x32xf32>
    %cst_38 = arith.constant 5.000000e-01 : f32
    %76 = vector.broadcast %cst_38 : f32 to vector<8x32xf32>
    %77 = arith.addf %75, %76 : vector<8x32xf32>
    %78 = arith.mulf %67, %0 : vector<8x32xf32>
    %79 = arith.mulf %59, %69 : vector<8x32xf32>
    %80 = arith.addf %78, %79 : vector<8x32xf32>
    %81 = math.tanh %80 : vector<8x32xf32>
    %82 = arith.mulf %77, %81 : vector<8x32xf32>
    %c1 = arith.constant 1 : index
    %c0_39 = arith.constant 0 : index
    %c0_40 = arith.constant 0 : index
    %83 = vector.load %arg1[%c1, %c0_39, %c0_40] : memref<6x8x9xf32, #tpu.memory_space<vmem>>, vector<1x8x9xf32>
    %84 = vector.shape_cast %83 : vector<1x8x9xf32> to vector<8x9xf32>
    %c0_41 = arith.constant 0 : index
    %c0_42 = arith.constant 0 : index
    %85 = vector.load %arg5[%c0_41, %c0_42] : memref<9x128xf32, #tpu.memory_space<vmem>>, vector<9x128xf32>
    %cst_43 = arith.constant dense<0.000000e+00> : vector<8x128xf32>
    %86 = tpu.matmul %84, %85, %cst_43 {dimension_numbers = #tpu.dot_dimension_numbers<[1], [0], [0], [1], [0, 0, 1, 1], [], []>} : vector<8x9xf32>, vector<9x128xf32>, vector<8x128xf32> -> vector<8x128xf32>
    %c0_44 = arith.constant 0 : index
    %c0_45 = arith.constant 0 : index
    %87 = vector.load %arg6[%c0_44, %c0_45] : memref<32x128xf32, #tpu.memory_space<vmem>>, vector<32x128xf32>
    %cst_46 = arith.constant dense<0.000000e+00> : vector<8x128xf32>
    %88 = tpu.matmul %41, %87, %cst_46 {dimension_numbers = #tpu.dot_dimension_numbers<[1], [0], [0], [1], [0, 0, 1, 1], [], []>} : vector<8x32xf32>, vector<32x128xf32>, vector<8x128xf32> -> vector<8x128xf32>
    %89 = arith.addf %86, %88 : vector<8x128xf32>
    %c0_47 = arith.constant 0 : index
    %c0_48 = arith.constant 0 : index
    %90 = vector.load %arg7[%c0_47, %c0_48] : memref<1x128xf32, #tpu.memory_space<vmem>>, vector<1x128xf32>
    %91 = vector.broadcast %90 : vector<1x128xf32> to vector<8x128xf32>
    %92 = arith.addf %89, %91 : vector<8x128xf32>
    %93 = vector.extract_strided_slice %92 {offsets = [0, 0], sizes = [8, 32], strides = [1, 1]} : vector<8x128xf32> to vector<8x32xf32>
    %cst_49 = arith.constant 5.000000e-01 : f32
    %94 = vector.broadcast %cst_49 : f32 to vector<8x32xf32>
    %95 = arith.mulf %94, %93 : vector<8x32xf32>
    %96 = math.tanh %95 : vector<8x32xf32>
    %cst_50 = arith.constant 5.000000e-01 : f32
    %97 = vector.broadcast %cst_50 : f32 to vector<8x32xf32>
    %98 = arith.mulf %97, %96 : vector<8x32xf32>
    %cst_51 = arith.constant 5.000000e-01 : f32
    %99 = vector.broadcast %cst_51 : f32 to vector<8x32xf32>
    %100 = arith.addf %98, %99 : vector<8x32xf32>
    %101 = vector.extract_strided_slice %92 {offsets = [0, 32], sizes = [8, 32], strides = [1, 1]} : vector<8x128xf32> to vector<8x32xf32>
    %cst_52 = arith.constant 5.000000e-01 : f32
    %102 = vector.broadcast %cst_52 : f32 to vector<8x32xf32>
    %103 = arith.mulf %102, %101 : vector<8x32xf32>
    %104 = math.tanh %103 : vector<8x32xf32>
    %cst_53 = arith.constant 5.000000e-01 : f32
    %105 = vector.broadcast %cst_53 : f32 to vector<8x32xf32>
    %106 = arith.mulf %105, %104 : vector<8x32xf32>
    %cst_54 = arith.constant 5.000000e-01 : f32
    %107 = vector.broadcast %cst_54 : f32 to vector<8x32xf32>
    %108 = arith.addf %106, %107 : vector<8x32xf32>
    %109 = vector.extract_strided_slice %92 {offsets = [0, 64], sizes = [8, 32], strides = [1, 1]} : vector<8x128xf32> to vector<8x32xf32>
    %110 = math.tanh %109 : vector<8x32xf32>
    %111 = vector.extract_strided_slice %92 {offsets = [0, 96], sizes = [8, 32], strides = [1, 1]} : vector<8x128xf32> to vector<8x32xf32>
    %cst_55 = arith.constant 5.000000e-01 : f32
    %112 = vector.broadcast %cst_55 : f32 to vector<8x32xf32>
    %113 = arith.mulf %112, %111 : vector<8x32xf32>
    %114 = math.tanh %113 : vector<8x32xf32>
    %cst_56 = arith.constant 5.000000e-01 : f32
    %115 = vector.broadcast %cst_56 : f32 to vector<8x32xf32>
    %116 = arith.mulf %115, %114 : vector<8x32xf32>
    %cst_57 = arith.constant 5.000000e-01 : f32
    %117 = vector.broadcast %cst_57 : f32 to vector<8x32xf32>
    %118 = arith.addf %116, %117 : vector<8x32xf32>
    %119 = arith.mulf %108, %39 : vector<8x32xf32>
    %120 = arith.mulf %100, %110 : vector<8x32xf32>
    %121 = arith.addf %119, %120 : vector<8x32xf32>
    %122 = math.tanh %121 : vector<8x32xf32>
    %123 = arith.mulf %118, %122 : vector<8x32xf32>
    %c1_58 = arith.constant 1 : index
    %c0_59 = arith.constant 0 : index
    %c0_60 = arith.constant 0 : index
    %124 = vector.load %arg2[%c1_58, %c0_59, %c0_60] : memref<6x8x10xf32, #tpu.memory_space<vmem>>, vector<1x8x10xf32>
    %125 = vector.shape_cast %124 : vector<1x8x10xf32> to vector<8x10xf32>
    %c0_61 = arith.constant 0 : index
    %c0_62 = arith.constant 0 : index
    %126 = vector.load %arg8[%c0_61, %c0_62] : memref<10x128xf32, #tpu.memory_space<vmem>>, vector<10x128xf32>
    %cst_63 = arith.constant dense<0.000000e+00> : vector<8x128xf32>
    %127 = tpu.matmul %125, %126, %cst_63 {dimension_numbers = #tpu.dot_dimension_numbers<[1], [0], [0], [1], [0, 0, 1, 1], [], []>} : vector<8x10xf32>, vector<10x128xf32>, vector<8x128xf32> -> vector<8x128xf32>
    %c0_64 = arith.constant 0 : index
    %c0_65 = arith.constant 0 : index
    %128 = vector.load %arg9[%c0_64, %c0_65] : memref<32x128xf32, #tpu.memory_space<vmem>>, vector<32x128xf32>
    %cst_66 = arith.constant dense<0.000000e+00> : vector<8x128xf32>
    %129 = tpu.matmul %82, %128, %cst_66 {dimension_numbers = #tpu.dot_dimension_numbers<[1], [0], [0], [1], [0, 0, 1, 1], [], []>} : vector<8x32xf32>, vector<32x128xf32>, vector<8x128xf32> -> vector<8x128xf32>
    %130 = arith.addf %127, %129 : vector<8x128xf32>
    %c0_67 = arith.constant 0 : index
    %c0_68 = arith.constant 0 : index
    %131 = vector.load %arg10[%c0_67, %c0_68] : memref<1x128xf32, #tpu.memory_space<vmem>>, vector<1x128xf32>
    %132 = vector.broadcast %131 : vector<1x128xf32> to vector<8x128xf32>
    %133 = arith.addf %130, %132 : vector<8x128xf32>
    %134 = vector.extract_strided_slice %133 {offsets = [0, 0], sizes = [8, 32], strides = [1, 1]} : vector<8x128xf32> to vector<8x32xf32>
    %cst_69 = arith.constant 5.000000e-01 : f32
    %135 = vector.broadcast %cst_69 : f32 to vector<8x32xf32>
    %136 = arith.mulf %135, %134 : vector<8x32xf32>
    %137 = math.tanh %136 : vector<8x32xf32>
    %cst_70 = arith.constant 5.000000e-01 : f32
    %138 = vector.broadcast %cst_70 : f32 to vector<8x32xf32>
    %139 = arith.mulf %138, %137 : vector<8x32xf32>
    %cst_71 = arith.constant 5.000000e-01 : f32
    %140 = vector.broadcast %cst_71 : f32 to vector<8x32xf32>
    %141 = arith.addf %139, %140 : vector<8x32xf32>
    %142 = vector.extract_strided_slice %133 {offsets = [0, 32], sizes = [8, 32], strides = [1, 1]} : vector<8x128xf32> to vector<8x32xf32>
    %cst_72 = arith.constant 5.000000e-01 : f32
    %143 = vector.broadcast %cst_72 : f32 to vector<8x32xf32>
    %144 = arith.mulf %143, %142 : vector<8x32xf32>
    %145 = math.tanh %144 : vector<8x32xf32>
    %cst_73 = arith.constant 5.000000e-01 : f32
    %146 = vector.broadcast %cst_73 : f32 to vector<8x32xf32>
    %147 = arith.mulf %146, %145 : vector<8x32xf32>
    %cst_74 = arith.constant 5.000000e-01 : f32
    %148 = vector.broadcast %cst_74 : f32 to vector<8x32xf32>
    %149 = arith.addf %147, %148 : vector<8x32xf32>
    %150 = vector.extract_strided_slice %133 {offsets = [0, 64], sizes = [8, 32], strides = [1, 1]} : vector<8x128xf32> to vector<8x32xf32>
    %151 = math.tanh %150 : vector<8x32xf32>
    %152 = vector.extract_strided_slice %133 {offsets = [0, 96], sizes = [8, 32], strides = [1, 1]} : vector<8x128xf32> to vector<8x32xf32>
    %cst_75 = arith.constant 5.000000e-01 : f32
    %153 = vector.broadcast %cst_75 : f32 to vector<8x32xf32>
    %154 = arith.mulf %153, %152 : vector<8x32xf32>
    %155 = math.tanh %154 : vector<8x32xf32>
    %cst_76 = arith.constant 5.000000e-01 : f32
    %156 = vector.broadcast %cst_76 : f32 to vector<8x32xf32>
    %157 = arith.mulf %156, %155 : vector<8x32xf32>
    %cst_77 = arith.constant 5.000000e-01 : f32
    %158 = vector.broadcast %cst_77 : f32 to vector<8x32xf32>
    %159 = arith.addf %157, %158 : vector<8x32xf32>
    %160 = arith.mulf %149, %80 : vector<8x32xf32>
    %161 = arith.mulf %141, %151 : vector<8x32xf32>
    %162 = arith.addf %160, %161 : vector<8x32xf32>
    %163 = math.tanh %162 : vector<8x32xf32>
    %164 = arith.mulf %159, %163 : vector<8x32xf32>
    %c2 = arith.constant 2 : index
    %c0_78 = arith.constant 0 : index
    %c0_79 = arith.constant 0 : index
    %165 = vector.load %arg1[%c2, %c0_78, %c0_79] : memref<6x8x9xf32, #tpu.memory_space<vmem>>, vector<1x8x9xf32>
    %166 = vector.shape_cast %165 : vector<1x8x9xf32> to vector<8x9xf32>
    %c0_80 = arith.constant 0 : index
    %c0_81 = arith.constant 0 : index
    %167 = vector.load %arg5[%c0_80, %c0_81] : memref<9x128xf32, #tpu.memory_space<vmem>>, vector<9x128xf32>
    %cst_82 = arith.constant dense<0.000000e+00> : vector<8x128xf32>
    %168 = tpu.matmul %166, %167, %cst_82 {dimension_numbers = #tpu.dot_dimension_numbers<[1], [0], [0], [1], [0, 0, 1, 1], [], []>} : vector<8x9xf32>, vector<9x128xf32>, vector<8x128xf32> -> vector<8x128xf32>
    %c0_83 = arith.constant 0 : index
    %c0_84 = arith.constant 0 : index
    %169 = vector.load %arg6[%c0_83, %c0_84] : memref<32x128xf32, #tpu.memory_space<vmem>>, vector<32x128xf32>
    %cst_85 = arith.constant dense<0.000000e+00> : vector<8x128xf32>
    %170 = tpu.matmul %123, %169, %cst_85 {dimension_numbers = #tpu.dot_dimension_numbers<[1], [0], [0], [1], [0, 0, 1, 1], [], []>} : vector<8x32xf32>, vector<32x128xf32>, vector<8x128xf32> -> vector<8x128xf32>
    %171 = arith.addf %168, %170 : vector<8x128xf32>
    %c0_86 = arith.constant 0 : index
    %c0_87 = arith.constant 0 : index
    %172 = vector.load %arg7[%c0_86, %c0_87] : memref<1x128xf32, #tpu.memory_space<vmem>>, vector<1x128xf32>
    %173 = vector.broadcast %172 : vector<1x128xf32> to vector<8x128xf32>
    %174 = arith.addf %171, %173 : vector<8x128xf32>
    %175 = vector.extract_strided_slice %174 {offsets = [0, 0], sizes = [8, 32], strides = [1, 1]} : vector<8x128xf32> to vector<8x32xf32>
    %cst_88 = arith.constant 5.000000e-01 : f32
    %176 = vector.broadcast %cst_88 : f32 to vector<8x32xf32>
    %177 = arith.mulf %176, %175 : vector<8x32xf32>
    %178 = math.tanh %177 : vector<8x32xf32>
    %cst_89 = arith.constant 5.000000e-01 : f32
    %179 = vector.broadcast %cst_89 : f32 to vector<8x32xf32>
    %180 = arith.mulf %179, %178 : vector<8x32xf32>
    %cst_90 = arith.constant 5.000000e-01 : f32
    %181 = vector.broadcast %cst_90 : f32 to vector<8x32xf32>
    %182 = arith.addf %180, %181 : vector<8x32xf32>
    %183 = vector.extract_strided_slice %174 {offsets = [0, 32], sizes = [8, 32], strides = [1, 1]} : vector<8x128xf32> to vector<8x32xf32>
    %cst_91 = arith.constant 5.000000e-01 : f32
    %184 = vector.broadcast %cst_91 : f32 to vector<8x32xf32>
    %185 = arith.mulf %184, %183 : vector<8x32xf32>
    %186 = math.tanh %185 : vector<8x32xf32>
    %cst_92 = arith.constant 5.000000e-01 : f32
    %187 = vector.broadcast %cst_92 : f32 to vector<8x32xf32>
    %188 = arith.mulf %187, %186 : vector<8x32xf32>
    %cst_93 = arith.constant 5.000000e-01 : f32
    %189 = vector.broadcast %cst_93 : f32 to vector<8x32xf32>
    %190 = arith.addf %188, %189 : vector<8x32xf32>
    %191 = vector.extract_strided_slice %174 {offsets = [0, 64], sizes = [8, 32], strides = [1, 1]} : vector<8x128xf32> to vector<8x32xf32>
    %192 = math.tanh %191 : vector<8x32xf32>
    %193 = vector.extract_strided_slice %174 {offsets = [0, 96], sizes = [8, 32], strides = [1, 1]} : vector<8x128xf32> to vector<8x32xf32>
    %cst_94 = arith.constant 5.000000e-01 : f32
    %194 = vector.broadcast %cst_94 : f32 to vector<8x32xf32>
    %195 = arith.mulf %194, %193 : vector<8x32xf32>
    %196 = math.tanh %195 : vector<8x32xf32>
    %cst_95 = arith.constant 5.000000e-01 : f32
    %197 = vector.broadcast %cst_95 : f32 to vector<8x32xf32>
    %198 = arith.mulf %197, %196 : vector<8x32xf32>
    %cst_96 = arith.constant 5.000000e-01 : f32
    %199 = vector.broadcast %cst_96 : f32 to vector<8x32xf32>
    %200 = arith.addf %198, %199 : vector<8x32xf32>
    %201 = arith.mulf %190, %121 : vector<8x32xf32>
    %202 = arith.mulf %182, %192 : vector<8x32xf32>
    %203 = arith.addf %201, %202 : vector<8x32xf32>
    %204 = math.tanh %203 : vector<8x32xf32>
    %205 = arith.mulf %200, %204 : vector<8x32xf32>
    %c2_97 = arith.constant 2 : index
    %c0_98 = arith.constant 0 : index
    %c0_99 = arith.constant 0 : index
    %206 = vector.load %arg2[%c2_97, %c0_98, %c0_99] : memref<6x8x10xf32, #tpu.memory_space<vmem>>, vector<1x8x10xf32>
    %207 = vector.shape_cast %206 : vector<1x8x10xf32> to vector<8x10xf32>
    %c0_100 = arith.constant 0 : index
    %c0_101 = arith.constant 0 : index
    %208 = vector.load %arg8[%c0_100, %c0_101] : memref<10x128xf32, #tpu.memory_space<vmem>>, vector<10x128xf32>
    %cst_102 = arith.constant dense<0.000000e+00> : vector<8x128xf32>
    %209 = tpu.matmul %207, %208, %cst_102 {dimension_numbers = #tpu.dot_dimension_numbers<[1], [0], [0], [1], [0, 0, 1, 1], [], []>} : vector<8x10xf32>, vector<10x128xf32>, vector<8x128xf32> -> vector<8x128xf32>
    %c0_103 = arith.constant 0 : index
    %c0_104 = arith.constant 0 : index
    %210 = vector.load %arg9[%c0_103, %c0_104] : memref<32x128xf32, #tpu.memory_space<vmem>>, vector<32x128xf32>
    %cst_105 = arith.constant dense<0.000000e+00> : vector<8x128xf32>
    %211 = tpu.matmul %164, %210, %cst_105 {dimension_numbers = #tpu.dot_dimension_numbers<[1], [0], [0], [1], [0, 0, 1, 1], [], []>} : vector<8x32xf32>, vector<32x128xf32>, vector<8x128xf32> -> vector<8x128xf32>
    %212 = arith.addf %209, %211 : vector<8x128xf32>
    %c0_106 = arith.constant 0 : index
    %c0_107 = arith.constant 0 : index
    %213 = vector.load %arg10[%c0_106, %c0_107] : memref<1x128xf32, #tpu.memory_space<vmem>>, vector<1x128xf32>
    %214 = vector.broadcast %213 : vector<1x128xf32> to vector<8x128xf32>
    %215 = arith.addf %212, %214 : vector<8x128xf32>
    %216 = vector.extract_strided_slice %215 {offsets = [0, 0], sizes = [8, 32], strides = [1, 1]} : vector<8x128xf32> to vector<8x32xf32>
    %cst_108 = arith.constant 5.000000e-01 : f32
    %217 = vector.broadcast %cst_108 : f32 to vector<8x32xf32>
    %218 = arith.mulf %217, %216 : vector<8x32xf32>
    %219 = math.tanh %218 : vector<8x32xf32>
    %cst_109 = arith.constant 5.000000e-01 : f32
    %220 = vector.broadcast %cst_109 : f32 to vector<8x32xf32>
    %221 = arith.mulf %220, %219 : vector<8x32xf32>
    %cst_110 = arith.constant 5.000000e-01 : f32
    %222 = vector.broadcast %cst_110 : f32 to vector<8x32xf32>
    %223 = arith.addf %221, %222 : vector<8x32xf32>
    %224 = vector.extract_strided_slice %215 {offsets = [0, 32], sizes = [8, 32], strides = [1, 1]} : vector<8x128xf32> to vector<8x32xf32>
    %cst_111 = arith.constant 5.000000e-01 : f32
    %225 = vector.broadcast %cst_111 : f32 to vector<8x32xf32>
    %226 = arith.mulf %225, %224 : vector<8x32xf32>
    %227 = math.tanh %226 : vector<8x32xf32>
    %cst_112 = arith.constant 5.000000e-01 : f32
    %228 = vector.broadcast %cst_112 : f32 to vector<8x32xf32>
    %229 = arith.mulf %228, %227 : vector<8x32xf32>
    %cst_113 = arith.constant 5.000000e-01 : f32
    %230 = vector.broadcast %cst_113 : f32 to vector<8x32xf32>
    %231 = arith.addf %229, %230 : vector<8x32xf32>
    %232 = vector.extract_strided_slice %215 {offsets = [0, 64], sizes = [8, 32], strides = [1, 1]} : vector<8x128xf32> to vector<8x32xf32>
    %233 = math.tanh %232 : vector<8x32xf32>
    %234 = vector.extract_strided_slice %215 {offsets = [0, 96], sizes = [8, 32], strides = [1, 1]} : vector<8x128xf32> to vector<8x32xf32>
    %cst_114 = arith.constant 5.000000e-01 : f32
    %235 = vector.broadcast %cst_114 : f32 to vector<8x32xf32>
    %236 = arith.mulf %235, %234 : vector<8x32xf32>
    %237 = math.tanh %236 : vector<8x32xf32>
    %cst_115 = arith.constant 5.000000e-01 : f32
    %238 = vector.broadcast %cst_115 : f32 to vector<8x32xf32>
    %239 = arith.mulf %238, %237 : vector<8x32xf32>
    %cst_116 = arith.constant 5.000000e-01 : f32
    %240 = vector.broadcast %cst_116 : f32 to vector<8x32xf32>
    %241 = arith.addf %239, %240 : vector<8x32xf32>
    %242 = arith.mulf %231, %162 : vector<8x32xf32>
    %243 = arith.mulf %223, %233 : vector<8x32xf32>
    %244 = arith.addf %242, %243 : vector<8x32xf32>
    %245 = math.tanh %244 : vector<8x32xf32>
    %246 = arith.mulf %241, %245 : vector<8x32xf32>
    %c3 = arith.constant 3 : index
    %c0_117 = arith.constant 0 : index
    %c0_118 = arith.constant 0 : index
    %247 = vector.load %arg1[%c3, %c0_117, %c0_118] : memref<6x8x9xf32, #tpu.memory_space<vmem>>, vector<1x8x9xf32>
    %248 = vector.shape_cast %247 : vector<1x8x9xf32> to vector<8x9xf32>
    %c0_119 = arith.constant 0 : index
    %c0_120 = arith.constant 0 : index
    %249 = vector.load %arg5[%c0_119, %c0_120] : memref<9x128xf32, #tpu.memory_space<vmem>>, vector<9x128xf32>
    %cst_121 = arith.constant dense<0.000000e+00> : vector<8x128xf32>
    %250 = tpu.matmul %248, %249, %cst_121 {dimension_numbers = #tpu.dot_dimension_numbers<[1], [0], [0], [1], [0, 0, 1, 1], [], []>} : vector<8x9xf32>, vector<9x128xf32>, vector<8x128xf32> -> vector<8x128xf32>
    %c0_122 = arith.constant 0 : index
    %c0_123 = arith.constant 0 : index
    %251 = vector.load %arg6[%c0_122, %c0_123] : memref<32x128xf32, #tpu.memory_space<vmem>>, vector<32x128xf32>
    %cst_124 = arith.constant dense<0.000000e+00> : vector<8x128xf32>
    %252 = tpu.matmul %205, %251, %cst_124 {dimension_numbers = #tpu.dot_dimension_numbers<[1], [0], [0], [1], [0, 0, 1, 1], [], []>} : vector<8x32xf32>, vector<32x128xf32>, vector<8x128xf32> -> vector<8x128xf32>
    %253 = arith.addf %250, %252 : vector<8x128xf32>
    %c0_125 = arith.constant 0 : index
    %c0_126 = arith.constant 0 : index
    %254 = vector.load %arg7[%c0_125, %c0_126] : memref<1x128xf32, #tpu.memory_space<vmem>>, vector<1x128xf32>
    %255 = vector.broadcast %254 : vector<1x128xf32> to vector<8x128xf32>
    %256 = arith.addf %253, %255 : vector<8x128xf32>
    %257 = vector.extract_strided_slice %256 {offsets = [0, 0], sizes = [8, 32], strides = [1, 1]} : vector<8x128xf32> to vector<8x32xf32>
    %cst_127 = arith.constant 5.000000e-01 : f32
    %258 = vector.broadcast %cst_127 : f32 to vector<8x32xf32>
    %259 = arith.mulf %258, %257 : vector<8x32xf32>
    %260 = math.tanh %259 : vector<8x32xf32>
    %cst_128 = arith.constant 5.000000e-01 : f32
    %261 = vector.broadcast %cst_128 : f32 to vector<8x32xf32>
    %262 = arith.mulf %261, %260 : vector<8x32xf32>
    %cst_129 = arith.constant 5.000000e-01 : f32
    %263 = vector.broadcast %cst_129 : f32 to vector<8x32xf32>
    %264 = arith.addf %262, %263 : vector<8x32xf32>
    %265 = vector.extract_strided_slice %256 {offsets = [0, 32], sizes = [8, 32], strides = [1, 1]} : vector<8x128xf32> to vector<8x32xf32>
    %cst_130 = arith.constant 5.000000e-01 : f32
    %266 = vector.broadcast %cst_130 : f32 to vector<8x32xf32>
    %267 = arith.mulf %266, %265 : vector<8x32xf32>
    %268 = math.tanh %267 : vector<8x32xf32>
    %cst_131 = arith.constant 5.000000e-01 : f32
    %269 = vector.broadcast %cst_131 : f32 to vector<8x32xf32>
    %270 = arith.mulf %269, %268 : vector<8x32xf32>
    %cst_132 = arith.constant 5.000000e-01 : f32
    %271 = vector.broadcast %cst_132 : f32 to vector<8x32xf32>
    %272 = arith.addf %270, %271 : vector<8x32xf32>
    %273 = vector.extract_strided_slice %256 {offsets = [0, 64], sizes = [8, 32], strides = [1, 1]} : vector<8x128xf32> to vector<8x32xf32>
    %274 = math.tanh %273 : vector<8x32xf32>
    %275 = vector.extract_strided_slice %256 {offsets = [0, 96], sizes = [8, 32], strides = [1, 1]} : vector<8x128xf32> to vector<8x32xf32>
    %cst_133 = arith.constant 5.000000e-01 : f32
    %276 = vector.broadcast %cst_133 : f32 to vector<8x32xf32>
    %277 = arith.mulf %276, %275 : vector<8x32xf32>
    %278 = math.tanh %277 : vector<8x32xf32>
    %cst_134 = arith.constant 5.000000e-01 : f32
    %279 = vector.broadcast %cst_134 : f32 to vector<8x32xf32>
    %280 = arith.mulf %279, %278 : vector<8x32xf32>
    %cst_135 = arith.constant 5.000000e-01 : f32
    %281 = vector.broadcast %cst_135 : f32 to vector<8x32xf32>
    %282 = arith.addf %280, %281 : vector<8x32xf32>
    %283 = arith.mulf %272, %203 : vector<8x32xf32>
    %284 = arith.mulf %264, %274 : vector<8x32xf32>
    %285 = arith.addf %283, %284 : vector<8x32xf32>
    %286 = math.tanh %285 : vector<8x32xf32>
    %287 = arith.mulf %282, %286 : vector<8x32xf32>
    %c3_136 = arith.constant 3 : index
    %c0_137 = arith.constant 0 : index
    %c0_138 = arith.constant 0 : index
    %288 = vector.load %arg2[%c3_136, %c0_137, %c0_138] : memref<6x8x10xf32, #tpu.memory_space<vmem>>, vector<1x8x10xf32>
    %289 = vector.shape_cast %288 : vector<1x8x10xf32> to vector<8x10xf32>
    %c0_139 = arith.constant 0 : index
    %c0_140 = arith.constant 0 : index
    %290 = vector.load %arg8[%c0_139, %c0_140] : memref<10x128xf32, #tpu.memory_space<vmem>>, vector<10x128xf32>
    %cst_141 = arith.constant dense<0.000000e+00> : vector<8x128xf32>
    %291 = tpu.matmul %289, %290, %cst_141 {dimension_numbers = #tpu.dot_dimension_numbers<[1], [0], [0], [1], [0, 0, 1, 1], [], []>} : vector<8x10xf32>, vector<10x128xf32>, vector<8x128xf32> -> vector<8x128xf32>
    %c0_142 = arith.constant 0 : index
    %c0_143 = arith.constant 0 : index
    %292 = vector.load %arg9[%c0_142, %c0_143] : memref<32x128xf32, #tpu.memory_space<vmem>>, vector<32x128xf32>
    %cst_144 = arith.constant dense<0.000000e+00> : vector<8x128xf32>
    %293 = tpu.matmul %246, %292, %cst_144 {dimension_numbers = #tpu.dot_dimension_numbers<[1], [0], [0], [1], [0, 0, 1, 1], [], []>} : vector<8x32xf32>, vector<32x128xf32>, vector<8x128xf32> -> vector<8x128xf32>
    %294 = arith.addf %291, %293 : vector<8x128xf32>
    %c0_145 = arith.constant 0 : index
    %c0_146 = arith.constant 0 : index
    %295 = vector.load %arg10[%c0_145, %c0_146] : memref<1x128xf32, #tpu.memory_space<vmem>>, vector<1x128xf32>
    %296 = vector.broadcast %295 : vector<1x128xf32> to vector<8x128xf32>
    %297 = arith.addf %294, %296 : vector<8x128xf32>
    %298 = vector.extract_strided_slice %297 {offsets = [0, 0], sizes = [8, 32], strides = [1, 1]} : vector<8x128xf32> to vector<8x32xf32>
    %cst_147 = arith.constant 5.000000e-01 : f32
    %299 = vector.broadcast %cst_147 : f32 to vector<8x32xf32>
    %300 = arith.mulf %299, %298 : vector<8x32xf32>
    %301 = math.tanh %300 : vector<8x32xf32>
    %cst_148 = arith.constant 5.000000e-01 : f32
    %302 = vector.broadcast %cst_148 : f32 to vector<8x32xf32>
    %303 = arith.mulf %302, %301 : vector<8x32xf32>
    %cst_149 = arith.constant 5.000000e-01 : f32
    %304 = vector.broadcast %cst_149 : f32 to vector<8x32xf32>
    %305 = arith.addf %303, %304 : vector<8x32xf32>
    %306 = vector.extract_strided_slice %297 {offsets = [0, 32], sizes = [8, 32], strides = [1, 1]} : vector<8x128xf32> to vector<8x32xf32>
    %cst_150 = arith.constant 5.000000e-01 : f32
    %307 = vector.broadcast %cst_150 : f32 to vector<8x32xf32>
    %308 = arith.mulf %307, %306 : vector<8x32xf32>
    %309 = math.tanh %308 : vector<8x32xf32>
    %cst_151 = arith.constant 5.000000e-01 : f32
    %310 = vector.broadcast %cst_151 : f32 to vector<8x32xf32>
    %311 = arith.mulf %310, %309 : vector<8x32xf32>
    %cst_152 = arith.constant 5.000000e-01 : f32
    %312 = vector.broadcast %cst_152 : f32 to vector<8x32xf32>
    %313 = arith.addf %311, %312 : vector<8x32xf32>
    %314 = vector.extract_strided_slice %297 {offsets = [0, 64], sizes = [8, 32], strides = [1, 1]} : vector<8x128xf32> to vector<8x32xf32>
    %315 = math.tanh %314 : vector<8x32xf32>
    %316 = vector.extract_strided_slice %297 {offsets = [0, 96], sizes = [8, 32], strides = [1, 1]} : vector<8x128xf32> to vector<8x32xf32>
    %cst_153 = arith.constant 5.000000e-01 : f32
    %317 = vector.broadcast %cst_153 : f32 to vector<8x32xf32>
    %318 = arith.mulf %317, %316 : vector<8x32xf32>
    %319 = math.tanh %318 : vector<8x32xf32>
    %cst_154 = arith.constant 5.000000e-01 : f32
    %320 = vector.broadcast %cst_154 : f32 to vector<8x32xf32>
    %321 = arith.mulf %320, %319 : vector<8x32xf32>
    %cst_155 = arith.constant 5.000000e-01 : f32
    %322 = vector.broadcast %cst_155 : f32 to vector<8x32xf32>
    %323 = arith.addf %321, %322 : vector<8x32xf32>
    %324 = arith.mulf %313, %244 : vector<8x32xf32>
    %325 = arith.mulf %305, %315 : vector<8x32xf32>
    %326 = arith.addf %324, %325 : vector<8x32xf32>
    %327 = math.tanh %326 : vector<8x32xf32>
    %328 = arith.mulf %323, %327 : vector<8x32xf32>
    %c4 = arith.constant 4 : index
    %c0_156 = arith.constant 0 : index
    %c0_157 = arith.constant 0 : index
    %329 = vector.load %arg1[%c4, %c0_156, %c0_157] : memref<6x8x9xf32, #tpu.memory_space<vmem>>, vector<1x8x9xf32>
    %330 = vector.shape_cast %329 : vector<1x8x9xf32> to vector<8x9xf32>
    %c0_158 = arith.constant 0 : index
    %c0_159 = arith.constant 0 : index
    %331 = vector.load %arg5[%c0_158, %c0_159] : memref<9x128xf32, #tpu.memory_space<vmem>>, vector<9x128xf32>
    %cst_160 = arith.constant dense<0.000000e+00> : vector<8x128xf32>
    %332 = tpu.matmul %330, %331, %cst_160 {dimension_numbers = #tpu.dot_dimension_numbers<[1], [0], [0], [1], [0, 0, 1, 1], [], []>} : vector<8x9xf32>, vector<9x128xf32>, vector<8x128xf32> -> vector<8x128xf32>
    %c0_161 = arith.constant 0 : index
    %c0_162 = arith.constant 0 : index
    %333 = vector.load %arg6[%c0_161, %c0_162] : memref<32x128xf32, #tpu.memory_space<vmem>>, vector<32x128xf32>
    %cst_163 = arith.constant dense<0.000000e+00> : vector<8x128xf32>
    %334 = tpu.matmul %287, %333, %cst_163 {dimension_numbers = #tpu.dot_dimension_numbers<[1], [0], [0], [1], [0, 0, 1, 1], [], []>} : vector<8x32xf32>, vector<32x128xf32>, vector<8x128xf32> -> vector<8x128xf32>
    %335 = arith.addf %332, %334 : vector<8x128xf32>
    %c0_164 = arith.constant 0 : index
    %c0_165 = arith.constant 0 : index
    %336 = vector.load %arg7[%c0_164, %c0_165] : memref<1x128xf32, #tpu.memory_space<vmem>>, vector<1x128xf32>
    %337 = vector.broadcast %336 : vector<1x128xf32> to vector<8x128xf32>
    %338 = arith.addf %335, %337 : vector<8x128xf32>
    %339 = vector.extract_strided_slice %338 {offsets = [0, 0], sizes = [8, 32], strides = [1, 1]} : vector<8x128xf32> to vector<8x32xf32>
    %cst_166 = arith.constant 5.000000e-01 : f32
    %340 = vector.broadcast %cst_166 : f32 to vector<8x32xf32>
    %341 = arith.mulf %340, %339 : vector<8x32xf32>
    %342 = math.tanh %341 : vector<8x32xf32>
    %cst_167 = arith.constant 5.000000e-01 : f32
    %343 = vector.broadcast %cst_167 : f32 to vector<8x32xf32>
    %344 = arith.mulf %343, %342 : vector<8x32xf32>
    %cst_168 = arith.constant 5.000000e-01 : f32
    %345 = vector.broadcast %cst_168 : f32 to vector<8x32xf32>
    %346 = arith.addf %344, %345 : vector<8x32xf32>
    %347 = vector.extract_strided_slice %338 {offsets = [0, 32], sizes = [8, 32], strides = [1, 1]} : vector<8x128xf32> to vector<8x32xf32>
    %cst_169 = arith.constant 5.000000e-01 : f32
    %348 = vector.broadcast %cst_169 : f32 to vector<8x32xf32>
    %349 = arith.mulf %348, %347 : vector<8x32xf32>
    %350 = math.tanh %349 : vector<8x32xf32>
    %cst_170 = arith.constant 5.000000e-01 : f32
    %351 = vector.broadcast %cst_170 : f32 to vector<8x32xf32>
    %352 = arith.mulf %351, %350 : vector<8x32xf32>
    %cst_171 = arith.constant 5.000000e-01 : f32
    %353 = vector.broadcast %cst_171 : f32 to vector<8x32xf32>
    %354 = arith.addf %352, %353 : vector<8x32xf32>
    %355 = vector.extract_strided_slice %338 {offsets = [0, 64], sizes = [8, 32], strides = [1, 1]} : vector<8x128xf32> to vector<8x32xf32>
    %356 = math.tanh %355 : vector<8x32xf32>
    %357 = vector.extract_strided_slice %338 {offsets = [0, 96], sizes = [8, 32], strides = [1, 1]} : vector<8x128xf32> to vector<8x32xf32>
    %cst_172 = arith.constant 5.000000e-01 : f32
    %358 = vector.broadcast %cst_172 : f32 to vector<8x32xf32>
    %359 = arith.mulf %358, %357 : vector<8x32xf32>
    %360 = math.tanh %359 : vector<8x32xf32>
    %cst_173 = arith.constant 5.000000e-01 : f32
    %361 = vector.broadcast %cst_173 : f32 to vector<8x32xf32>
    %362 = arith.mulf %361, %360 : vector<8x32xf32>
    %cst_174 = arith.constant 5.000000e-01 : f32
    %363 = vector.broadcast %cst_174 : f32 to vector<8x32xf32>
    %364 = arith.addf %362, %363 : vector<8x32xf32>
    %365 = arith.mulf %354, %285 : vector<8x32xf32>
    %366 = arith.mulf %346, %356 : vector<8x32xf32>
    %367 = arith.addf %365, %366 : vector<8x32xf32>
    %368 = math.tanh %367 : vector<8x32xf32>
    %369 = arith.mulf %364, %368 : vector<8x32xf32>
    %c4_175 = arith.constant 4 : index
    %c0_176 = arith.constant 0 : index
    %c0_177 = arith.constant 0 : index
    %370 = vector.load %arg2[%c4_175, %c0_176, %c0_177] : memref<6x8x10xf32, #tpu.memory_space<vmem>>, vector<1x8x10xf32>
    %371 = vector.shape_cast %370 : vector<1x8x10xf32> to vector<8x10xf32>
    %c0_178 = arith.constant 0 : index
    %c0_179 = arith.constant 0 : index
    %372 = vector.load %arg8[%c0_178, %c0_179] : memref<10x128xf32, #tpu.memory_space<vmem>>, vector<10x128xf32>
    %cst_180 = arith.constant dense<0.000000e+00> : vector<8x128xf32>
    %373 = tpu.matmul %371, %372, %cst_180 {dimension_numbers = #tpu.dot_dimension_numbers<[1], [0], [0], [1], [0, 0, 1, 1], [], []>} : vector<8x10xf32>, vector<10x128xf32>, vector<8x128xf32> -> vector<8x128xf32>
    %c0_181 = arith.constant 0 : index
    %c0_182 = arith.constant 0 : index
    %374 = vector.load %arg9[%c0_181, %c0_182] : memref<32x128xf32, #tpu.memory_space<vmem>>, vector<32x128xf32>
    %cst_183 = arith.constant dense<0.000000e+00> : vector<8x128xf32>
    %375 = tpu.matmul %328, %374, %cst_183 {dimension_numbers = #tpu.dot_dimension_numbers<[1], [0], [0], [1], [0, 0, 1, 1], [], []>} : vector<8x32xf32>, vector<32x128xf32>, vector<8x128xf32> -> vector<8x128xf32>
    %376 = arith.addf %373, %375 : vector<8x128xf32>
    %c0_184 = arith.constant 0 : index
    %c0_185 = arith.constant 0 : index
    %377 = vector.load %arg10[%c0_184, %c0_185] : memref<1x128xf32, #tpu.memory_space<vmem>>, vector<1x128xf32>
    %378 = vector.broadcast %377 : vector<1x128xf32> to vector<8x128xf32>
    %379 = arith.addf %376, %378 : vector<8x128xf32>
    %380 = vector.extract_strided_slice %379 {offsets = [0, 0], sizes = [8, 32], strides = [1, 1]} : vector<8x128xf32> to vector<8x32xf32>
    %cst_186 = arith.constant 5.000000e-01 : f32
    %381 = vector.broadcast %cst_186 : f32 to vector<8x32xf32>
    %382 = arith.mulf %381, %380 : vector<8x32xf32>
    %383 = math.tanh %382 : vector<8x32xf32>
    %cst_187 = arith.constant 5.000000e-01 : f32
    %384 = vector.broadcast %cst_187 : f32 to vector<8x32xf32>
    %385 = arith.mulf %384, %383 : vector<8x32xf32>
    %cst_188 = arith.constant 5.000000e-01 : f32
    %386 = vector.broadcast %cst_188 : f32 to vector<8x32xf32>
    %387 = arith.addf %385, %386 : vector<8x32xf32>
    %388 = vector.extract_strided_slice %379 {offsets = [0, 32], sizes = [8, 32], strides = [1, 1]} : vector<8x128xf32> to vector<8x32xf32>
    %cst_189 = arith.constant 5.000000e-01 : f32
    %389 = vector.broadcast %cst_189 : f32 to vector<8x32xf32>
    %390 = arith.mulf %389, %388 : vector<8x32xf32>
    %391 = math.tanh %390 : vector<8x32xf32>
    %cst_190 = arith.constant 5.000000e-01 : f32
    %392 = vector.broadcast %cst_190 : f32 to vector<8x32xf32>
    %393 = arith.mulf %392, %391 : vector<8x32xf32>
    %cst_191 = arith.constant 5.000000e-01 : f32
    %394 = vector.broadcast %cst_191 : f32 to vector<8x32xf32>
    %395 = arith.addf %393, %394 : vector<8x32xf32>
    %396 = vector.extract_strided_slice %379 {offsets = [0, 64], sizes = [8, 32], strides = [1, 1]} : vector<8x128xf32> to vector<8x32xf32>
    %397 = math.tanh %396 : vector<8x32xf32>
    %398 = vector.extract_strided_slice %379 {offsets = [0, 96], sizes = [8, 32], strides = [1, 1]} : vector<8x128xf32> to vector<8x32xf32>
    %cst_192 = arith.constant 5.000000e-01 : f32
    %399 = vector.broadcast %cst_192 : f32 to vector<8x32xf32>
    %400 = arith.mulf %399, %398 : vector<8x32xf32>
    %401 = math.tanh %400 : vector<8x32xf32>
    %cst_193 = arith.constant 5.000000e-01 : f32
    %402 = vector.broadcast %cst_193 : f32 to vector<8x32xf32>
    %403 = arith.mulf %402, %401 : vector<8x32xf32>
    %cst_194 = arith.constant 5.000000e-01 : f32
    %404 = vector.broadcast %cst_194 : f32 to vector<8x32xf32>
    %405 = arith.addf %403, %404 : vector<8x32xf32>
    %406 = arith.mulf %395, %326 : vector<8x32xf32>
    %407 = arith.mulf %387, %397 : vector<8x32xf32>
    %408 = arith.addf %406, %407 : vector<8x32xf32>
    %409 = math.tanh %408 : vector<8x32xf32>
    %410 = arith.mulf %405, %409 : vector<8x32xf32>
    %c5 = arith.constant 5 : index
    %c0_195 = arith.constant 0 : index
    %c0_196 = arith.constant 0 : index
    %411 = vector.load %arg1[%c5, %c0_195, %c0_196] : memref<6x8x9xf32, #tpu.memory_space<vmem>>, vector<1x8x9xf32>
    %412 = vector.shape_cast %411 : vector<1x8x9xf32> to vector<8x9xf32>
    %c0_197 = arith.constant 0 : index
    %c0_198 = arith.constant 0 : index
    %413 = vector.load %arg5[%c0_197, %c0_198] : memref<9x128xf32, #tpu.memory_space<vmem>>, vector<9x128xf32>
    %cst_199 = arith.constant dense<0.000000e+00> : vector<8x128xf32>
    %414 = tpu.matmul %412, %413, %cst_199 {dimension_numbers = #tpu.dot_dimension_numbers<[1], [0], [0], [1], [0, 0, 1, 1], [], []>} : vector<8x9xf32>, vector<9x128xf32>, vector<8x128xf32> -> vector<8x128xf32>
    %c0_200 = arith.constant 0 : index
    %c0_201 = arith.constant 0 : index
    %415 = vector.load %arg6[%c0_200, %c0_201] : memref<32x128xf32, #tpu.memory_space<vmem>>, vector<32x128xf32>
    %cst_202 = arith.constant dense<0.000000e+00> : vector<8x128xf32>
    %416 = tpu.matmul %369, %415, %cst_202 {dimension_numbers = #tpu.dot_dimension_numbers<[1], [0], [0], [1], [0, 0, 1, 1], [], []>} : vector<8x32xf32>, vector<32x128xf32>, vector<8x128xf32> -> vector<8x128xf32>
    %417 = arith.addf %414, %416 : vector<8x128xf32>
    %c0_203 = arith.constant 0 : index
    %c0_204 = arith.constant 0 : index
    %418 = vector.load %arg7[%c0_203, %c0_204] : memref<1x128xf32, #tpu.memory_space<vmem>>, vector<1x128xf32>
    %419 = vector.broadcast %418 : vector<1x128xf32> to vector<8x128xf32>
    %420 = arith.addf %417, %419 : vector<8x128xf32>
    %421 = vector.extract_strided_slice %420 {offsets = [0, 0], sizes = [8, 32], strides = [1, 1]} : vector<8x128xf32> to vector<8x32xf32>
    %cst_205 = arith.constant 5.000000e-01 : f32
    %422 = vector.broadcast %cst_205 : f32 to vector<8x32xf32>
    %423 = arith.mulf %422, %421 : vector<8x32xf32>
    %424 = math.tanh %423 : vector<8x32xf32>
    %cst_206 = arith.constant 5.000000e-01 : f32
    %425 = vector.broadcast %cst_206 : f32 to vector<8x32xf32>
    %426 = arith.mulf %425, %424 : vector<8x32xf32>
    %cst_207 = arith.constant 5.000000e-01 : f32
    %427 = vector.broadcast %cst_207 : f32 to vector<8x32xf32>
    %428 = arith.addf %426, %427 : vector<8x32xf32>
    %429 = vector.extract_strided_slice %420 {offsets = [0, 32], sizes = [8, 32], strides = [1, 1]} : vector<8x128xf32> to vector<8x32xf32>
    %cst_208 = arith.constant 5.000000e-01 : f32
    %430 = vector.broadcast %cst_208 : f32 to vector<8x32xf32>
    %431 = arith.mulf %430, %429 : vector<8x32xf32>
    %432 = math.tanh %431 : vector<8x32xf32>
    %cst_209 = arith.constant 5.000000e-01 : f32
    %433 = vector.broadcast %cst_209 : f32 to vector<8x32xf32>
    %434 = arith.mulf %433, %432 : vector<8x32xf32>
    %cst_210 = arith.constant 5.000000e-01 : f32
    %435 = vector.broadcast %cst_210 : f32 to vector<8x32xf32>
    %436 = arith.addf %434, %435 : vector<8x32xf32>
    %437 = vector.extract_strided_slice %420 {offsets = [0, 64], sizes = [8, 32], strides = [1, 1]} : vector<8x128xf32> to vector<8x32xf32>
    %438 = math.tanh %437 : vector<8x32xf32>
    %439 = vector.extract_strided_slice %420 {offsets = [0, 96], sizes = [8, 32], strides = [1, 1]} : vector<8x128xf32> to vector<8x32xf32>
    %cst_211 = arith.constant 5.000000e-01 : f32
    %440 = vector.broadcast %cst_211 : f32 to vector<8x32xf32>
    %441 = arith.mulf %440, %439 : vector<8x32xf32>
    %442 = math.tanh %441 : vector<8x32xf32>
    %cst_212 = arith.constant 5.000000e-01 : f32
    %443 = vector.broadcast %cst_212 : f32 to vector<8x32xf32>
    %444 = arith.mulf %443, %442 : vector<8x32xf32>
    %cst_213 = arith.constant 5.000000e-01 : f32
    %445 = vector.broadcast %cst_213 : f32 to vector<8x32xf32>
    %446 = arith.addf %444, %445 : vector<8x32xf32>
    %447 = arith.mulf %436, %367 : vector<8x32xf32>
    %448 = arith.mulf %428, %438 : vector<8x32xf32>
    %449 = arith.addf %447, %448 : vector<8x32xf32>
    %450 = math.tanh %449 : vector<8x32xf32>
    %451 = arith.mulf %446, %450 : vector<8x32xf32>
    %c5_214 = arith.constant 5 : index
    %c0_215 = arith.constant 0 : index
    %c0_216 = arith.constant 0 : index
    %452 = vector.load %arg2[%c5_214, %c0_215, %c0_216] : memref<6x8x10xf32, #tpu.memory_space<vmem>>, vector<1x8x10xf32>
    %453 = vector.shape_cast %452 : vector<1x8x10xf32> to vector<8x10xf32>
    %c0_217 = arith.constant 0 : index
    %c0_218 = arith.constant 0 : index
    %454 = vector.load %arg8[%c0_217, %c0_218] : memref<10x128xf32, #tpu.memory_space<vmem>>, vector<10x128xf32>
    %cst_219 = arith.constant dense<0.000000e+00> : vector<8x128xf32>
    %455 = tpu.matmul %453, %454, %cst_219 {dimension_numbers = #tpu.dot_dimension_numbers<[1], [0], [0], [1], [0, 0, 1, 1], [], []>} : vector<8x10xf32>, vector<10x128xf32>, vector<8x128xf32> -> vector<8x128xf32>
    %c0_220 = arith.constant 0 : index
    %c0_221 = arith.constant 0 : index
    %456 = vector.load %arg9[%c0_220, %c0_221] : memref<32x128xf32, #tpu.memory_space<vmem>>, vector<32x128xf32>
    %cst_222 = arith.constant dense<0.000000e+00> : vector<8x128xf32>
    %457 = tpu.matmul %410, %456, %cst_222 {dimension_numbers = #tpu.dot_dimension_numbers<[1], [0], [0], [1], [0, 0, 1, 1], [], []>} : vector<8x32xf32>, vector<32x128xf32>, vector<8x128xf32> -> vector<8x128xf32>
    %458 = arith.addf %455, %457 : vector<8x128xf32>
    %c0_223 = arith.constant 0 : index
    %c0_224 = arith.constant 0 : index
    %459 = vector.load %arg10[%c0_223, %c0_224] : memref<1x128xf32, #tpu.memory_space<vmem>>, vector<1x128xf32>
    %460 = vector.broadcast %459 : vector<1x128xf32> to vector<8x128xf32>
    %461 = arith.addf %458, %460 : vector<8x128xf32>
    %462 = vector.extract_strided_slice %461 {offsets = [0, 0], sizes = [8, 32], strides = [1, 1]} : vector<8x128xf32> to vector<8x32xf32>
    %cst_225 = arith.constant 5.000000e-01 : f32
    %463 = vector.broadcast %cst_225 : f32 to vector<8x32xf32>
    %464 = arith.mulf %463, %462 : vector<8x32xf32>
    %465 = math.tanh %464 : vector<8x32xf32>
    %cst_226 = arith.constant 5.000000e-01 : f32
    %466 = vector.broadcast %cst_226 : f32 to vector<8x32xf32>
    %467 = arith.mulf %466, %465 : vector<8x32xf32>
    %cst_227 = arith.constant 5.000000e-01 : f32
    %468 = vector.broadcast %cst_227 : f32 to vector<8x32xf32>
    %469 = arith.addf %467, %468 : vector<8x32xf32>
    %470 = vector.extract_strided_slice %461 {offsets = [0, 32], sizes = [8, 32], strides = [1, 1]} : vector<8x128xf32> to vector<8x32xf32>
    %cst_228 = arith.constant 5.000000e-01 : f32
    %471 = vector.broadcast %cst_228 : f32 to vector<8x32xf32>
    %472 = arith.mulf %471, %470 : vector<8x32xf32>
    %473 = math.tanh %472 : vector<8x32xf32>
    %cst_229 = arith.constant 5.000000e-01 : f32
    %474 = vector.broadcast %cst_229 : f32 to vector<8x32xf32>
    %475 = arith.mulf %474, %473 : vector<8x32xf32>
    %cst_230 = arith.constant 5.000000e-01 : f32
    %476 = vector.broadcast %cst_230 : f32 to vector<8x32xf32>
    %477 = arith.addf %475, %476 : vector<8x32xf32>
    %478 = vector.extract_strided_slice %461 {offsets = [0, 64], sizes = [8, 32], strides = [1, 1]} : vector<8x128xf32> to vector<8x32xf32>
    %479 = math.tanh %478 : vector<8x32xf32>
    %480 = vector.extract_strided_slice %461 {offsets = [0, 96], sizes = [8, 32], strides = [1, 1]} : vector<8x128xf32> to vector<8x32xf32>
    %cst_231 = arith.constant 5.000000e-01 : f32
    %481 = vector.broadcast %cst_231 : f32 to vector<8x32xf32>
    %482 = arith.mulf %481, %480 : vector<8x32xf32>
    %483 = math.tanh %482 : vector<8x32xf32>
    %cst_232 = arith.constant 5.000000e-01 : f32
    %484 = vector.broadcast %cst_232 : f32 to vector<8x32xf32>
    %485 = arith.mulf %484, %483 : vector<8x32xf32>
    %cst_233 = arith.constant 5.000000e-01 : f32
    %486 = vector.broadcast %cst_233 : f32 to vector<8x32xf32>
    %487 = arith.addf %485, %486 : vector<8x32xf32>
    %488 = arith.mulf %477, %408 : vector<8x32xf32>
    %489 = arith.mulf %469, %479 : vector<8x32xf32>
    %490 = arith.addf %488, %489 : vector<8x32xf32>
    %491 = math.tanh %490 : vector<8x32xf32>
    %492 = arith.mulf %487, %491 : vector<8x32xf32>
    %493 = tpu.concatenate %451, %492 in 1 : vector<8x32xf32>, vector<8x32xf32> -> vector<8x64xf32>
    %494 = tpu.concatenate %449, %490 in 1 : vector<8x32xf32>, vector<8x32xf32> -> vector<8x64xf32>
    %c5_234 = arith.constant 5 : index
    %c0_235 = arith.constant 0 : index
    %c0_236 = arith.constant 0 : index
    %495 = vector.load %arg2[%c5_234, %c0_235, %c0_236] : memref<6x8x10xf32, #tpu.memory_space<vmem>>, vector<1x8x10xf32>
    %496 = vector.shape_cast %495 : vector<1x8x10xf32> to vector<8x10xf32>
    %497 = tpu.iota {dimensions = array<i32: 1>} : vector<8x8xi32>
    %498 = vector.extract_strided_slice %496 {offsets = [0, 0], sizes = [8, 8], strides = [1, 1]} : vector<8x10xf32> to vector<8x8xf32>
    %499 = vector.extract_strided_slice %496 {offsets = [0, 9], sizes = [8, 1], strides = [1, 1]} : vector<8x10xf32> to vector<8x1xf32>
    %c0_237 = arith.constant 0 : index
    %c0_238 = arith.constant 0 : index
    %500 = vector.load %arg11[%c0_237, %c0_238] : memref<8x256xf32, #tpu.memory_space<vmem>>, vector<8x256xf32>
    %cst_239 = arith.constant dense<0.000000e+00> : vector<8x256xf32>
    %501 = tpu.matmul %498, %500, %cst_239 {dimension_numbers = #tpu.dot_dimension_numbers<[1], [0], [0], [1], [0, 0, 1, 1], [], []>} : vector<8x8xf32>, vector<8x256xf32>, vector<8x256xf32> -> vector<8x256xf32>
    %c0_240 = arith.constant 0 : index
    %c0_241 = arith.constant 0 : index
    %502 = vector.load %arg12[%c0_240, %c0_241] : memref<64x256xf32, #tpu.memory_space<vmem>>, vector<64x256xf32>
    %cst_242 = arith.constant dense<0.000000e+00> : vector<8x256xf32>
    %503 = tpu.matmul %493, %502, %cst_242 {dimension_numbers = #tpu.dot_dimension_numbers<[1], [0], [0], [1], [0, 0, 1, 1], [], []>} : vector<8x64xf32>, vector<64x256xf32>, vector<8x256xf32> -> vector<8x256xf32>
    %504 = arith.addf %501, %503 : vector<8x256xf32>
    %c0_243 = arith.constant 0 : index
    %c0_244 = arith.constant 0 : index
    %505 = vector.load %arg13[%c0_243, %c0_244] : memref<1x256xf32, #tpu.memory_space<vmem>>, vector<1x256xf32>
    %506 = vector.broadcast %505 : vector<1x256xf32> to vector<8x256xf32>
    %507 = arith.addf %504, %506 : vector<8x256xf32>
    %508 = vector.extract_strided_slice %507 {offsets = [0, 0], sizes = [8, 64], strides = [1, 1]} : vector<8x256xf32> to vector<8x64xf32>
    %cst_245 = arith.constant 5.000000e-01 : f32
    %509 = vector.broadcast %cst_245 : f32 to vector<8x64xf32>
    %510 = arith.mulf %509, %508 : vector<8x64xf32>
    %511 = math.tanh %510 : vector<8x64xf32>
    %cst_246 = arith.constant 5.000000e-01 : f32
    %512 = vector.broadcast %cst_246 : f32 to vector<8x64xf32>
    %513 = arith.mulf %512, %511 : vector<8x64xf32>
    %cst_247 = arith.constant 5.000000e-01 : f32
    %514 = vector.broadcast %cst_247 : f32 to vector<8x64xf32>
    %515 = arith.addf %513, %514 : vector<8x64xf32>
    %516 = vector.extract_strided_slice %507 {offsets = [0, 64], sizes = [8, 64], strides = [1, 1]} : vector<8x256xf32> to vector<8x64xf32>
    %cst_248 = arith.constant 5.000000e-01 : f32
    %517 = vector.broadcast %cst_248 : f32 to vector<8x64xf32>
    %518 = arith.mulf %517, %516 : vector<8x64xf32>
    %519 = math.tanh %518 : vector<8x64xf32>
    %cst_249 = arith.constant 5.000000e-01 : f32
    %520 = vector.broadcast %cst_249 : f32 to vector<8x64xf32>
    %521 = arith.mulf %520, %519 : vector<8x64xf32>
    %cst_250 = arith.constant 5.000000e-01 : f32
    %522 = vector.broadcast %cst_250 : f32 to vector<8x64xf32>
    %523 = arith.addf %521, %522 : vector<8x64xf32>
    %524 = vector.extract_strided_slice %507 {offsets = [0, 128], sizes = [8, 64], strides = [1, 1]} : vector<8x256xf32> to vector<8x64xf32>
    %525 = math.tanh %524 : vector<8x64xf32>
    %526 = vector.extract_strided_slice %507 {offsets = [0, 192], sizes = [8, 64], strides = [1, 1]} : vector<8x256xf32> to vector<8x64xf32>
    %cst_251 = arith.constant 5.000000e-01 : f32
    %527 = vector.broadcast %cst_251 : f32 to vector<8x64xf32>
    %528 = arith.mulf %527, %526 : vector<8x64xf32>
    %529 = math.tanh %528 : vector<8x64xf32>
    %cst_252 = arith.constant 5.000000e-01 : f32
    %530 = vector.broadcast %cst_252 : f32 to vector<8x64xf32>
    %531 = arith.mulf %530, %529 : vector<8x64xf32>
    %cst_253 = arith.constant 5.000000e-01 : f32
    %532 = vector.broadcast %cst_253 : f32 to vector<8x64xf32>
    %533 = arith.addf %531, %532 : vector<8x64xf32>
    %534 = arith.mulf %523, %494 : vector<8x64xf32>
    %535 = arith.mulf %515, %525 : vector<8x64xf32>
    %536 = arith.addf %534, %535 : vector<8x64xf32>
    %537 = math.tanh %536 : vector<8x64xf32>
    %538 = arith.mulf %533, %537 : vector<8x64xf32>
    %c0_254 = arith.constant 0 : index
    %c0_255 = arith.constant 0 : index
    %539 = vector.load %arg14[%c0_254, %c0_255] : memref<1x256xf32, #tpu.memory_space<vmem>>, vector<1x256xf32>
    %540 = vector.broadcast %499 : vector<8x1xf32> to vector<8x256xf32>
    %541 = vector.broadcast %539 : vector<1x256xf32> to vector<8x256xf32>
    %542 = arith.mulf %540, %541 : vector<8x256xf32>
    %c0_256 = arith.constant 0 : index
    %c0_257 = arith.constant 0 : index
    %543 = vector.load %arg15[%c0_256, %c0_257] : memref<64x256xf32, #tpu.memory_space<vmem>>, vector<64x256xf32>
    %cst_258 = arith.constant dense<0.000000e+00> : vector<8x256xf32>
    %544 = tpu.matmul %493, %543, %cst_258 {dimension_numbers = #tpu.dot_dimension_numbers<[1], [0], [0], [1], [0, 0, 1, 1], [], []>} : vector<8x64xf32>, vector<64x256xf32>, vector<8x256xf32> -> vector<8x256xf32>
    %545 = arith.addf %542, %544 : vector<8x256xf32>
    %c0_259 = arith.constant 0 : index
    %c0_260 = arith.constant 0 : index
    %546 = vector.load %arg16[%c0_259, %c0_260] : memref<1x256xf32, #tpu.memory_space<vmem>>, vector<1x256xf32>
    %547 = vector.broadcast %546 : vector<1x256xf32> to vector<8x256xf32>
    %548 = arith.addf %545, %547 : vector<8x256xf32>
    %549 = vector.extract_strided_slice %548 {offsets = [0, 0], sizes = [8, 64], strides = [1, 1]} : vector<8x256xf32> to vector<8x64xf32>
    %cst_261 = arith.constant 5.000000e-01 : f32
    %550 = vector.broadcast %cst_261 : f32 to vector<8x64xf32>
    %551 = arith.mulf %550, %549 : vector<8x64xf32>
    %552 = math.tanh %551 : vector<8x64xf32>
    %cst_262 = arith.constant 5.000000e-01 : f32
    %553 = vector.broadcast %cst_262 : f32 to vector<8x64xf32>
    %554 = arith.mulf %553, %552 : vector<8x64xf32>
    %cst_263 = arith.constant 5.000000e-01 : f32
    %555 = vector.broadcast %cst_263 : f32 to vector<8x64xf32>
    %556 = arith.addf %554, %555 : vector<8x64xf32>
    %557 = vector.extract_strided_slice %548 {offsets = [0, 64], sizes = [8, 64], strides = [1, 1]} : vector<8x256xf32> to vector<8x64xf32>
    %cst_264 = arith.constant 5.000000e-01 : f32
    %558 = vector.broadcast %cst_264 : f32 to vector<8x64xf32>
    %559 = arith.mulf %558, %557 : vector<8x64xf32>
    %560 = math.tanh %559 : vector<8x64xf32>
    %cst_265 = arith.constant 5.000000e-01 : f32
    %561 = vector.broadcast %cst_265 : f32 to vector<8x64xf32>
    %562 = arith.mulf %561, %560 : vector<8x64xf32>
    %cst_266 = arith.constant 5.000000e-01 : f32
    %563 = vector.broadcast %cst_266 : f32 to vector<8x64xf32>
    %564 = arith.addf %562, %563 : vector<8x64xf32>
    %565 = vector.extract_strided_slice %548 {offsets = [0, 128], sizes = [8, 64], strides = [1, 1]} : vector<8x256xf32> to vector<8x64xf32>
    %566 = math.tanh %565 : vector<8x64xf32>
    %567 = vector.extract_strided_slice %548 {offsets = [0, 192], sizes = [8, 64], strides = [1, 1]} : vector<8x256xf32> to vector<8x64xf32>
    %cst_267 = arith.constant 5.000000e-01 : f32
    %568 = vector.broadcast %cst_267 : f32 to vector<8x64xf32>
    %569 = arith.mulf %568, %567 : vector<8x64xf32>
    %570 = math.tanh %569 : vector<8x64xf32>
    %cst_268 = arith.constant 5.000000e-01 : f32
    %571 = vector.broadcast %cst_268 : f32 to vector<8x64xf32>
    %572 = arith.mulf %571, %570 : vector<8x64xf32>
    %cst_269 = arith.constant 5.000000e-01 : f32
    %573 = vector.broadcast %cst_269 : f32 to vector<8x64xf32>
    %574 = arith.addf %572, %573 : vector<8x64xf32>
    %575 = arith.mulf %564, %494 : vector<8x64xf32>
    %576 = arith.mulf %556, %566 : vector<8x64xf32>
    %577 = arith.addf %575, %576 : vector<8x64xf32>
    %578 = math.tanh %577 : vector<8x64xf32>
    %579 = arith.mulf %574, %578 : vector<8x64xf32>
    %c0_270 = arith.constant 0 : index
    %c0_271 = arith.constant 0 : index
    %580 = vector.load %arg17[%c0_270, %c0_271] : memref<64x128xf32, #tpu.memory_space<vmem>>, vector<64x128xf32>
    %cst_272 = arith.constant dense<0.000000e+00> : vector<8x128xf32>
    %581 = tpu.matmul %538, %580, %cst_272 {dimension_numbers = #tpu.dot_dimension_numbers<[1], [0], [0], [1], [0, 0, 1, 1], [], []>} : vector<8x64xf32>, vector<64x128xf32>, vector<8x128xf32> -> vector<8x128xf32>
    %c0_273 = arith.constant 0 : index
    %c0_274 = arith.constant 0 : index
    %582 = vector.load %arg18[%c0_273, %c0_274] : memref<1x128xf32, #tpu.memory_space<vmem>>, vector<1x128xf32>
    %583 = vector.broadcast %582 : vector<1x128xf32> to vector<8x128xf32>
    %584 = arith.addf %581, %583 : vector<8x128xf32>
    %c0_275 = arith.constant 0 : index
    %c0_276 = arith.constant 0 : index
    %585 = vector.load %arg19[%c0_275, %c0_276] : memref<64x128xf32, #tpu.memory_space<vmem>>, vector<64x128xf32>
    %cst_277 = arith.constant dense<0.000000e+00> : vector<8x128xf32>
    %586 = tpu.matmul %579, %585, %cst_277 {dimension_numbers = #tpu.dot_dimension_numbers<[1], [0], [0], [1], [0, 0, 1, 1], [], []>} : vector<8x64xf32>, vector<64x128xf32>, vector<8x128xf32> -> vector<8x128xf32>
    %c0_278 = arith.constant 0 : index
    %c0_279 = arith.constant 0 : index
    %587 = vector.load %arg20[%c0_278, %c0_279] : memref<1x128xf32, #tpu.memory_space<vmem>>, vector<1x128xf32>
    %588 = vector.broadcast %587 : vector<1x128xf32> to vector<8x128xf32>
    %589 = arith.addf %586, %588 : vector<8x128xf32>
    %c0_280 = arith.constant 0 : index
    %c0_281 = arith.constant 0 : index
    %c0_282 = arith.constant 0 : index
    %590 = vector.load %arg21[%c0_280, %c0_281, %c0_282] : memref<5x8x128xf32, #tpu.memory_space<vmem>>, vector<1x8x128xf32>
    %591 = vector.shape_cast %590 : vector<1x8x128xf32> to vector<8x128xf32>
    %592 = vector.shape_cast %584 : vector<8x128xf32> to vector<1x8x128xf32>
    tpu.vector_store %arg21[%c0_280, %c0_281, %c0_282], %592 {strides = array<i32>} : memref<5x8x128xf32, #tpu.memory_space<vmem>>, vector<1x8x128xf32>,
    %c0_283 = arith.constant 0 : index
    %c0_284 = arith.constant 0 : index
    %c0_285 = arith.constant 0 : index
    %593 = vector.load %arg22[%c0_283, %c0_284, %c0_285] : memref<5x8x128xf32, #tpu.memory_space<vmem>>, vector<1x8x128xf32>
    %594 = vector.shape_cast %593 : vector<1x8x128xf32> to vector<8x128xf32>
    %595 = vector.shape_cast %589 : vector<8x128xf32> to vector<1x8x128xf32>
    tpu.vector_store %arg22[%c0_283, %c0_284, %c0_285], %595 {strides = array<i32>} : memref<5x8x128xf32, #tpu.memory_space<vmem>>, vector<1x8x128xf32>,
    %c0_286 = arith.constant 0 : index
    %c0_287 = arith.constant 0 : index
    %c0_288 = arith.constant 0 : index
    %596 = vector.load %arg3[%c0_286, %c0_287, %c0_288] : memref<5x8x1xi32, #tpu.memory_space<vmem>>, vector<1x8x1xi32>
    %597 = vector.shape_cast %596 : vector<1x8x1xi32> to vector<8x1xi32>
    %598 = vector.broadcast %597 : vector<8x1xi32> to vector<8x8xi32>
    %599 = arith.cmpi eq, %497, %598 : vector<8x8xi32>
    %c0_i32 = arith.constant 0 : i32
    %600 = vector.broadcast %c0_i32 : i32 to vector<8x8xi32>
    %601 = arith.cmpi ne, %497, %600 : vector<8x8xi32>
    %602 = arith.andi %599, %601 : vector<8x8xi1>
    %603 = arith.extui %602 : vector<8x8xi1> to vector<8x8xi32>
    %604 = arith.sitofp %603 : vector<8x8xi32> to vector<8x8xf32>
    %c0_289 = arith.constant 0 : index
    %c0_290 = arith.constant 0 : index
    %c0_291 = arith.constant 0 : index
    %605 = vector.load %arg4[%c0_289, %c0_290, %c0_291] : memref<5x8x1xf32, #tpu.memory_space<vmem>>, vector<1x8x1xf32>
    %606 = vector.shape_cast %605 : vector<1x8x1xf32> to vector<8x1xf32>
    %c0_292 = arith.constant 0 : index
    %c0_293 = arith.constant 0 : index
    %607 = vector.load %arg11[%c0_292, %c0_293] : memref<8x256xf32, #tpu.memory_space<vmem>>, vector<8x256xf32>
    %cst_294 = arith.constant dense<0.000000e+00> : vector<8x256xf32>
    %608 = tpu.matmul %604, %607, %cst_294 {dimension_numbers = #tpu.dot_dimension_numbers<[1], [0], [0], [1], [0, 0, 1, 1], [], []>} : vector<8x8xf32>, vector<8x256xf32>, vector<8x256xf32> -> vector<8x256xf32>
    %c0_295 = arith.constant 0 : index
    %c0_296 = arith.constant 0 : index
    %609 = vector.load %arg12[%c0_295, %c0_296] : memref<64x256xf32, #tpu.memory_space<vmem>>, vector<64x256xf32>
    %cst_297 = arith.constant dense<0.000000e+00> : vector<8x256xf32>
    %610 = tpu.matmul %538, %609, %cst_297 {dimension_numbers = #tpu.dot_dimension_numbers<[1], [0], [0], [1], [0, 0, 1, 1], [], []>} : vector<8x64xf32>, vector<64x256xf32>, vector<8x256xf32> -> vector<8x256xf32>
    %611 = arith.addf %608, %610 : vector<8x256xf32>
    %c0_298 = arith.constant 0 : index
    %c0_299 = arith.constant 0 : index
    %612 = vector.load %arg13[%c0_298, %c0_299] : memref<1x256xf32, #tpu.memory_space<vmem>>, vector<1x256xf32>
    %613 = vector.broadcast %612 : vector<1x256xf32> to vector<8x256xf32>
    %614 = arith.addf %611, %613 : vector<8x256xf32>
    %615 = vector.extract_strided_slice %614 {offsets = [0, 0], sizes = [8, 64], strides = [1, 1]} : vector<8x256xf32> to vector<8x64xf32>
    %cst_300 = arith.constant 5.000000e-01 : f32
    %616 = vector.broadcast %cst_300 : f32 to vector<8x64xf32>
    %617 = arith.mulf %616, %615 : vector<8x64xf32>
    %618 = math.tanh %617 : vector<8x64xf32>
    %cst_301 = arith.constant 5.000000e-01 : f32
    %619 = vector.broadcast %cst_301 : f32 to vector<8x64xf32>
    %620 = arith.mulf %619, %618 : vector<8x64xf32>
    %cst_302 = arith.constant 5.000000e-01 : f32
    %621 = vector.broadcast %cst_302 : f32 to vector<8x64xf32>
    %622 = arith.addf %620, %621 : vector<8x64xf32>
    %623 = vector.extract_strided_slice %614 {offsets = [0, 64], sizes = [8, 64], strides = [1, 1]} : vector<8x256xf32> to vector<8x64xf32>
    %cst_303 = arith.constant 5.000000e-01 : f32
    %624 = vector.broadcast %cst_303 : f32 to vector<8x64xf32>
    %625 = arith.mulf %624, %623 : vector<8x64xf32>
    %626 = math.tanh %625 : vector<8x64xf32>
    %cst_304 = arith.constant 5.000000e-01 : f32
    %627 = vector.broadcast %cst_304 : f32 to vector<8x64xf32>
    %628 = arith.mulf %627, %626 : vector<8x64xf32>
    %cst_305 = arith.constant 5.000000e-01 : f32
    %629 = vector.broadcast %cst_305 : f32 to vector<8x64xf32>
    %630 = arith.addf %628, %629 : vector<8x64xf32>
    %631 = vector.extract_strided_slice %614 {offsets = [0, 128], sizes = [8, 64], strides = [1, 1]} : vector<8x256xf32> to vector<8x64xf32>
    %632 = math.tanh %631 : vector<8x64xf32>
    %633 = vector.extract_strided_slice %614 {offsets = [0, 192], sizes = [8, 64], strides = [1, 1]} : vector<8x256xf32> to vector<8x64xf32>
    %cst_306 = arith.constant 5.000000e-01 : f32
    %634 = vector.broadcast %cst_306 : f32 to vector<8x64xf32>
    %635 = arith.mulf %634, %633 : vector<8x64xf32>
    %636 = math.tanh %635 : vector<8x64xf32>
    %cst_307 = arith.constant 5.000000e-01 : f32
    %637 = vector.broadcast %cst_307 : f32 to vector<8x64xf32>
    %638 = arith.mulf %637, %636 : vector<8x64xf32>
    %cst_308 = arith.constant 5.000000e-01 : f32
    %639 = vector.broadcast %cst_308 : f32 to vector<8x64xf32>
    %640 = arith.addf %638, %639 : vector<8x64xf32>
    %641 = arith.mulf %630, %536 : vector<8x64xf32>
    %642 = arith.mulf %622, %632 : vector<8x64xf32>
    %643 = arith.addf %641, %642 : vector<8x64xf32>
    %644 = math.tanh %643 : vector<8x64xf32>
    %645 = arith.mulf %640, %644 : vector<8x64xf32>
    %c0_309 = arith.constant 0 : index
    %c0_310 = arith.constant 0 : index
    %646 = vector.load %arg14[%c0_309, %c0_310] : memref<1x256xf32, #tpu.memory_space<vmem>>, vector<1x256xf32>
    %647 = vector.broadcast %606 : vector<8x1xf32> to vector<8x256xf32>
    %648 = vector.broadcast %646 : vector<1x256xf32> to vector<8x256xf32>
    %649 = arith.mulf %647, %648 : vector<8x256xf32>
    %c0_311 = arith.constant 0 : index
    %c0_312 = arith.constant 0 : index
    %650 = vector.load %arg15[%c0_311, %c0_312] : memref<64x256xf32, #tpu.memory_space<vmem>>, vector<64x256xf32>
    %cst_313 = arith.constant dense<0.000000e+00> : vector<8x256xf32>
    %651 = tpu.matmul %579, %650, %cst_313 {dimension_numbers = #tpu.dot_dimension_numbers<[1], [0], [0], [1], [0, 0, 1, 1], [], []>} : vector<8x64xf32>, vector<64x256xf32>, vector<8x256xf32> -> vector<8x256xf32>
    %652 = arith.addf %649, %651 : vector<8x256xf32>
    %c0_314 = arith.constant 0 : index
    %c0_315 = arith.constant 0 : index
    %653 = vector.load %arg16[%c0_314, %c0_315] : memref<1x256xf32, #tpu.memory_space<vmem>>, vector<1x256xf32>
    %654 = vector.broadcast %653 : vector<1x256xf32> to vector<8x256xf32>
    %655 = arith.addf %652, %654 : vector<8x256xf32>
    %656 = vector.extract_strided_slice %655 {offsets = [0, 0], sizes = [8, 64], strides = [1, 1]} : vector<8x256xf32> to vector<8x64xf32>
    %cst_316 = arith.constant 5.000000e-01 : f32
    %657 = vector.broadcast %cst_316 : f32 to vector<8x64xf32>
    %658 = arith.mulf %657, %656 : vector<8x64xf32>
    %659 = math.tanh %658 : vector<8x64xf32>
    %cst_317 = arith.constant 5.000000e-01 : f32
    %660 = vector.broadcast %cst_317 : f32 to vector<8x64xf32>
    %661 = arith.mulf %660, %659 : vector<8x64xf32>
    %cst_318 = arith.constant 5.000000e-01 : f32
    %662 = vector.broadcast %cst_318 : f32 to vector<8x64xf32>
    %663 = arith.addf %661, %662 : vector<8x64xf32>
    %664 = vector.extract_strided_slice %655 {offsets = [0, 64], sizes = [8, 64], strides = [1, 1]} : vector<8x256xf32> to vector<8x64xf32>
    %cst_319 = arith.constant 5.000000e-01 : f32
    %665 = vector.broadcast %cst_319 : f32 to vector<8x64xf32>
    %666 = arith.mulf %665, %664 : vector<8x64xf32>
    %667 = math.tanh %666 : vector<8x64xf32>
    %cst_320 = arith.constant 5.000000e-01 : f32
    %668 = vector.broadcast %cst_320 : f32 to vector<8x64xf32>
    %669 = arith.mulf %668, %667 : vector<8x64xf32>
    %cst_321 = arith.constant 5.000000e-01 : f32
    %670 = vector.broadcast %cst_321 : f32 to vector<8x64xf32>
    %671 = arith.addf %669, %670 : vector<8x64xf32>
    %672 = vector.extract_strided_slice %655 {offsets = [0, 128], sizes = [8, 64], strides = [1, 1]} : vector<8x256xf32> to vector<8x64xf32>
    %673 = math.tanh %672 : vector<8x64xf32>
    %674 = vector.extract_strided_slice %655 {offsets = [0, 192], sizes = [8, 64], strides = [1, 1]} : vector<8x256xf32> to vector<8x64xf32>
    %cst_322 = arith.constant 5.000000e-01 : f32
    %675 = vector.broadcast %cst_322 : f32 to vector<8x64xf32>
    %676 = arith.mulf %675, %674 : vector<8x64xf32>
    %677 = math.tanh %676 : vector<8x64xf32>
    %cst_323 = arith.constant 5.000000e-01 : f32
    %678 = vector.broadcast %cst_323 : f32 to vector<8x64xf32>
    %679 = arith.mulf %678, %677 : vector<8x64xf32>
    %cst_324 = arith.constant 5.000000e-01 : f32
    %680 = vector.broadcast %cst_324 : f32 to vector<8x64xf32>
    %681 = arith.addf %679, %680 : vector<8x64xf32>
    %682 = arith.mulf %671, %577 : vector<8x64xf32>
    %683 = arith.mulf %663, %673 : vector<8x64xf32>
    %684 = arith.addf %682, %683 : vector<8x64xf32>
    %685 = math.tanh %684 : vector<8x64xf32>
    %686 = arith.mulf %681, %685 : vector<8x64xf32>
    %c0_325 = arith.constant 0 : index
    %c0_326 = arith.constant 0 : index
    %687 = vector.load %arg17[%c0_325, %c0_326] : memref<64x128xf32, #tpu.memory_space<vmem>>, vector<64x128xf32>
    %cst_327 = arith.constant dense<0.000000e+00> : vector<8x128xf32>
    %688 = tpu.matmul %645, %687, %cst_327 {dimension_numbers = #tpu.dot_dimension_numbers<[1], [0], [0], [1], [0, 0, 1, 1], [], []>} : vector<8x64xf32>, vector<64x128xf32>, vector<8x128xf32> -> vector<8x128xf32>
    %c0_328 = arith.constant 0 : index
    %c0_329 = arith.constant 0 : index
    %689 = vector.load %arg18[%c0_328, %c0_329] : memref<1x128xf32, #tpu.memory_space<vmem>>, vector<1x128xf32>
    %690 = vector.broadcast %689 : vector<1x128xf32> to vector<8x128xf32>
    %691 = arith.addf %688, %690 : vector<8x128xf32>
    %c0_330 = arith.constant 0 : index
    %c0_331 = arith.constant 0 : index
    %692 = vector.load %arg19[%c0_330, %c0_331] : memref<64x128xf32, #tpu.memory_space<vmem>>, vector<64x128xf32>
    %cst_332 = arith.constant dense<0.000000e+00> : vector<8x128xf32>
    %693 = tpu.matmul %686, %692, %cst_332 {dimension_numbers = #tpu.dot_dimension_numbers<[1], [0], [0], [1], [0, 0, 1, 1], [], []>} : vector<8x64xf32>, vector<64x128xf32>, vector<8x128xf32> -> vector<8x128xf32>
    %c0_333 = arith.constant 0 : index
    %c0_334 = arith.constant 0 : index
    %694 = vector.load %arg20[%c0_333, %c0_334] : memref<1x128xf32, #tpu.memory_space<vmem>>, vector<1x128xf32>
    %695 = vector.broadcast %694 : vector<1x128xf32> to vector<8x128xf32>
    %696 = arith.addf %693, %695 : vector<8x128xf32>
    %c1_335 = arith.constant 1 : index
    %c0_336 = arith.constant 0 : index
    %c0_337 = arith.constant 0 : index
    %697 = vector.load %arg21[%c1_335, %c0_336, %c0_337] : memref<5x8x128xf32, #tpu.memory_space<vmem>>, vector<1x8x128xf32>
    %698 = vector.shape_cast %697 : vector<1x8x128xf32> to vector<8x128xf32>
    %699 = vector.shape_cast %691 : vector<8x128xf32> to vector<1x8x128xf32>
    tpu.vector_store %arg21[%c1_335, %c0_336, %c0_337], %699 {strides = array<i32>} : memref<5x8x128xf32, #tpu.memory_space<vmem>>, vector<1x8x128xf32>,
    %c1_338 = arith.constant 1 : index
    %c0_339 = arith.constant 0 : index
    %c0_340 = arith.constant 0 : index
    %700 = vector.load %arg22[%c1_338, %c0_339, %c0_340] : memref<5x8x128xf32, #tpu.memory_space<vmem>>, vector<1x8x128xf32>
    %701 = vector.shape_cast %700 : vector<1x8x128xf32> to vector<8x128xf32>
    %702 = vector.shape_cast %696 : vector<8x128xf32> to vector<1x8x128xf32>
    tpu.vector_store %arg22[%c1_338, %c0_339, %c0_340], %702 {strides = array<i32>} : memref<5x8x128xf32, #tpu.memory_space<vmem>>, vector<1x8x128xf32>,
    %c1_341 = arith.constant 1 : index
    %c0_342 = arith.constant 0 : index
    %c0_343 = arith.constant 0 : index
    %703 = vector.load %arg3[%c1_341, %c0_342, %c0_343] : memref<5x8x1xi32, #tpu.memory_space<vmem>>, vector<1x8x1xi32>
    %704 = vector.shape_cast %703 : vector<1x8x1xi32> to vector<8x1xi32>
    %705 = vector.broadcast %704 : vector<8x1xi32> to vector<8x8xi32>
    %706 = arith.cmpi eq, %497, %705 : vector<8x8xi32>
    %c0_i32_344 = arith.constant 0 : i32
    %707 = vector.broadcast %c0_i32_344 : i32 to vector<8x8xi32>
    %708 = arith.cmpi ne, %497, %707 : vector<8x8xi32>
    %709 = arith.andi %706, %708 : vector<8x8xi1>
    %710 = arith.extui %709 : vector<8x8xi1> to vector<8x8xi32>
    %711 = arith.sitofp %710 : vector<8x8xi32> to vector<8x8xf32>
    %c1_345 = arith.constant 1 : index
    %c0_346 = arith.constant 0 : index
    %c0_347 = arith.constant 0 : index
    %712 = vector.load %arg4[%c1_345, %c0_346, %c0_347] : memref<5x8x1xf32, #tpu.memory_space<vmem>>, vector<1x8x1xf32>
    %713 = vector.shape_cast %712 : vector<1x8x1xf32> to vector<8x1xf32>
    %c0_348 = arith.constant 0 : index
    %c0_349 = arith.constant 0 : index
    %714 = vector.load %arg11[%c0_348, %c0_349] : memref<8x256xf32, #tpu.memory_space<vmem>>, vector<8x256xf32>
    %cst_350 = arith.constant dense<0.000000e+00> : vector<8x256xf32>
    %715 = tpu.matmul %711, %714, %cst_350 {dimension_numbers = #tpu.dot_dimension_numbers<[1], [0], [0], [1], [0, 0, 1, 1], [], []>} : vector<8x8xf32>, vector<8x256xf32>, vector<8x256xf32> -> vector<8x256xf32>
    %c0_351 = arith.constant 0 : index
    %c0_352 = arith.constant 0 : index
    %716 = vector.load %arg12[%c0_351, %c0_352] : memref<64x256xf32, #tpu.memory_space<vmem>>, vector<64x256xf32>
    %cst_353 = arith.constant dense<0.000000e+00> : vector<8x256xf32>
    %717 = tpu.matmul %645, %716, %cst_353 {dimension_numbers = #tpu.dot_dimension_numbers<[1], [0], [0], [1], [0, 0, 1, 1], [], []>} : vector<8x64xf32>, vector<64x256xf32>, vector<8x256xf32> -> vector<8x256xf32>
    %718 = arith.addf %715, %717 : vector<8x256xf32>
    %c0_354 = arith.constant 0 : index
    %c0_355 = arith.constant 0 : index
    %719 = vector.load %arg13[%c0_354, %c0_355] : memref<1x256xf32, #tpu.memory_space<vmem>>, vector<1x256xf32>
    %720 = vector.broadcast %719 : vector<1x256xf32> to vector<8x256xf32>
    %721 = arith.addf %718, %720 : vector<8x256xf32>
    %722 = vector.extract_strided_slice %721 {offsets = [0, 0], sizes = [8, 64], strides = [1, 1]} : vector<8x256xf32> to vector<8x64xf32>
    %cst_356 = arith.constant 5.000000e-01 : f32
    %723 = vector.broadcast %cst_356 : f32 to vector<8x64xf32>
    %724 = arith.mulf %723, %722 : vector<8x64xf32>
    %725 = math.tanh %724 : vector<8x64xf32>
    %cst_357 = arith.constant 5.000000e-01 : f32
    %726 = vector.broadcast %cst_357 : f32 to vector<8x64xf32>
    %727 = arith.mulf %726, %725 : vector<8x64xf32>
    %cst_358 = arith.constant 5.000000e-01 : f32
    %728 = vector.broadcast %cst_358 : f32 to vector<8x64xf32>
    %729 = arith.addf %727, %728 : vector<8x64xf32>
    %730 = vector.extract_strided_slice %721 {offsets = [0, 64], sizes = [8, 64], strides = [1, 1]} : vector<8x256xf32> to vector<8x64xf32>
    %cst_359 = arith.constant 5.000000e-01 : f32
    %731 = vector.broadcast %cst_359 : f32 to vector<8x64xf32>
    %732 = arith.mulf %731, %730 : vector<8x64xf32>
    %733 = math.tanh %732 : vector<8x64xf32>
    %cst_360 = arith.constant 5.000000e-01 : f32
    %734 = vector.broadcast %cst_360 : f32 to vector<8x64xf32>
    %735 = arith.mulf %734, %733 : vector<8x64xf32>
    %cst_361 = arith.constant 5.000000e-01 : f32
    %736 = vector.broadcast %cst_361 : f32 to vector<8x64xf32>
    %737 = arith.addf %735, %736 : vector<8x64xf32>
    %738 = vector.extract_strided_slice %721 {offsets = [0, 128], sizes = [8, 64], strides = [1, 1]} : vector<8x256xf32> to vector<8x64xf32>
    %739 = math.tanh %738 : vector<8x64xf32>
    %740 = vector.extract_strided_slice %721 {offsets = [0, 192], sizes = [8, 64], strides = [1, 1]} : vector<8x256xf32> to vector<8x64xf32>
    %cst_362 = arith.constant 5.000000e-01 : f32
    %741 = vector.broadcast %cst_362 : f32 to vector<8x64xf32>
    %742 = arith.mulf %741, %740 : vector<8x64xf32>
    %743 = math.tanh %742 : vector<8x64xf32>
    %cst_363 = arith.constant 5.000000e-01 : f32
    %744 = vector.broadcast %cst_363 : f32 to vector<8x64xf32>
    %745 = arith.mulf %744, %743 : vector<8x64xf32>
    %cst_364 = arith.constant 5.000000e-01 : f32
    %746 = vector.broadcast %cst_364 : f32 to vector<8x64xf32>
    %747 = arith.addf %745, %746 : vector<8x64xf32>
    %748 = arith.mulf %737, %643 : vector<8x64xf32>
    %749 = arith.mulf %729, %739 : vector<8x64xf32>
    %750 = arith.addf %748, %749 : vector<8x64xf32>
    %751 = math.tanh %750 : vector<8x64xf32>
    %752 = arith.mulf %747, %751 : vector<8x64xf32>
    %c0_365 = arith.constant 0 : index
    %c0_366 = arith.constant 0 : index
    %753 = vector.load %arg14[%c0_365, %c0_366] : memref<1x256xf32, #tpu.memory_space<vmem>>, vector<1x256xf32>
    %754 = vector.broadcast %713 : vector<8x1xf32> to vector<8x256xf32>
    %755 = vector.broadcast %753 : vector<1x256xf32> to vector<8x256xf32>
    %756 = arith.mulf %754, %755 : vector<8x256xf32>
    %c0_367 = arith.constant 0 : index
    %c0_368 = arith.constant 0 : index
    %757 = vector.load %arg15[%c0_367, %c0_368] : memref<64x256xf32, #tpu.memory_space<vmem>>, vector<64x256xf32>
    %cst_369 = arith.constant dense<0.000000e+00> : vector<8x256xf32>
    %758 = tpu.matmul %686, %757, %cst_369 {dimension_numbers = #tpu.dot_dimension_numbers<[1], [0], [0], [1], [0, 0, 1, 1], [], []>} : vector<8x64xf32>, vector<64x256xf32>, vector<8x256xf32> -> vector<8x256xf32>
    %759 = arith.addf %756, %758 : vector<8x256xf32>
    %c0_370 = arith.constant 0 : index
    %c0_371 = arith.constant 0 : index
    %760 = vector.load %arg16[%c0_370, %c0_371] : memref<1x256xf32, #tpu.memory_space<vmem>>, vector<1x256xf32>
    %761 = vector.broadcast %760 : vector<1x256xf32> to vector<8x256xf32>
    %762 = arith.addf %759, %761 : vector<8x256xf32>
    %763 = vector.extract_strided_slice %762 {offsets = [0, 0], sizes = [8, 64], strides = [1, 1]} : vector<8x256xf32> to vector<8x64xf32>
    %cst_372 = arith.constant 5.000000e-01 : f32
    %764 = vector.broadcast %cst_372 : f32 to vector<8x64xf32>
    %765 = arith.mulf %764, %763 : vector<8x64xf32>
    %766 = math.tanh %765 : vector<8x64xf32>
    %cst_373 = arith.constant 5.000000e-01 : f32
    %767 = vector.broadcast %cst_373 : f32 to vector<8x64xf32>
    %768 = arith.mulf %767, %766 : vector<8x64xf32>
    %cst_374 = arith.constant 5.000000e-01 : f32
    %769 = vector.broadcast %cst_374 : f32 to vector<8x64xf32>
    %770 = arith.addf %768, %769 : vector<8x64xf32>
    %771 = vector.extract_strided_slice %762 {offsets = [0, 64], sizes = [8, 64], strides = [1, 1]} : vector<8x256xf32> to vector<8x64xf32>
    %cst_375 = arith.constant 5.000000e-01 : f32
    %772 = vector.broadcast %cst_375 : f32 to vector<8x64xf32>
    %773 = arith.mulf %772, %771 : vector<8x64xf32>
    %774 = math.tanh %773 : vector<8x64xf32>
    %cst_376 = arith.constant 5.000000e-01 : f32
    %775 = vector.broadcast %cst_376 : f32 to vector<8x64xf32>
    %776 = arith.mulf %775, %774 : vector<8x64xf32>
    %cst_377 = arith.constant 5.000000e-01 : f32
    %777 = vector.broadcast %cst_377 : f32 to vector<8x64xf32>
    %778 = arith.addf %776, %777 : vector<8x64xf32>
    %779 = vector.extract_strided_slice %762 {offsets = [0, 128], sizes = [8, 64], strides = [1, 1]} : vector<8x256xf32> to vector<8x64xf32>
    %780 = math.tanh %779 : vector<8x64xf32>
    %781 = vector.extract_strided_slice %762 {offsets = [0, 192], sizes = [8, 64], strides = [1, 1]} : vector<8x256xf32> to vector<8x64xf32>
    %cst_378 = arith.constant 5.000000e-01 : f32
    %782 = vector.broadcast %cst_378 : f32 to vector<8x64xf32>
    %783 = arith.mulf %782, %781 : vector<8x64xf32>
    %784 = math.tanh %783 : vector<8x64xf32>
    %cst_379 = arith.constant 5.000000e-01 : f32
    %785 = vector.broadcast %cst_379 : f32 to vector<8x64xf32>
    %786 = arith.mulf %785, %784 : vector<8x64xf32>
    %cst_380 = arith.constant 5.000000e-01 : f32
    %787 = vector.broadcast %cst_380 : f32 to vector<8x64xf32>
    %788 = arith.addf %786, %787 : vector<8x64xf32>
    %789 = arith.mulf %778, %684 : vector<8x64xf32>
    %790 = arith.mulf %770, %780 : vector<8x64xf32>
    %791 = arith.addf %789, %790 : vector<8x64xf32>
    %792 = math.tanh %791 : vector<8x64xf32>
    %793 = arith.mulf %788, %792 : vector<8x64xf32>
    %c0_381 = arith.constant 0 : index
    %c0_382 = arith.constant 0 : index
    %794 = vector.load %arg17[%c0_381, %c0_382] : memref<64x128xf32, #tpu.memory_space<vmem>>, vector<64x128xf32>
    %cst_383 = arith.constant dense<0.000000e+00> : vector<8x128xf32>
    %795 = tpu.matmul %752, %794, %cst_383 {dimension_numbers = #tpu.dot_dimension_numbers<[1], [0], [0], [1], [0, 0, 1, 1], [], []>} : vector<8x64xf32>, vector<64x128xf32>, vector<8x128xf32> -> vector<8x128xf32>
    %c0_384 = arith.constant 0 : index
    %c0_385 = arith.constant 0 : index
    %796 = vector.load %arg18[%c0_384, %c0_385] : memref<1x128xf32, #tpu.memory_space<vmem>>, vector<1x128xf32>
    %797 = vector.broadcast %796 : vector<1x128xf32> to vector<8x128xf32>
    %798 = arith.addf %795, %797 : vector<8x128xf32>
    %c0_386 = arith.constant 0 : index
    %c0_387 = arith.constant 0 : index
    %799 = vector.load %arg19[%c0_386, %c0_387] : memref<64x128xf32, #tpu.memory_space<vmem>>, vector<64x128xf32>
    %cst_388 = arith.constant dense<0.000000e+00> : vector<8x128xf32>
    %800 = tpu.matmul %793, %799, %cst_388 {dimension_numbers = #tpu.dot_dimension_numbers<[1], [0], [0], [1], [0, 0, 1, 1], [], []>} : vector<8x64xf32>, vector<64x128xf32>, vector<8x128xf32> -> vector<8x128xf32>
    %c0_389 = arith.constant 0 : index
    %c0_390 = arith.constant 0 : index
    %801 = vector.load %arg20[%c0_389, %c0_390] : memref<1x128xf32, #tpu.memory_space<vmem>>, vector<1x128xf32>
    %802 = vector.broadcast %801 : vector<1x128xf32> to vector<8x128xf32>
    %803 = arith.addf %800, %802 : vector<8x128xf32>
    %c2_391 = arith.constant 2 : index
    %c0_392 = arith.constant 0 : index
    %c0_393 = arith.constant 0 : index
    %804 = vector.load %arg21[%c2_391, %c0_392, %c0_393] : memref<5x8x128xf32, #tpu.memory_space<vmem>>, vector<1x8x128xf32>
    %805 = vector.shape_cast %804 : vector<1x8x128xf32> to vector<8x128xf32>
    %806 = vector.shape_cast %798 : vector<8x128xf32> to vector<1x8x128xf32>
    tpu.vector_store %arg21[%c2_391, %c0_392, %c0_393], %806 {strides = array<i32>} : memref<5x8x128xf32, #tpu.memory_space<vmem>>, vector<1x8x128xf32>,
    %c2_394 = arith.constant 2 : index
    %c0_395 = arith.constant 0 : index
    %c0_396 = arith.constant 0 : index
    %807 = vector.load %arg22[%c2_394, %c0_395, %c0_396] : memref<5x8x128xf32, #tpu.memory_space<vmem>>, vector<1x8x128xf32>
    %808 = vector.shape_cast %807 : vector<1x8x128xf32> to vector<8x128xf32>
    %809 = vector.shape_cast %803 : vector<8x128xf32> to vector<1x8x128xf32>
    tpu.vector_store %arg22[%c2_394, %c0_395, %c0_396], %809 {strides = array<i32>} : memref<5x8x128xf32, #tpu.memory_space<vmem>>, vector<1x8x128xf32>,
    %c2_397 = arith.constant 2 : index
    %c0_398 = arith.constant 0 : index
    %c0_399 = arith.constant 0 : index
    %810 = vector.load %arg3[%c2_397, %c0_398, %c0_399] : memref<5x8x1xi32, #tpu.memory_space<vmem>>, vector<1x8x1xi32>
    %811 = vector.shape_cast %810 : vector<1x8x1xi32> to vector<8x1xi32>
    %812 = vector.broadcast %811 : vector<8x1xi32> to vector<8x8xi32>
    %813 = arith.cmpi eq, %497, %812 : vector<8x8xi32>
    %c0_i32_400 = arith.constant 0 : i32
    %814 = vector.broadcast %c0_i32_400 : i32 to vector<8x8xi32>
    %815 = arith.cmpi ne, %497, %814 : vector<8x8xi32>
    %816 = arith.andi %813, %815 : vector<8x8xi1>
    %817 = arith.extui %816 : vector<8x8xi1> to vector<8x8xi32>
    %818 = arith.sitofp %817 : vector<8x8xi32> to vector<8x8xf32>
    %c2_401 = arith.constant 2 : index
    %c0_402 = arith.constant 0 : index
    %c0_403 = arith.constant 0 : index
    %819 = vector.load %arg4[%c2_401, %c0_402, %c0_403] : memref<5x8x1xf32, #tpu.memory_space<vmem>>, vector<1x8x1xf32>
    %820 = vector.shape_cast %819 : vector<1x8x1xf32> to vector<8x1xf32>
    %c0_404 = arith.constant 0 : index
    %c0_405 = arith.constant 0 : index
    %821 = vector.load %arg11[%c0_404, %c0_405] : memref<8x256xf32, #tpu.memory_space<vmem>>, vector<8x256xf32>
    %cst_406 = arith.constant dense<0.000000e+00> : vector<8x256xf32>
    %822 = tpu.matmul %818, %821, %cst_406 {dimension_numbers = #tpu.dot_dimension_numbers<[1], [0], [0], [1], [0, 0, 1, 1], [], []>} : vector<8x8xf32>, vector<8x256xf32>, vector<8x256xf32> -> vector<8x256xf32>
    %c0_407 = arith.constant 0 : index
    %c0_408 = arith.constant 0 : index
    %823 = vector.load %arg12[%c0_407, %c0_408] : memref<64x256xf32, #tpu.memory_space<vmem>>, vector<64x256xf32>
    %cst_409 = arith.constant dense<0.000000e+00> : vector<8x256xf32>
    %824 = tpu.matmul %752, %823, %cst_409 {dimension_numbers = #tpu.dot_dimension_numbers<[1], [0], [0], [1], [0, 0, 1, 1], [], []>} : vector<8x64xf32>, vector<64x256xf32>, vector<8x256xf32> -> vector<8x256xf32>
    %825 = arith.addf %822, %824 : vector<8x256xf32>
    %c0_410 = arith.constant 0 : index
    %c0_411 = arith.constant 0 : index
    %826 = vector.load %arg13[%c0_410, %c0_411] : memref<1x256xf32, #tpu.memory_space<vmem>>, vector<1x256xf32>
    %827 = vector.broadcast %826 : vector<1x256xf32> to vector<8x256xf32>
    %828 = arith.addf %825, %827 : vector<8x256xf32>
    %829 = vector.extract_strided_slice %828 {offsets = [0, 0], sizes = [8, 64], strides = [1, 1]} : vector<8x256xf32> to vector<8x64xf32>
    %cst_412 = arith.constant 5.000000e-01 : f32
    %830 = vector.broadcast %cst_412 : f32 to vector<8x64xf32>
    %831 = arith.mulf %830, %829 : vector<8x64xf32>
    %832 = math.tanh %831 : vector<8x64xf32>
    %cst_413 = arith.constant 5.000000e-01 : f32
    %833 = vector.broadcast %cst_413 : f32 to vector<8x64xf32>
    %834 = arith.mulf %833, %832 : vector<8x64xf32>
    %cst_414 = arith.constant 5.000000e-01 : f32
    %835 = vector.broadcast %cst_414 : f32 to vector<8x64xf32>
    %836 = arith.addf %834, %835 : vector<8x64xf32>
    %837 = vector.extract_strided_slice %828 {offsets = [0, 64], sizes = [8, 64], strides = [1, 1]} : vector<8x256xf32> to vector<8x64xf32>
    %cst_415 = arith.constant 5.000000e-01 : f32
    %838 = vector.broadcast %cst_415 : f32 to vector<8x64xf32>
    %839 = arith.mulf %838, %837 : vector<8x64xf32>
    %840 = math.tanh %839 : vector<8x64xf32>
    %cst_416 = arith.constant 5.000000e-01 : f32
    %841 = vector.broadcast %cst_416 : f32 to vector<8x64xf32>
    %842 = arith.mulf %841, %840 : vector<8x64xf32>
    %cst_417 = arith.constant 5.000000e-01 : f32
    %843 = vector.broadcast %cst_417 : f32 to vector<8x64xf32>
    %844 = arith.addf %842, %843 : vector<8x64xf32>
    %845 = vector.extract_strided_slice %828 {offsets = [0, 128], sizes = [8, 64], strides = [1, 1]} : vector<8x256xf32> to vector<8x64xf32>
    %846 = math.tanh %845 : vector<8x64xf32>
    %847 = vector.extract_strided_slice %828 {offsets = [0, 192], sizes = [8, 64], strides = [1, 1]} : vector<8x256xf32> to vector<8x64xf32>
    %cst_418 = arith.constant 5.000000e-01 : f32
    %848 = vector.broadcast %cst_418 : f32 to vector<8x64xf32>
    %849 = arith.mulf %848, %847 : vector<8x64xf32>
    %850 = math.tanh %849 : vector<8x64xf32>
    %cst_419 = arith.constant 5.000000e-01 : f32
    %851 = vector.broadcast %cst_419 : f32 to vector<8x64xf32>
    %852 = arith.mulf %851, %850 : vector<8x64xf32>
    %cst_420 = arith.constant 5.000000e-01 : f32
    %853 = vector.broadcast %cst_420 : f32 to vector<8x64xf32>
    %854 = arith.addf %852, %853 : vector<8x64xf32>
    %855 = arith.mulf %844, %750 : vector<8x64xf32>
    %856 = arith.mulf %836, %846 : vector<8x64xf32>
    %857 = arith.addf %855, %856 : vector<8x64xf32>
    %858 = math.tanh %857 : vector<8x64xf32>
    %859 = arith.mulf %854, %858 : vector<8x64xf32>
    %c0_421 = arith.constant 0 : index
    %c0_422 = arith.constant 0 : index
    %860 = vector.load %arg14[%c0_421, %c0_422] : memref<1x256xf32, #tpu.memory_space<vmem>>, vector<1x256xf32>
    %861 = vector.broadcast %820 : vector<8x1xf32> to vector<8x256xf32>
    %862 = vector.broadcast %860 : vector<1x256xf32> to vector<8x256xf32>
    %863 = arith.mulf %861, %862 : vector<8x256xf32>
    %c0_423 = arith.constant 0 : index
    %c0_424 = arith.constant 0 : index
    %864 = vector.load %arg15[%c0_423, %c0_424] : memref<64x256xf32, #tpu.memory_space<vmem>>, vector<64x256xf32>
    %cst_425 = arith.constant dense<0.000000e+00> : vector<8x256xf32>
    %865 = tpu.matmul %793, %864, %cst_425 {dimension_numbers = #tpu.dot_dimension_numbers<[1], [0], [0], [1], [0, 0, 1, 1], [], []>} : vector<8x64xf32>, vector<64x256xf32>, vector<8x256xf32> -> vector<8x256xf32>
    %866 = arith.addf %863, %865 : vector<8x256xf32>
    %c0_426 = arith.constant 0 : index
    %c0_427 = arith.constant 0 : index
    %867 = vector.load %arg16[%c0_426, %c0_427] : memref<1x256xf32, #tpu.memory_space<vmem>>, vector<1x256xf32>
    %868 = vector.broadcast %867 : vector<1x256xf32> to vector<8x256xf32>
    %869 = arith.addf %866, %868 : vector<8x256xf32>
    %870 = vector.extract_strided_slice %869 {offsets = [0, 0], sizes = [8, 64], strides = [1, 1]} : vector<8x256xf32> to vector<8x64xf32>
    %cst_428 = arith.constant 5.000000e-01 : f32
    %871 = vector.broadcast %cst_428 : f32 to vector<8x64xf32>
    %872 = arith.mulf %871, %870 : vector<8x64xf32>
    %873 = math.tanh %872 : vector<8x64xf32>
    %cst_429 = arith.constant 5.000000e-01 : f32
    %874 = vector.broadcast %cst_429 : f32 to vector<8x64xf32>
    %875 = arith.mulf %874, %873 : vector<8x64xf32>
    %cst_430 = arith.constant 5.000000e-01 : f32
    %876 = vector.broadcast %cst_430 : f32 to vector<8x64xf32>
    %877 = arith.addf %875, %876 : vector<8x64xf32>
    %878 = vector.extract_strided_slice %869 {offsets = [0, 64], sizes = [8, 64], strides = [1, 1]} : vector<8x256xf32> to vector<8x64xf32>
    %cst_431 = arith.constant 5.000000e-01 : f32
    %879 = vector.broadcast %cst_431 : f32 to vector<8x64xf32>
    %880 = arith.mulf %879, %878 : vector<8x64xf32>
    %881 = math.tanh %880 : vector<8x64xf32>
    %cst_432 = arith.constant 5.000000e-01 : f32
    %882 = vector.broadcast %cst_432 : f32 to vector<8x64xf32>
    %883 = arith.mulf %882, %881 : vector<8x64xf32>
    %cst_433 = arith.constant 5.000000e-01 : f32
    %884 = vector.broadcast %cst_433 : f32 to vector<8x64xf32>
    %885 = arith.addf %883, %884 : vector<8x64xf32>
    %886 = vector.extract_strided_slice %869 {offsets = [0, 128], sizes = [8, 64], strides = [1, 1]} : vector<8x256xf32> to vector<8x64xf32>
    %887 = math.tanh %886 : vector<8x64xf32>
    %888 = vector.extract_strided_slice %869 {offsets = [0, 192], sizes = [8, 64], strides = [1, 1]} : vector<8x256xf32> to vector<8x64xf32>
    %cst_434 = arith.constant 5.000000e-01 : f32
    %889 = vector.broadcast %cst_434 : f32 to vector<8x64xf32>
    %890 = arith.mulf %889, %888 : vector<8x64xf32>
    %891 = math.tanh %890 : vector<8x64xf32>
    %cst_435 = arith.constant 5.000000e-01 : f32
    %892 = vector.broadcast %cst_435 : f32 to vector<8x64xf32>
    %893 = arith.mulf %892, %891 : vector<8x64xf32>
    %cst_436 = arith.constant 5.000000e-01 : f32
    %894 = vector.broadcast %cst_436 : f32 to vector<8x64xf32>
    %895 = arith.addf %893, %894 : vector<8x64xf32>
    %896 = arith.mulf %885, %791 : vector<8x64xf32>
    %897 = arith.mulf %877, %887 : vector<8x64xf32>
    %898 = arith.addf %896, %897 : vector<8x64xf32>
    %899 = math.tanh %898 : vector<8x64xf32>
    %900 = arith.mulf %895, %899 : vector<8x64xf32>
    %c0_437 = arith.constant 0 : index
    %c0_438 = arith.constant 0 : index
    %901 = vector.load %arg17[%c0_437, %c0_438] : memref<64x128xf32, #tpu.memory_space<vmem>>, vector<64x128xf32>
    %cst_439 = arith.constant dense<0.000000e+00> : vector<8x128xf32>
    %902 = tpu.matmul %859, %901, %cst_439 {dimension_numbers = #tpu.dot_dimension_numbers<[1], [0], [0], [1], [0, 0, 1, 1], [], []>} : vector<8x64xf32>, vector<64x128xf32>, vector<8x128xf32> -> vector<8x128xf32>
    %c0_440 = arith.constant 0 : index
    %c0_441 = arith.constant 0 : index
    %903 = vector.load %arg18[%c0_440, %c0_441] : memref<1x128xf32, #tpu.memory_space<vmem>>, vector<1x128xf32>
    %904 = vector.broadcast %903 : vector<1x128xf32> to vector<8x128xf32>
    %905 = arith.addf %902, %904 : vector<8x128xf32>
    %c0_442 = arith.constant 0 : index
    %c0_443 = arith.constant 0 : index
    %906 = vector.load %arg19[%c0_442, %c0_443] : memref<64x128xf32, #tpu.memory_space<vmem>>, vector<64x128xf32>
    %cst_444 = arith.constant dense<0.000000e+00> : vector<8x128xf32>
    %907 = tpu.matmul %900, %906, %cst_444 {dimension_numbers = #tpu.dot_dimension_numbers<[1], [0], [0], [1], [0, 0, 1, 1], [], []>} : vector<8x64xf32>, vector<64x128xf32>, vector<8x128xf32> -> vector<8x128xf32>
    %c0_445 = arith.constant 0 : index
    %c0_446 = arith.constant 0 : index
    %908 = vector.load %arg20[%c0_445, %c0_446] : memref<1x128xf32, #tpu.memory_space<vmem>>, vector<1x128xf32>
    %909 = vector.broadcast %908 : vector<1x128xf32> to vector<8x128xf32>
    %910 = arith.addf %907, %909 : vector<8x128xf32>
    %c3_447 = arith.constant 3 : index
    %c0_448 = arith.constant 0 : index
    %c0_449 = arith.constant 0 : index
    %911 = vector.load %arg21[%c3_447, %c0_448, %c0_449] : memref<5x8x128xf32, #tpu.memory_space<vmem>>, vector<1x8x128xf32>
    %912 = vector.shape_cast %911 : vector<1x8x128xf32> to vector<8x128xf32>
    %913 = vector.shape_cast %905 : vector<8x128xf32> to vector<1x8x128xf32>
    tpu.vector_store %arg21[%c3_447, %c0_448, %c0_449], %913 {strides = array<i32>} : memref<5x8x128xf32, #tpu.memory_space<vmem>>, vector<1x8x128xf32>,
    %c3_450 = arith.constant 3 : index
    %c0_451 = arith.constant 0 : index
    %c0_452 = arith.constant 0 : index
    %914 = vector.load %arg22[%c3_450, %c0_451, %c0_452] : memref<5x8x128xf32, #tpu.memory_space<vmem>>, vector<1x8x128xf32>
    %915 = vector.shape_cast %914 : vector<1x8x128xf32> to vector<8x128xf32>
    %916 = vector.shape_cast %910 : vector<8x128xf32> to vector<1x8x128xf32>
    tpu.vector_store %arg22[%c3_450, %c0_451, %c0_452], %916 {strides = array<i32>} : memref<5x8x128xf32, #tpu.memory_space<vmem>>, vector<1x8x128xf32>,
    %c3_453 = arith.constant 3 : index
    %c0_454 = arith.constant 0 : index
    %c0_455 = arith.constant 0 : index
    %917 = vector.load %arg3[%c3_453, %c0_454, %c0_455] : memref<5x8x1xi32, #tpu.memory_space<vmem>>, vector<1x8x1xi32>
    %918 = vector.shape_cast %917 : vector<1x8x1xi32> to vector<8x1xi32>
    %919 = vector.broadcast %918 : vector<8x1xi32> to vector<8x8xi32>
    %920 = arith.cmpi eq, %497, %919 : vector<8x8xi32>
    %c0_i32_456 = arith.constant 0 : i32
    %921 = vector.broadcast %c0_i32_456 : i32 to vector<8x8xi32>
    %922 = arith.cmpi ne, %497, %921 : vector<8x8xi32>
    %923 = arith.andi %920, %922 : vector<8x8xi1>
    %924 = arith.extui %923 : vector<8x8xi1> to vector<8x8xi32>
    %925 = arith.sitofp %924 : vector<8x8xi32> to vector<8x8xf32>
    %c3_457 = arith.constant 3 : index
    %c0_458 = arith.constant 0 : index
    %c0_459 = arith.constant 0 : index
    %926 = vector.load %arg4[%c3_457, %c0_458, %c0_459] : memref<5x8x1xf32, #tpu.memory_space<vmem>>, vector<1x8x1xf32>
    %927 = vector.shape_cast %926 : vector<1x8x1xf32> to vector<8x1xf32>
    %c0_460 = arith.constant 0 : index
    %c0_461 = arith.constant 0 : index
    %928 = vector.load %arg11[%c0_460, %c0_461] : memref<8x256xf32, #tpu.memory_space<vmem>>, vector<8x256xf32>
    %cst_462 = arith.constant dense<0.000000e+00> : vector<8x256xf32>
    %929 = tpu.matmul %925, %928, %cst_462 {dimension_numbers = #tpu.dot_dimension_numbers<[1], [0], [0], [1], [0, 0, 1, 1], [], []>} : vector<8x8xf32>, vector<8x256xf32>, vector<8x256xf32> -> vector<8x256xf32>
    %c0_463 = arith.constant 0 : index
    %c0_464 = arith.constant 0 : index
    %930 = vector.load %arg12[%c0_463, %c0_464] : memref<64x256xf32, #tpu.memory_space<vmem>>, vector<64x256xf32>
    %cst_465 = arith.constant dense<0.000000e+00> : vector<8x256xf32>
    %931 = tpu.matmul %859, %930, %cst_465 {dimension_numbers = #tpu.dot_dimension_numbers<[1], [0], [0], [1], [0, 0, 1, 1], [], []>} : vector<8x64xf32>, vector<64x256xf32>, vector<8x256xf32> -> vector<8x256xf32>
    %932 = arith.addf %929, %931 : vector<8x256xf32>
    %c0_466 = arith.constant 0 : index
    %c0_467 = arith.constant 0 : index
    %933 = vector.load %arg13[%c0_466, %c0_467] : memref<1x256xf32, #tpu.memory_space<vmem>>, vector<1x256xf32>
    %934 = vector.broadcast %933 : vector<1x256xf32> to vector<8x256xf32>
    %935 = arith.addf %932, %934 : vector<8x256xf32>
    %936 = vector.extract_strided_slice %935 {offsets = [0, 0], sizes = [8, 64], strides = [1, 1]} : vector<8x256xf32> to vector<8x64xf32>
    %cst_468 = arith.constant 5.000000e-01 : f32
    %937 = vector.broadcast %cst_468 : f32 to vector<8x64xf32>
    %938 = arith.mulf %937, %936 : vector<8x64xf32>
    %939 = math.tanh %938 : vector<8x64xf32>
    %cst_469 = arith.constant 5.000000e-01 : f32
    %940 = vector.broadcast %cst_469 : f32 to vector<8x64xf32>
    %941 = arith.mulf %940, %939 : vector<8x64xf32>
    %cst_470 = arith.constant 5.000000e-01 : f32
    %942 = vector.broadcast %cst_470 : f32 to vector<8x64xf32>
    %943 = arith.addf %941, %942 : vector<8x64xf32>
    %944 = vector.extract_strided_slice %935 {offsets = [0, 64], sizes = [8, 64], strides = [1, 1]} : vector<8x256xf32> to vector<8x64xf32>
    %cst_471 = arith.constant 5.000000e-01 : f32
    %945 = vector.broadcast %cst_471 : f32 to vector<8x64xf32>
    %946 = arith.mulf %945, %944 : vector<8x64xf32>
    %947 = math.tanh %946 : vector<8x64xf32>
    %cst_472 = arith.constant 5.000000e-01 : f32
    %948 = vector.broadcast %cst_472 : f32 to vector<8x64xf32>
    %949 = arith.mulf %948, %947 : vector<8x64xf32>
    %cst_473 = arith.constant 5.000000e-01 : f32
    %950 = vector.broadcast %cst_473 : f32 to vector<8x64xf32>
    %951 = arith.addf %949, %950 : vector<8x64xf32>
    %952 = vector.extract_strided_slice %935 {offsets = [0, 128], sizes = [8, 64], strides = [1, 1]} : vector<8x256xf32> to vector<8x64xf32>
    %953 = math.tanh %952 : vector<8x64xf32>
    %954 = vector.extract_strided_slice %935 {offsets = [0, 192], sizes = [8, 64], strides = [1, 1]} : vector<8x256xf32> to vector<8x64xf32>
    %cst_474 = arith.constant 5.000000e-01 : f32
    %955 = vector.broadcast %cst_474 : f32 to vector<8x64xf32>
    %956 = arith.mulf %955, %954 : vector<8x64xf32>
    %957 = math.tanh %956 : vector<8x64xf32>
    %cst_475 = arith.constant 5.000000e-01 : f32
    %958 = vector.broadcast %cst_475 : f32 to vector<8x64xf32>
    %959 = arith.mulf %958, %957 : vector<8x64xf32>
    %cst_476 = arith.constant 5.000000e-01 : f32
    %960 = vector.broadcast %cst_476 : f32 to vector<8x64xf32>
    %961 = arith.addf %959, %960 : vector<8x64xf32>
    %962 = arith.mulf %951, %857 : vector<8x64xf32>
    %963 = arith.mulf %943, %953 : vector<8x64xf32>
    %964 = arith.addf %962, %963 : vector<8x64xf32>
    %965 = math.tanh %964 : vector<8x64xf32>
    %966 = arith.mulf %961, %965 : vector<8x64xf32>
    %c0_477 = arith.constant 0 : index
    %c0_478 = arith.constant 0 : index
    %967 = vector.load %arg14[%c0_477, %c0_478] : memref<1x256xf32, #tpu.memory_space<vmem>>, vector<1x256xf32>
    %968 = vector.broadcast %927 : vector<8x1xf32> to vector<8x256xf32>
    %969 = vector.broadcast %967 : vector<1x256xf32> to vector<8x256xf32>
    %970 = arith.mulf %968, %969 : vector<8x256xf32>
    %c0_479 = arith.constant 0 : index
    %c0_480 = arith.constant 0 : index
    %971 = vector.load %arg15[%c0_479, %c0_480] : memref<64x256xf32, #tpu.memory_space<vmem>>, vector<64x256xf32>
    %cst_481 = arith.constant dense<0.000000e+00> : vector<8x256xf32>
    %972 = tpu.matmul %900, %971, %cst_481 {dimension_numbers = #tpu.dot_dimension_numbers<[1], [0], [0], [1], [0, 0, 1, 1], [], []>} : vector<8x64xf32>, vector<64x256xf32>, vector<8x256xf32> -> vector<8x256xf32>
    %973 = arith.addf %970, %972 : vector<8x256xf32>
    %c0_482 = arith.constant 0 : index
    %c0_483 = arith.constant 0 : index
    %974 = vector.load %arg16[%c0_482, %c0_483] : memref<1x256xf32, #tpu.memory_space<vmem>>, vector<1x256xf32>
    %975 = vector.broadcast %974 : vector<1x256xf32> to vector<8x256xf32>
    %976 = arith.addf %973, %975 : vector<8x256xf32>
    %977 = vector.extract_strided_slice %976 {offsets = [0, 0], sizes = [8, 64], strides = [1, 1]} : vector<8x256xf32> to vector<8x64xf32>
    %cst_484 = arith.constant 5.000000e-01 : f32
    %978 = vector.broadcast %cst_484 : f32 to vector<8x64xf32>
    %979 = arith.mulf %978, %977 : vector<8x64xf32>
    %980 = math.tanh %979 : vector<8x64xf32>
    %cst_485 = arith.constant 5.000000e-01 : f32
    %981 = vector.broadcast %cst_485 : f32 to vector<8x64xf32>
    %982 = arith.mulf %981, %980 : vector<8x64xf32>
    %cst_486 = arith.constant 5.000000e-01 : f32
    %983 = vector.broadcast %cst_486 : f32 to vector<8x64xf32>
    %984 = arith.addf %982, %983 : vector<8x64xf32>
    %985 = vector.extract_strided_slice %976 {offsets = [0, 64], sizes = [8, 64], strides = [1, 1]} : vector<8x256xf32> to vector<8x64xf32>
    %cst_487 = arith.constant 5.000000e-01 : f32
    %986 = vector.broadcast %cst_487 : f32 to vector<8x64xf32>
    %987 = arith.mulf %986, %985 : vector<8x64xf32>
    %988 = math.tanh %987 : vector<8x64xf32>
    %cst_488 = arith.constant 5.000000e-01 : f32
    %989 = vector.broadcast %cst_488 : f32 to vector<8x64xf32>
    %990 = arith.mulf %989, %988 : vector<8x64xf32>
    %cst_489 = arith.constant 5.000000e-01 : f32
    %991 = vector.broadcast %cst_489 : f32 to vector<8x64xf32>
    %992 = arith.addf %990, %991 : vector<8x64xf32>
    %993 = vector.extract_strided_slice %976 {offsets = [0, 128], sizes = [8, 64], strides = [1, 1]} : vector<8x256xf32> to vector<8x64xf32>
    %994 = math.tanh %993 : vector<8x64xf32>
    %995 = vector.extract_strided_slice %976 {offsets = [0, 192], sizes = [8, 64], strides = [1, 1]} : vector<8x256xf32> to vector<8x64xf32>
    %cst_490 = arith.constant 5.000000e-01 : f32
    %996 = vector.broadcast %cst_490 : f32 to vector<8x64xf32>
    %997 = arith.mulf %996, %995 : vector<8x64xf32>
    %998 = math.tanh %997 : vector<8x64xf32>
    %cst_491 = arith.constant 5.000000e-01 : f32
    %999 = vector.broadcast %cst_491 : f32 to vector<8x64xf32>
    %1000 = arith.mulf %999, %998 : vector<8x64xf32>
    %cst_492 = arith.constant 5.000000e-01 : f32
    %1001 = vector.broadcast %cst_492 : f32 to vector<8x64xf32>
    %1002 = arith.addf %1000, %1001 : vector<8x64xf32>
    %1003 = arith.mulf %992, %898 : vector<8x64xf32>
    %1004 = arith.mulf %984, %994 : vector<8x64xf32>
    %1005 = arith.addf %1003, %1004 : vector<8x64xf32>
    %1006 = math.tanh %1005 : vector<8x64xf32>
    %1007 = arith.mulf %1002, %1006 : vector<8x64xf32>
    %c0_493 = arith.constant 0 : index
    %c0_494 = arith.constant 0 : index
    %1008 = vector.load %arg17[%c0_493, %c0_494] : memref<64x128xf32, #tpu.memory_space<vmem>>, vector<64x128xf32>
    %cst_495 = arith.constant dense<0.000000e+00> : vector<8x128xf32>
    %1009 = tpu.matmul %966, %1008, %cst_495 {dimension_numbers = #tpu.dot_dimension_numbers<[1], [0], [0], [1], [0, 0, 1, 1], [], []>} : vector<8x64xf32>, vector<64x128xf32>, vector<8x128xf32> -> vector<8x128xf32>
    %c0_496 = arith.constant 0 : index
    %c0_497 = arith.constant 0 : index
    %1010 = vector.load %arg18[%c0_496, %c0_497] : memref<1x128xf32, #tpu.memory_space<vmem>>, vector<1x128xf32>
    %1011 = vector.broadcast %1010 : vector<1x128xf32> to vector<8x128xf32>
    %1012 = arith.addf %1009, %1011 : vector<8x128xf32>
    %c0_498 = arith.constant 0 : index
    %c0_499 = arith.constant 0 : index
    %1013 = vector.load %arg19[%c0_498, %c0_499] : memref<64x128xf32, #tpu.memory_space<vmem>>, vector<64x128xf32>
    %cst_500 = arith.constant dense<0.000000e+00> : vector<8x128xf32>
    %1014 = tpu.matmul %1007, %1013, %cst_500 {dimension_numbers = #tpu.dot_dimension_numbers<[1], [0], [0], [1], [0, 0, 1, 1], [], []>} : vector<8x64xf32>, vector<64x128xf32>, vector<8x128xf32> -> vector<8x128xf32>
    %c0_501 = arith.constant 0 : index
    %c0_502 = arith.constant 0 : index
    %1015 = vector.load %arg20[%c0_501, %c0_502] : memref<1x128xf32, #tpu.memory_space<vmem>>, vector<1x128xf32>
    %1016 = vector.broadcast %1015 : vector<1x128xf32> to vector<8x128xf32>
    %1017 = arith.addf %1014, %1016 : vector<8x128xf32>
    %c4_503 = arith.constant 4 : index
    %c0_504 = arith.constant 0 : index
    %c0_505 = arith.constant 0 : index
    %1018 = vector.load %arg21[%c4_503, %c0_504, %c0_505] : memref<5x8x128xf32, #tpu.memory_space<vmem>>, vector<1x8x128xf32>
    %1019 = vector.shape_cast %1018 : vector<1x8x128xf32> to vector<8x128xf32>
    %1020 = vector.shape_cast %1012 : vector<8x128xf32> to vector<1x8x128xf32>
    tpu.vector_store %arg21[%c4_503, %c0_504, %c0_505], %1020 {strides = array<i32>} : memref<5x8x128xf32, #tpu.memory_space<vmem>>, vector<1x8x128xf32>,
    %c4_506 = arith.constant 4 : index
    %c0_507 = arith.constant 0 : index
    %c0_508 = arith.constant 0 : index
    %1021 = vector.load %arg22[%c4_506, %c0_507, %c0_508] : memref<5x8x128xf32, #tpu.memory_space<vmem>>, vector<1x8x128xf32>
    %1022 = vector.shape_cast %1021 : vector<1x8x128xf32> to vector<8x128xf32>
    %1023 = vector.shape_cast %1017 : vector<8x128xf32> to vector<1x8x128xf32>
    tpu.vector_store %arg22[%c4_506, %c0_507, %c0_508], %1023 {strides = array<i32>} : memref<5x8x128xf32, #tpu.memory_space<vmem>>, vector<1x8x128xf32>,
    return
  }
  func.func @transform_0(%arg0: i32) -> (i32, i32, i32) {
    %c0_i32 = arith.constant 0 : i32
    %c0_i32_0 = arith.constant 0 : i32
    %c0_i32_1 = arith.constant 0 : i32
    return %c0_i32, %arg0, %c0_i32_0 : i32, i32, i32
  }
  func.func @transform_1(%arg0: i32) -> (i32, i32, i32) {
    %c0_i32 = arith.constant 0 : i32
    %c0_i32_0 = arith.constant 0 : i32
    %c0_i32_1 = arith.constant 0 : i32
    return %c0_i32, %arg0, %c0_i32_0 : i32, i32, i32
  }
  func.func @transform_2(%arg0: i32) -> (i32, i32, i32) {
    %c0_i32 = arith.constant 0 : i32
    %c0_i32_0 = arith.constant 0 : i32
    %c0_i32_1 = arith.constant 0 : i32
    return %c0_i32, %arg0, %c0_i32_0 : i32, i32, i32
  }
  func.func @transform_3(%arg0: i32) -> (i32, i32, i32) {
    %c0_i32 = arith.constant 0 : i32
    %c0_i32_0 = arith.constant 0 : i32
    %c0_i32_1 = arith.constant 0 : i32
    return %c0_i32, %arg0, %c0_i32_0 : i32, i32, i32
  }
  func.func @transform_4(%arg0: i32) -> (i32, i32) {
    %c0_i32 = arith.constant 0 : i32
    %c0_i32_0 = arith.constant 0 : i32
    %c0_i32_1 = arith.constant 0 : i32
    return %c0_i32, %c0_i32_0 : i32, i32
  }
  func.func @transform_5(%arg0: i32) -> (i32, i32) {
    %c0_i32 = arith.constant 0 : i32
    %c0_i32_0 = arith.constant 0 : i32
    %c0_i32_1 = arith.constant 0 : i32
    return %c0_i32, %c0_i32_0 : i32, i32
  }
  func.func @transform_6(%arg0: i32) -> (i32, i32) {
    %c0_i32 = arith.constant 0 : i32
    %c0_i32_0 = arith.constant 0 : i32
    %c0_i32_1 = arith.constant 0 : i32
    return %c0_i32, %c0_i32_0 : i32, i32
  }
  func.func @transform_7(%arg0: i32) -> (i32, i32) {
    %c0_i32 = arith.constant 0 : i32
    %c0_i32_0 = arith.constant 0 : i32
    %c0_i32_1 = arith.constant 0 : i32
    return %c0_i32, %c0_i32_0 : i32, i32
  }
  func.func @transform_8(%arg0: i32) -> (i32, i32) {
    %c0_i32 = arith.constant 0 : i32
    %c0_i32_0 = arith.constant 0 : i32
    %c0_i32_1 = arith.constant 0 : i32
    return %c0_i32, %c0_i32_0 : i32, i32
  }
  func.func @transform_9(%arg0: i32) -> (i32, i32) {
    %c0_i32 = arith.constant 0 : i32
    %c0_i32_0 = arith.constant 0 : i32
    %c0_i32_1 = arith.constant 0 : i32
    return %c0_i32, %c0_i32_0 : i32, i32
  }
  func.func @transform_10(%arg0: i32) -> (i32, i32) {
    %c0_i32 = arith.constant 0 : i32
    %c0_i32_0 = arith.constant 0 : i32
    %c0_i32_1 = arith.constant 0 : i32
    return %c0_i32, %c0_i32_0 : i32, i32
  }
  func.func @transform_11(%arg0: i32) -> (i32, i32) {
    %c0_i32 = arith.constant 0 : i32
    %c0_i32_0 = arith.constant 0 : i32
    %c0_i32_1 = arith.constant 0 : i32
    return %c0_i32, %c0_i32_0 : i32, i32
  }
  func.func @transform_12(%arg0: i32) -> (i32, i32) {
    %c0_i32 = arith.constant 0 : i32
    %c0_i32_0 = arith.constant 0 : i32
    %c0_i32_1 = arith.constant 0 : i32
    return %c0_i32, %c0_i32_0 : i32, i32
  }
  func.func @transform_13(%arg0: i32) -> (i32, i32) {
    %c0_i32 = arith.constant 0 : i32
    %c0_i32_0 = arith.constant 0 : i32
    %c0_i32_1 = arith.constant 0 : i32
    return %c0_i32, %c0_i32_0 : i32, i32
  }
  func.func @transform_14(%arg0: i32) -> (i32, i32) {
    %c0_i32 = arith.constant 0 : i32
    %c0_i32_0 = arith.constant 0 : i32
    %c0_i32_1 = arith.constant 0 : i32
    return %c0_i32, %c0_i32_0 : i32, i32
  }
  func.func @transform_15(%arg0: i32) -> (i32, i32) {
    %c0_i32 = arith.constant 0 : i32
    %c0_i32_0 = arith.constant 0 : i32
    %c0_i32_1 = arith.constant 0 : i32
    return %c0_i32, %c0_i32_0 : i32, i32
  }
  func.func @transform_16(%arg0: i32) -> (i32, i32) {
    %c0_i32 = arith.constant 0 : i32
    %c0_i32_0 = arith.constant 0 : i32
    %c0_i32_1 = arith.constant 0 : i32
    return %c0_i32, %c0_i32_0 : i32, i32
  }
  func.func @transform_17(%arg0: i32) -> (i32, i32) {
    %c0_i32 = arith.constant 0 : i32
    %c0_i32_0 = arith.constant 0 : i32
    %c0_i32_1 = arith.constant 0 : i32
    return %c0_i32, %c0_i32_0 : i32, i32
  }
  func.func @transform_18(%arg0: i32) -> (i32, i32) {
    %c0_i32 = arith.constant 0 : i32
    %c0_i32_0 = arith.constant 0 : i32
    %c0_i32_1 = arith.constant 0 : i32
    return %c0_i32, %c0_i32_0 : i32, i32
  }
  func.func @transform_19(%arg0: i32) -> (i32, i32) {
    %c0_i32 = arith.constant 0 : i32
    %c0_i32_0 = arith.constant 0 : i32
    %c0_i32_1 = arith.constant 0 : i32
    return %c0_i32, %c0_i32_0 : i32, i32
  }
  func.func @transform_20(%arg0: i32) -> (i32, i32, i32) {
    %c0_i32 = arith.constant 0 : i32
    %c0_i32_0 = arith.constant 0 : i32
    %c0_i32_1 = arith.constant 0 : i32
    return %c0_i32, %arg0, %c0_i32_0 : i32, i32, i32
  }
  func.func @transform_21(%arg0: i32) -> (i32, i32, i32) {
    %c0_i32 = arith.constant 0 : i32
    %c0_i32_0 = arith.constant 0 : i32
    %c0_i32_1 = arith.constant 0 : i32
    return %c0_i32, %arg0, %c0_i32_0 : i32, i32, i32
  }
}

</mosaic_0001>

<llo_original>
// kernel: seq2seq_cat_forward.1
$region0: #{seq2seq_cat_forward.1}
  #allocation0 [shape = 'u32[]', space=smem, size = 0x4, offset = 0x4, fixed_abs, tag = 'smem constant byte address 0x4 - core index']
  #allocation1 [shape = 'u32[72,128]{1,0:T(1,128)}', space=vmem, size = 0x9000, scoped, tag = 'internal scratch']
  %s0 = inlined_call_operand.vmem [shape: f32[6,8,9], index: 0, kind: input, shape index: {}]
  %s1 = inlined_call_operand.vmem [shape: f32[6,8,10], index: 1, kind: input, shape index: {}]
  %s2 = inlined_call_operand.vmem [shape: s32[5,8,1], index: 2, kind: input, shape index: {}]
  %s3 = inlined_call_operand.vmem [shape: f32[5,8,1], index: 3, kind: input, shape index: {}]
  %s4 = inlined_call_operand.vmem [shape: f32[9,128], index: 4, kind: input, shape index: {}]
  %s5 = inlined_call_operand.vmem [shape: f32[32,128], index: 5, kind: input, shape index: {}]
  %s6 = inlined_call_operand.vmem [shape: f32[1,128], index: 6, kind: input, shape index: {}]
  %s7 = inlined_call_operand.hbm [shape: f32[10,128], index: 7, kind: input, shape index: {}]
  %s8 = inlined_call_operand.vmem [shape: f32[32,128], index: 8, kind: input, shape index: {}]
  %s9 = inlined_call_operand.vmem [shape: f32[1,128], index: 9, kind: input, shape index: {}]
  %s10 = inlined_call_operand.hbm [shape: f32[8,256], index: 10, kind: input, shape index: {}]
  %s11 = inlined_call_operand.hbm [shape: f32[64,256], index: 11, kind: input, shape index: {}]
  %s12 = inlined_call_operand.vmem [shape: f32[1,256], index: 12, kind: input, shape index: {}]
  %s13 = inlined_call_operand.vmem [shape: f32[1,256], index: 13, kind: input, shape index: {}]
  %s14 = inlined_call_operand.hbm [shape: f32[64,256], index: 14, kind: input, shape index: {}]
  %s15 = inlined_call_operand.vmem [shape: f32[1,256], index: 15, kind: input, shape index: {}]
  %s16 = inlined_call_operand.vmem [shape: f32[64,128], index: 16, kind: input, shape index: {}]
  %s17 = inlined_call_operand.vmem [shape: f32[1,128], index: 17, kind: input, shape index: {}]
  %s18 = inlined_call_operand.vmem [shape: f32[64,128], index: 18, kind: input, shape index: {}]
  %s19 = inlined_call_operand.vmem [shape: f32[1,128], index: 19, kind: input, shape index: {}]
  %s20 = inlined_call_operand.vmem [shape: f32[5,8,128], index: 20, kind: output, shape index: {0}]
  %s21 = inlined_call_operand.vmem [shape: f32[5,8,128], index: 21, kind: output, shape index: {1}]
  %22 = xla_tuple %s20, %s21
  %s23 = sld [smem:[#allocation0]]
  $region114: #{seq2seq_cat_forward.1} parent=0
    _
  %s25 = ssub.s32 1, %s23
  %s26 = scalar_select 0, %s25, %s23
  $region1: #{seq2seq_cat_forward.1} parent=0
    #allocation2 [shape = 'u8[8192]{0}', space=vmem, size = 0x2000, scoped, tag = 'input window, operand 7, single buffered']
    #allocation3 [shape = 's32[1]{0}', space=sflag, size = 0x4, scoped, tag = 'scoped memory for seq2seq_cat_forward.1']
    #allocation4 [shape = 'u8[8192]{0}', space=vmem, size = 0x2000, scoped, tag = 'input window, operand 10, single buffered']
    #allocation5 [shape = 's32[1]{0}', space=sflag, size = 0x4, scoped, tag = 'scoped memory for seq2seq_cat_forward.1']
    #allocation6 [shape = 'u8[65536]{0}', space=vmem, size = 0x10000, scoped, tag = 'input window, operand 11, single buffered']
    #allocation7 [shape = 'u8[65536]{0}', space=vmem, size = 0x10000, scoped, tag = 'input window, operand 14, single buffered']
    #allocation8 [shape = 's32[1]{0}', space=sflag, size = 0x4, scoped, tag = 'scoped memory for seq2seq_cat_forward.1']
    %27 = vsyncpa [#allocation3], 0
    %28 = vsyncpa [#allocation5], 0
    %29 = vsyncpa [#allocation8], 0
    // Predicated region
    $region2: #{seq2seq_cat_forward.1} parent=1 // pred_check
      _
    $region3: #{seq2seq_cat_forward.1} parent=1 // pred_check_branch
      %31 = sbr.rel (0) target = $region5
    $region4: #{seq2seq_cat_forward.1} parent=1 // pred_region
      _
    $region5: #{seq2seq_cat_forward.1} parent=1 // pred_fallthru
      _
    // Predicated region
    $region6: #{seq2seq_cat_forward.1} parent=1 // pred_check
      _
    $region7: #{seq2seq_cat_forward.1} parent=1 // pred_check_branch
      %33 = sbr.rel (0) target = $region9
    $region8: #{seq2seq_cat_forward.1} parent=1 // pred_region
      _
    $region9: #{seq2seq_cat_forward.1} parent=1 // pred_fallthru
      _
    // Predicated region
    $region10: #{seq2seq_cat_forward.1} parent=1 // pred_check
      _
    $region11: #{seq2seq_cat_forward.1} parent=1 // pred_check_branch
      %35 = sbr.rel (0) target = $region13
    $region12: #{seq2seq_cat_forward.1} parent=1 // pred_region
      _
    $region13: #{seq2seq_cat_forward.1} parent=1 // pred_fallthru
      _
    // Predicated region
    $region14: #{seq2seq_cat_forward.1} parent=1 // pred_check
      _
    $region15: #{seq2seq_cat_forward.1} parent=1 // pred_check_branch
      %37 = sbr.rel (0) target = $region17
    $region16: #{seq2seq_cat_forward.1} parent=1 // pred_region
      _
    $region17: #{seq2seq_cat_forward.1} parent=1 // pred_fallthru
      _
    // Predicated region
    $region18: #{seq2seq_cat_forward.1} parent=1 // pred_check
      _
    $region19: #{seq2seq_cat_forward.1} parent=1 // pred_check_branch
      %39 = sbr.rel (0) target = $region21
    $region20: #{seq2seq_cat_forward.1} parent=1 // pred_region
      _
    $region21: #{seq2seq_cat_forward.1} parent=1 // pred_fallthru
      _
    // Predicated region
    $region22: #{seq2seq_cat_forward.1} parent=1 // pred_check
      _
    $region23: #{seq2seq_cat_forward.1} parent=1 // pred_check_branch
      %41 = sbr.rel (0) target = $region25
    $region24: #{seq2seq_cat_forward.1} parent=1 // pred_region
      _
    $region25: #{seq2seq_cat_forward.1} parent=1 // pred_fallthru
      _
    // Predicated region
    $region26: #{seq2seq_cat_forward.1} parent=1 // pred_check
      _
    $region27: #{seq2seq_cat_forward.1} parent=1 // pred_check_branch
      %43 = sbr.rel (0) target = $region29
    $region28: #{seq2seq_cat_forward.1} parent=1 // pred_region
      _
    $region29: #{seq2seq_cat_forward.1} parent=1 // pred_fallthru
      _
    // Predicated region
    $region30: #{seq2seq_cat_forward.1} parent=1 // pred_check
      _
    $region31: #{seq2seq_cat_forward.1} parent=1 // pred_check_branch
      %45 = sbr.rel (0) target = $region33
    $region32: #{seq2seq_cat_forward.1} parent=1 // pred_region
      %47 = vsyncadd [#allocation3], 0
      %s48 = sshll.u32 %s7, 4
      %s49 = int_to_ptr.hbm [resolvable:$true] %s48
      %s50 = sshll.u32 [#allocation2], 4
      %s51 = int_to_ptr.vmem [resolvable:$true] %s50
      %56 = dma.hbm_to_vmem [thread:$0]  %s49, 256, %s51, [#allocation3], 128, 128, 8
    $region33: #{seq2seq_cat_forward.1} parent=1 // pred_fallthru
      _
    // Predicated region
    $region34: #{seq2seq_cat_forward.1} parent=1 // pred_check
      _
    $region35: #{seq2seq_cat_forward.1} parent=1 // pred_check_branch
      %58 = sbr.rel (0) target = $region37
    $region36: #{seq2seq_cat_forward.1} parent=1 // pred_region
      _
    $region37: #{seq2seq_cat_forward.1} parent=1 // pred_fallthru
      _
    // Predicated region
    $region38: #{seq2seq_cat_forward.1} parent=1 // pred_check
      _
    $region39: #{seq2seq_cat_forward.1} parent=1 // pred_check_branch
      %60 = sbr.rel (0) target = $region41
    $region40: #{seq2seq_cat_forward.1} parent=1 // pred_region
      _
    $region41: #{seq2seq_cat_forward.1} parent=1 // pred_fallthru
      _
    // Predicated region
    $region42: #{seq2seq_cat_forward.1} parent=1 // pred_check
      _
    $region43: #{seq2seq_cat_forward.1} parent=1 // pred_check_branch
      %62 = sbr.rel (0) target = $region45
    $region44: #{seq2seq_cat_forward.1} parent=1 // pred_region
      %64 = vsyncadd [#allocation5], 0
      %s66 = sshll.u32 %s10, 4
      %s67 = int_to_ptr.hbm [resolvable:$true] %s66
      %s68 = sshll.u32 [#allocation4], 4
      %s69 = int_to_ptr.vmem [resolvable:$true] %s68
      %71 = dma.hbm_to_vmem [thread:$0]  %s67, 256, %s69, [#allocation5]
    $region45: #{seq2seq_cat_forward.1} parent=1 // pred_fallthru
      _
    // Predicated region
    $region46: #{seq2seq_cat_forward.1} parent=1 // pred_check
      _
    $region47: #{seq2seq_cat_forward.1} parent=1 // pred_check_branch
      %73 = sbr.rel (0) target = $region49
    $region48: #{seq2seq_cat_forward.1} parent=1 // pred_region
      %75 = vsyncadd [#allocation5], 0
      %s76 = sshll.u32 %s11, 4
      %s77 = int_to_ptr.hbm [resolvable:$true] %s76
      %s78 = sshll.u32 [#allocation6], 4
      %s79 = int_to_ptr.vmem [resolvable:$true] %s78
      %84 = dma.hbm_to_vmem [thread:$0]  %s77, 2048, %s79, [#allocation5], 256, 256, 16
    $region49: #{seq2seq_cat_forward.1} parent=1 // pred_fallthru
      _
    // Predicated region
    $region50: #{seq2seq_cat_forward.1} parent=1 // pred_check
      _
    $region51: #{seq2seq_cat_forward.1} parent=1 // pred_check_branch
      %86 = sbr.rel (0) target = $region53
    $region52: #{seq2seq_cat_forward.1} parent=1 // pred_region
      _
    $region53: #{seq2seq_cat_forward.1} parent=1 // pred_fallthru
      _
    // Predicated region
    $region54: #{seq2seq_cat_forward.1} parent=1 // pred_check
      _
    $region55: #{seq2seq_cat_forward.1} parent=1 // pred_check_branch
      %88 = sbr.rel (0) target = $region57
    $region56: #{seq2seq_cat_forward.1} parent=1 // pred_region
      _
    $region57: #{seq2seq_cat_forward.1} parent=1 // pred_fallthru
      _
    // Predicated region
    $region58: #{seq2seq_cat_forward.1} parent=1 // pred_check
      _
    $region59: #{seq2seq_cat_forward.1} parent=1 // pred_check_branch
      %90 = sbr.rel (0) target = $region61
    $region60: #{seq2seq_cat_forward.1} parent=1 // pred_region
      %92 = vsyncadd [#allocation8], 0
      %s93 = sshll.u32 %s14, 4
      %s94 = int_to_ptr.hbm [resolvable:$true] %s93
      %s95 = sshll.u32 [#allocation7], 4
      %s96 = int_to_ptr.vmem [resolvable:$true] %s95
      %101 = dma.hbm_to_vmem [thread:$0]  %s94, 2048, %s96, [#allocation8], 256, 256, 16
    $region61: #{seq2seq_cat_forward.1} parent=1 // pred_fallthru
      _
    // Predicated region
    $region62: #{seq2seq_cat_forward.1} parent=1 // pred_check
      _
    $region63: #{seq2seq_cat_forward.1} parent=1 // pred_check_branch
      %103 = sbr.rel (0) target = $region65
    $region64: #{seq2seq_cat_forward.1} parent=1 // pred_region
      _
    $region65: #{seq2seq_cat_forward.1} parent=1 // pred_fallthru
      _
    // Predicated region
    $region66: #{seq2seq_cat_forward.1} parent=1 // pred_check
      _
    $region67: #{seq2seq_cat_forward.1} parent=1 // pred_check_branch
      %105 = sbr.rel (0) target = $region69
    $region68: #{seq2seq_cat_forward.1} parent=1 // pred_region
      _
    $region69: #{seq2seq_cat_forward.1} parent=1 // pred_fallthru
      _
    // Predicated region
    $region70: #{seq2seq_cat_forward.1} parent=1 // pred_check
      _
    $region71: #{seq2seq_cat_forward.1} parent=1 // pred_check_branch
      %107 = sbr.rel (0) target = $region73
    $region72: #{seq2seq_cat_forward.1} parent=1 // pred_region
      _
    $region73: #{seq2seq_cat_forward.1} parent=1 // pred_fallthru
      _
    // Predicated region
    $region74: #{seq2seq_cat_forward.1} parent=1 // pred_check
      _
    $region75: #{seq2seq_cat_forward.1} parent=1 // pred_check_branch
      %109 = sbr.rel (0) target = $region77
    $region76: #{seq2seq_cat_forward.1} parent=1 // pred_region
      _
    $region77: #{seq2seq_cat_forward.1} parent=1 // pred_fallthru
      _
    // Predicated region
    $region78: #{seq2seq_cat_forward.1} parent=1 // pred_check
      _
    $region79: #{seq2seq_cat_forward.1} parent=1 // pred_check_branch
      %111 = sbr.rel (0) target = $region81
    $region80: #{seq2seq_cat_forward.1} parent=1 // pred_region
      _
    $region81: #{seq2seq_cat_forward.1} parent=1 // pred_fallthru
      _
    // Predicated region
    $region82: #{seq2seq_cat_forward.1} parent=1 // pred_check
      _
    $region83: #{seq2seq_cat_forward.1} parent=1 // pred_check_branch
      %113 = sbr.rel (0) target = $region85
    $region84: #{seq2seq_cat_forward.1} parent=1 // pred_region
      %115 = dma.done [#allocation3], 256
    $region85: #{seq2seq_cat_forward.1} parent=1 // pred_fallthru
      _
    // Predicated region
    $region86: #{seq2seq_cat_forward.1} parent=1 // pred_check
      _
    $region87: #{seq2seq_cat_forward.1} parent=1 // pred_check_branch
      %117 = sbr.rel (0) target = $region89
    $region88: #{seq2seq_cat_forward.1} parent=1 // pred_region
      %119 = dma.done [#allocation5], 256
    $region89: #{seq2seq_cat_forward.1} parent=1 // pred_fallthru
      _
    // Predicated region
    $region90: #{seq2seq_cat_forward.1} parent=1 // pred_check
      _
    $region91: #{seq2seq_cat_forward.1} parent=1 // pred_check_branch
      %121 = sbr.rel (0) target = $region93
    $region92: #{seq2seq_cat_forward.1} parent=1 // pred_region
      %123 = dma.done [#allocation5], 2048
    $region93: #{seq2seq_cat_forward.1} parent=1 // pred_fallthru
      _
    // Predicated region
    $region94: #{seq2seq_cat_forward.1} parent=1 // pred_check
      _
    $region95: #{seq2seq_cat_forward.1} parent=1 // pred_check_branch
      %125 = sbr.rel (0) target = $region97
    $region96: #{seq2seq_cat_forward.1} parent=1 // pred_region
      %127 = dma.done [#allocation8], 2048
    $region97: #{seq2seq_cat_forward.1} parent=1 // pred_fallthru
      _
    %v128 = vld [vmem:[%s0] sm:$0xff]
    %v129 = vld [vmem:[%s4] sm:$0xff]
    %v130 = vld [vmem:[%s4 + $0x8] sm:$0x1]
    %v131 = vld [vmem:[%s5] sm:$0xff]
    %v132 = vld [vmem:[%s5 + $0x8] sm:$0xff]
    %v133 = vld [vmem:[%s5 + $0x10] sm:$0xff]
    %v134 = vld [vmem:[%s5 + $0x18] sm:$0xff]
    %vm135 = vcmask 261120
    %v137 = vsel %vm135, 0.0, 0
    %139 = vmatpush.msra.mxu0 0.0
    %140 = vmatpush.msra.mxu0 0.0
    %141 = vmatpush.msra.mxu0 0.0
    %142 = vmatpush.msra.mxu0 0.0
    %143 = vmatpush.msra.mxu0 0.0
    %144 = vmatpush.msra.mxu0 0.0
    %145 = vmatpush.msra.mxu0 0.0
    %146 = vmatpush.msra.mxu0 0.0
    %147 = vmatpush.msra.mxu0 0.0
    %148 = vmatpush.msra.mxu0 0.0
    %149 = vmatpush.msra.mxu0 0.0
    %150 = vmatpush.msra.mxu0 0.0
    %151 = vmatpush.msra.mxu0 %v134
    %152 = vmatpush.msra.mxu0 %v133
    %153 = vmatpush.msra.mxu0 %v132
    %154 = vmatpush.msra.mxu0 %v131
    %155 = vmatmul.f32.gmra.mxu0 %v137
    %v156 = vpop.f32.mrf.mxu0
    %v157 = vadd.f32 0.0, %v156
    %158 = vdwg.mxu0
    %vm159 = vcmask 72704
    %v161 = vsel %vm159, %v128, 0
    %vm163 = vcmask 1040384
    %v165 = vsel %vm163, %v130, 0
    %167 = vmatpush.msra.mxu0 0.0
    %168 = vmatpush.msra.mxu0 0.0
    %169 = vmatpush.msra.mxu0 0.0
    %170 = vmatpush.msra.mxu0 0.0
    %171 = vmatpush.msra.mxu0 0.0
    %172 = vmatpush.msra.mxu0 0.0
    %173 = vmatpush.msra.mxu0 0.0
    %174 = vmatpush.msra.mxu0 0.0
    %175 = vmatpush.msra.mxu0 0.0
    %176 = vmatpush.msra.mxu0 0.0
    %177 = vmatpush.msra.mxu0 0.0
    %178 = vmatpush.msra.mxu0 0.0
    %179 = vmatpush.msra.mxu0 0.0
    %180 = vmatpush.msra.mxu0 0.0
    %181 = vmatpush.msra.mxu0 %v165
    %182 = vmatpush.msra.mxu0 %v129
    %183 = vmatmul.f32.gmra.mxu0 %v161
    %v184 = vpop.f32.mrf.mxu0
    %v185 = vadd.f32 %v157, %v184
    %186 = vdwg.mxu0
    %v187 = vld [vmem:[%s6] sm:$0x1]
    %v189 = vperm.slane %v187, 0
    %v191 = vadd.f32 %v185, %v189
    %v192 = vmul.f32 %v191, 0.5
    %v193 = vtanh.pop %v192
    %v194 = vmul.f32 %v193, 0.5
    %v195 = vadd.f32 %v194, 0.5
    %v196 = vtanh.pop %v191
    %v197 = vmul.f32 %v195, 0.0
    %199 = vrot.lane.b32.xlu0 %v196, 64
    %v200 = vpop.permute.xlu0 %199
    %v202 = vmul.f32 %v195, %v200
    %204 = vrot.lane.b32.xlu0 %v202, 32
    %v205 = vpop.permute.xlu0 %204
    %v207 = vadd.f32 %v197, %v205
    %v208 = vtanh.pop %v207
    %210 = vrot.lane.b32.xlu0 %v208, 64
    %v211 = vpop.permute.xlu0 %210
    %v213 = vmul.f32 %v195, %v211
    %v214 = vld [vmem:[%s1] sm:$0xff]
    %v215 = vld [vmem:[#allocation2] sm:$0xff]
    %v216 = vld [vmem:[#allocation2 + $0x8] sm:$0x3]
    %v217 = vld [vmem:[%s8] sm:$0xff]
    %v218 = vld [vmem:[%s8 + $0x8] sm:$0xff]
    %v219 = vld [vmem:[%s8 + $0x10] sm:$0xff]
    %v220 = vld [vmem:[%s8 + $0x18] sm:$0xff]
    %221 = vmatpush.msra.mxu0 0.0
    %222 = vmatpush.msra.mxu0 0.0
    %223 = vmatpush.msra.mxu0 0.0
    %224 = vmatpush.msra.mxu0 0.0
    %225 = vmatpush.msra.mxu0 0.0
    %226 = vmatpush.msra.mxu0 0.0
    %227 = vmatpush.msra.mxu0 0.0
    %228 = vmatpush.msra.mxu0 0.0
    %229 = vmatpush.msra.mxu0 0.0
    %230 = vmatpush.msra.mxu0 0.0
    %231 = vmatpush.msra.mxu0 0.0
    %232 = vmatpush.msra.mxu0 0.0
    %233 = vmatpush.msra.mxu0 %v220
    %234 = vmatpush.msra.mxu0 %v219
    %235 = vmatpush.msra.mxu0 %v218
    %236 = vmatpush.msra.mxu0 %v217
    %237 = vmatmul.f32.gmra.mxu0 %v137
    %v238 = vpop.f32.mrf.mxu0
    %v239 = vadd.f32 0.0, %v238
    %240 = vdwg.mxu0
    %vm241 = vcmask 80896
    %v243 = vsel %vm241, %v214, 0
    %vm245 = vcmask 1041408
    %v247 = vsel %vm245, %v216, 0
    %249 = vmatpush.msra.mxu0 0.0
    %250 = vmatpush.msra.mxu0 0.0
    %251 = vmatpush.msra.mxu0 0.0
    %252 = vmatpush.msra.mxu0 0.0
    %253 = vmatpush.msra.mxu0 0.0
    %254 = vmatpush.msra.mxu0 0.0
    %255 = vmatpush.msra.mxu0 0.0
    %256 = vmatpush.msra.mxu0 0.0
    %257 = vmatpush.msra.mxu0 0.0
    %258 = vmatpush.msra.mxu0 0.0
    %259 = vmatpush.msra.mxu0 0.0
    %260 = vmatpush.msra.mxu0 0.0
    %261 = vmatpush.msra.mxu0 0.0
    %262 = vmatpush.msra.mxu0 0.0
    %263 = vmatpush.msra.mxu0 %v247
    %264 = vmatpush.msra.mxu0 %v215
    %265 = vmatmul.f32.gmra.mxu0 %v243
    %v266 = vpop.f32.mrf.mxu0
    %v267 = vadd.f32 %v239, %v266
    %268 = vdwg.mxu0
    %v269 = vld [vmem:[%s9] sm:$0x1]
    %v271 = vperm.slane %v269, 0
    %v273 = vadd.f32 %v267, %v271
    %v274 = vmul.f32 %v273, 0.5
    %v275 = vtanh.pop %v274
    %v276 = vmul.f32 %v275, 0.5
    %v277 = vadd.f32 %v276, 0.5
    %v278 = vtanh.pop %v273
    %v279 = vmul.f32 %v277, 0.0
    %281 = vrot.lane.b32.xlu0 %v278, 64
    %v282 = vpop.permute.xlu0 %281
    %v284 = vmul.f32 %v277, %v282
    %286 = vrot.lane.b32.xlu0 %v284, 32
    %v287 = vpop.permute.xlu0 %286
    %v289 = vadd.f32 %v279, %v287
    %v290 = vtanh.pop %v289
    %292 = vrot.lane.b32.xlu0 %v290, 64
    %v293 = vpop.permute.xlu0 %292
    %v295 = vmul.f32 %v277, %v293
    %s296 = scalar_lea.vmem %s0, 8
    %v297 = vld [vmem:[%s296] sm:$0xff]
    %299 = vrot.lane.b32.xlu0 %v213, 32
    %v300 = vpop.permute.xlu0 %299
    %v301 = vsel %vm135, %v300, 0
    %303 = vmatpush.msra.mxu0 0.0
    %304 = vmatpush.msra.mxu0 0.0
    %305 = vmatpush.msra.mxu0 0.0
    %306 = vmatpush.msra.mxu0 0.0
    %307 = vmatpush.msra.mxu0 0.0
    %308 = vmatpush.msra.mxu0 0.0
    %309 = vmatpush.msra.mxu0 0.0
    %310 = vmatpush.msra.mxu0 0.0
    %311 = vmatpush.msra.mxu0 0.0
    %312 = vmatpush.msra.mxu0 0.0
    %313 = vmatpush.msra.mxu0 0.0
    %314 = vmatpush.msra.mxu0 0.0
    %315 = vmatpush.msra.mxu0 %v134
    %316 = vmatpush.msra.mxu0 %v133
    %317 = vmatpush.msra.mxu0 %v132
    %318 = vmatpush.msra.mxu0 %v131
    %319 = vmatmul.f32.gmra.mxu0 %v301
    %v320 = vpop.f32.mrf.mxu0
    %v321 = vadd.f32 0.0, %v320
    %322 = vdwg.mxu0
    %v324 = vsel %vm159, %v297, 0
    %326 = vmatpush.msra.mxu0 0.0
    %327 = vmatpush.msra.mxu0 0.0
    %328 = vmatpush.msra.mxu0 0.0
    %329 = vmatpush.msra.mxu0 0.0
    %330 = vmatpush.msra.mxu0 0.0
    %331 = vmatpush.msra.mxu0 0.0
    %332 = vmatpush.msra.mxu0 0.0
    %333 = vmatpush.msra.mxu0 0.0
    %334 = vmatpush.msra.mxu0 0.0
    %335 = vmatpush.msra.mxu0 0.0
    %336 = vmatpush.msra.mxu0 0.0
    %337 = vmatpush.msra.mxu0 0.0
    %338 = vmatpush.msra.mxu0 0.0
    %339 = vmatpush.msra.mxu0 0.0
    %340 = vmatpush.msra.mxu0 %v165
    %341 = vmatpush.msra.mxu0 %v129
    %342 = vmatmul.f32.gmra.mxu0 %v324
    %v343 = vpop.f32.mrf.mxu0
    %v344 = vadd.f32 %v321, %v343
    %345 = vdwg.mxu0
    %v346 = vadd.f32 %v344, %v189
    %v347 = vmul.f32 %v346, 0.5
    %v348 = vtanh.pop %v347
    %v349 = vmul.f32 %v348, 0.5
    %v350 = vadd.f32 %v349, 0.5
    %v351 = vtanh.pop %v346
    %v352 = vmul.f32 %v350, %v207
    %354 = vrot.lane.b32.xlu0 %v351, 64
    %v355 = vpop.permute.xlu0 %354
    %v357 = vmul.f32 %v350, %v355
    %359 = vrot.lane.b32.xlu0 %v357, 32
    %v360 = vpop.permute.xlu0 %359
    %v362 = vadd.f32 %v352, %v360
    %v363 = vtanh.pop %v362
    %365 = vrot.lane.b32.xlu0 %v363, 64
    %v366 = vpop.permute.xlu0 %365
    %v368 = vmul.f32 %v350, %v366
    %s369 = scalar_lea.vmem %s1, 8
    %v370 = vld [vmem:[%s369] sm:$0xff]
    %372 = vrot.lane.b32.xlu0 %v295, 32
    %v373 = vpop.permute.xlu0 %372
    %v374 = vsel %vm135, %v373, 0
    %376 = vmatpush.msra.mxu0 0.0
    %377 = vmatpush.msra.mxu0 0.0
    %378 = vmatpush.msra.mxu0 0.0
    %379 = vmatpush.msra.mxu0 0.0
    %380 = vmatpush.msra.mxu0 0.0
    %381 = vmatpush.msra.mxu0 0.0
    %382 = vmatpush.msra.mxu0 0.0
    %383 = vmatpush.msra.mxu0 0.0
    %384 = vmatpush.msra.mxu0 0.0
    %385 = vmatpush.msra.mxu0 0.0
    %386 = vmatpush.msra.mxu0 0.0
    %387 = vmatpush.msra.mxu0 0.0
    %388 = vmatpush.msra.mxu0 %v220
    %389 = vmatpush.msra.mxu0 %v219
    %390 = vmatpush.msra.mxu0 %v218
    %391 = vmatpush.msra.mxu0 %v217
    %392 = vmatmul.f32.gmra.mxu0 %v374
    %v393 = vpop.f32.mrf.mxu0
    %v394 = vadd.f32 0.0, %v393
    %395 = vdwg.mxu0
    %v397 = vsel %vm241, %v370, 0
    %399 = vmatpush.msra.mxu0 0.0
    %400 = vmatpush.msra.mxu0 0.0
    %401 = vmatpush.msra.mxu0 0.0
    %402 = vmatpush.msra.mxu0 0.0
    %403 = vmatpush.msra.mxu0 0.0
    %404 = vmatpush.msra.mxu0 0.0
    %405 = vmatpush.msra.mxu0 0.0
    %406 = vmatpush.msra.mxu0 0.0
    %407 = vmatpush.msra.mxu0 0.0
    %408 = vmatpush.msra.mxu0 0.0
    %409 = vmatpush.msra.mxu0 0.0
    %410 = vmatpush.msra.mxu0 0.0
    %411 = vmatpush.msra.mxu0 0.0
    %412 = vmatpush.msra.mxu0 0.0
    %413 = vmatpush.msra.mxu0 %v247
    %414 = vmatpush.msra.mxu0 %v215
    %415 = vmatmul.f32.gmra.mxu0 %v397
    %v416 = vpop.f32.mrf.mxu0
    %v417 = vadd.f32 %v394, %v416
    %418 = vdwg.mxu0
    %v419 = vadd.f32 %v417, %v271
    %v420 = vmul.f32 %v419, 0.5
    %v421 = vtanh.pop %v420
    %v422 = vmul.f32 %v421, 0.5
    %v423 = vadd.f32 %v422, 0.5
    %v424 = vtanh.pop %v419
    %v425 = vmul.f32 %v423, %v289
    %427 = vrot.lane.b32.xlu0 %v424, 64
    %v428 = vpop.permute.xlu0 %427
    %v430 = vmul.f32 %v423, %v428
    %432 = vrot.lane.b32.xlu0 %v430, 32
    %v433 = vpop.permute.xlu0 %432
    %v435 = vadd.f32 %v425, %v433
    %v436 = vtanh.pop %v435
    %438 = vrot.lane.b32.xlu0 %v436, 64
    %v439 = vpop.permute.xlu0 %438
    %v441 = vmul.f32 %v423, %v439
    %s442 = scalar_lea.vmem %s0, 16
    %v443 = vld [vmem:[%s442] sm:$0xff]
    %445 = vrot.lane.b32.xlu0 %v368, 32
    %v446 = vpop.permute.xlu0 %445
    %v447 = vsel %vm135, %v446, 0
    %449 = vmatpush.msra.mxu0 0.0
    %450 = vmatpush.msra.mxu0 0.0
    %451 = vmatpush.msra.mxu0 0.0
    %452 = vmatpush.msra.mxu0 0.0
    %453 = vmatpush.msra.mxu0 0.0
    %454 = vmatpush.msra.mxu0 0.0
    %455 = vmatpush.msra.mxu0 0.0
    %456 = vmatpush.msra.mxu0 0.0
    %457 = vmatpush.msra.mxu0 0.0
    %458 = vmatpush.msra.mxu0 0.0
    %459 = vmatpush.msra.mxu0 0.0
    %460 = vmatpush.msra.mxu0 0.0
    %461 = vmatpush.msra.mxu0 %v134
    %462 = vmatpush.msra.mxu0 %v133
    %463 = vmatpush.msra.mxu0 %v132
    %464 = vmatpush.msra.mxu0 %v131
    %465 = vmatmul.f32.gmra.mxu0 %v447
    %v466 = vpop.f32.mrf.mxu0
    %v467 = vadd.f32 0.0, %v466
    %468 = vdwg.mxu0
    %v470 = vsel %vm159, %v443, 0
    %472 = vmatpush.msra.mxu0 0.0
    %473 = vmatpush.msra.mxu0 0.0
    %474 = vmatpush.msra.mxu0 0.0
    %475 = vmatpush.msra.mxu0 0.0
    %476 = vmatpush.msra.mxu0 0.0
    %477 = vmatpush.msra.mxu0 0.0
    %478 = vmatpush.msra.mxu0 0.0
    %479 = vmatpush.msra.mxu0 0.0
    %480 = vmatpush.msra.mxu0 0.0
    %481 = vmatpush.msra.mxu0 0.0
    %482 = vmatpush.msra.mxu0 0.0
    %483 = vmatpush.msra.mxu0 0.0
    %484 = vmatpush.msra.mxu0 0.0
    %485 = vmatpush.msra.mxu0 0.0
    %486 = vmatpush.msra.mxu0 %v165
    %487 = vmatpush.msra.mxu0 %v129
    %488 = vmatmul.f32.gmra.mxu0 %v470
    %v489 = vpop.f32.mrf.mxu0
    %v490 = vadd.f32 %v467, %v489
    %491 = vdwg.mxu0
    %v492 = vadd.f32 %v490, %v189
    %v493 = vmul.f32 %v492, 0.5
    %v494 = vtanh.pop %v493
    %v495 = vmul.f32 %v494, 0.5
    %v496 = vadd.f32 %v495, 0.5
    %v497 = vtanh.pop %v492
    %v498 = vmul.f32 %v496, %v362
    %500 = vrot.lane.b32.xlu0 %v497, 64
    %v501 = vpop.permute.xlu0 %500
    %v503 = vmul.f32 %v496, %v501
    %505 = vrot.lane.b32.xlu0 %v503, 32
    %v506 = vpop.permute.xlu0 %505
    %v508 = vadd.f32 %v498, %v506
    %v509 = vtanh.pop %v508
    %511 = vrot.lane.b32.xlu0 %v509, 64
    %v512 = vpop.permute.xlu0 %511
    %v514 = vmul.f32 %v496, %v512
    %s515 = scalar_lea.vmem %s1, 16
    %v516 = vld [vmem:[%s515] sm:$0xff]
    %518 = vrot.lane.b32.xlu0 %v441, 32
    %v519 = vpop.permute.xlu0 %518
    %v520 = vsel %vm135, %v519, 0
    %522 = vmatpush.msra.mxu0 0.0
    %523 = vmatpush.msra.mxu0 0.0
    %524 = vmatpush.msra.mxu0 0.0
    %525 = vmatpush.msra.mxu0 0.0
    %526 = vmatpush.msra.mxu0 0.0
    %527 = vmatpush.msra.mxu0 0.0
    %528 = vmatpush.msra.mxu0 0.0
    %529 = vmatpush.msra.mxu0 0.0
    %530 = vmatpush.msra.mxu0 0.0
    %531 = vmatpush.msra.mxu0 0.0
    %532 = vmatpush.msra.mxu0 0.0
    %533 = vmatpush.msra.mxu0 0.0
    %534 = vmatpush.msra.mxu0 %v220
    %535 = vmatpush.msra.mxu0 %v219
    %536 = vmatpush.msra.mxu0 %v218
    %537 = vmatpush.msra.mxu0 %v217
    %538 = vmatmul.f32.gmra.mxu0 %v520
    %v539 = vpop.f32.mrf.mxu0
    %v540 = vadd.f32 0.0, %v539
    %541 = vdwg.mxu0
    %v543 = vsel %vm241, %v516, 0
    %545 = vmatpush.msra.mxu0 0.0
    %546 = vmatpush.msra.mxu0 0.0
    %547 = vmatpush.msra.mxu0 0.0
    %548 = vmatpush.msra.mxu0 0.0
    %549 = vmatpush.msra.mxu0 0.0
    %550 = vmatpush.msra.mxu0 0.0
    %551 = vmatpush.msra.mxu0 0.0
    %552 = vmatpush.msra.mxu0 0.0
    %553 = vmatpush.msra.mxu0 0.0
    %554 = vmatpush.msra.mxu0 0.0
    %555 = vmatpush.msra.mxu0 0.0
    %556 = vmatpush.msra.mxu0 0.0
    %557 = vmatpush.msra.mxu0 0.0
    %558 = vmatpush.msra.mxu0 0.0
    %559 = vmatpush.msra.mxu0 %v247
    %560 = vmatpush.msra.mxu0 %v215
    %561 = vmatmul.f32.gmra.mxu0 %v543
    %v562 = vpop.f32.mrf.mxu0
    %v563 = vadd.f32 %v540, %v562
    %564 = vdwg.mxu0
    %v565 = vadd.f32 %v563, %v271
    %v566 = vmul.f32 %v565, 0.5
    %v567 = vtanh.pop %v566
    %v568 = vmul.f32 %v567, 0.5
    %v569 = vadd.f32 %v568, 0.5
    %v570 = vtanh.pop %v565
    %v571 = vmul.f32 %v569, %v435
    %573 = vrot.lane.b32.xlu0 %v570, 64
    %v574 = vpop.permute.xlu0 %573
    %v576 = vmul.f32 %v569, %v574
    %578 = vrot.lane.b32.xlu0 %v576, 32
    %v579 = vpop.permute.xlu0 %578
    %v581 = vadd.f32 %v571, %v579
    %v582 = vtanh.pop %v581
    %584 = vrot.lane.b32.xlu0 %v582, 64
    %v585 = vpop.permute.xlu0 %584
    %v587 = vmul.f32 %v569, %v585
    %s588 = scalar_lea.vmem %s0, 24
    %v589 = vld [vmem:[%s588] sm:$0xff]
    %591 = vrot.lane.b32.xlu0 %v514, 32
    %v592 = vpop.permute.xlu0 %591
    %v593 = vsel %vm135, %v592, 0
    %595 = vmatpush.msra.mxu0 0.0
    %596 = vmatpush.msra.mxu0 0.0
    %597 = vmatpush.msra.mxu0 0.0
    %598 = vmatpush.msra.mxu0 0.0
    %599 = vmatpush.msra.mxu0 0.0
    %600 = vmatpush.msra.mxu0 0.0
    %601 = vmatpush.msra.mxu0 0.0
    %602 = vmatpush.msra.mxu0 0.0
    %603 = vmatpush.msra.mxu0 0.0
    %604 = vmatpush.msra.mxu0 0.0
    %605 = vmatpush.msra.mxu0 0.0
    %606 = vmatpush.msra.mxu0 0.0
    %607 = vmatpush.msra.mxu0 %v134
    %608 = vmatpush.msra.mxu0 %v133
    %609 = vmatpush.msra.mxu0 %v132
    %610 = vmatpush.msra.mxu0 %v131
    %611 = vmatmul.f32.gmra.mxu0 %v593
    %v612 = vpop.f32.mrf.mxu0
    %v613 = vadd.f32 0.0, %v612
    %614 = vdwg.mxu0
    %v616 = vsel %vm159, %v589, 0
    %618 = vmatpush.msra.mxu0 0.0
    %619 = vmatpush.msra.mxu0 0.0
    %620 = vmatpush.msra.mxu0 0.0
    %621 = vmatpush.msra.mxu0 0.0
    %622 = vmatpush.msra.mxu0 0.0
    %623 = vmatpush.msra.mxu0 0.0
    %624 = vmatpush.msra.mxu0 0.0
    %625 = vmatpush.msra.mxu0 0.0
    %626 = vmatpush.msra.mxu0 0.0
    %627 = vmatpush.msra.mxu0 0.0
    %628 = vmatpush.msra.mxu0 0.0
    %629 = vmatpush.msra.mxu0 0.0
    %630 = vmatpush.msra.mxu0 0.0
    %631 = vmatpush.msra.mxu0 0.0
    %632 = vmatpush.msra.mxu0 %v165
    %633 = vmatpush.msra.mxu0 %v129
    %634 = vmatmul.f32.gmra.mxu0 %v616
    %v635 = vpop.f32.mrf.mxu0
    %v636 = vadd.f32 %v613, %v635
    %637 = vdwg.mxu0
    %v638 = vadd.f32 %v636, %v189
    %v639 = vmul.f32 %v638, 0.5
    %v640 = vtanh.pop %v639
    %v641 = vmul.f32 %v640, 0.5
    %v642 = vadd.f32 %v641, 0.5
    %v643 = vtanh.pop %v638
    %v644 = vmul.f32 %v642, %v508
    %646 = vrot.lane.b32.xlu0 %v643, 64
    %v647 = vpop.permute.xlu0 %646
    %v649 = vmul.f32 %v642, %v647
    %651 = vrot.lane.b32.xlu0 %v649, 32
    %v652 = vpop.permute.xlu0 %651
    %v654 = vadd.f32 %v644, %v652
    %v655 = vtanh.pop %v654
    %657 = vrot.lane.b32.xlu0 %v655, 64
    %v658 = vpop.permute.xlu0 %657
    %v660 = vmul.f32 %v642, %v658
    %s661 = scalar_lea.vmem %s1, 24
    %v662 = vld [vmem:[%s661] sm:$0xff]
    %664 = vrot.lane.b32.xlu0 %v587, 32
    %v665 = vpop.permute.xlu0 %664
    %v666 = vsel %vm135, %v665, 0
    %668 = vmatpush.msra.mxu0 0.0
    %669 = vmatpush.msra.mxu0 0.0
    %670 = vmatpush.msra.mxu0 0.0
    %671 = vmatpush.msra.mxu0 0.0
    %672 = vmatpush.msra.mxu0 0.0
    %673 = vmatpush.msra.mxu0 0.0
    %674 = vmatpush.msra.mxu0 0.0
    %675 = vmatpush.msra.mxu0 0.0
    %676 = vmatpush.msra.mxu0 0.0
    %677 = vmatpush.msra.mxu0 0.0
    %678 = vmatpush.msra.mxu0 0.0
    %679 = vmatpush.msra.mxu0 0.0
    %680 = vmatpush.msra.mxu0 %v220
    %681 = vmatpush.msra.mxu0 %v219
    %682 = vmatpush.msra.mxu0 %v218
    %683 = vmatpush.msra.mxu0 %v217
    %684 = vmatmul.f32.gmra.mxu0 %v666
    %v685 = vpop.f32.mrf.mxu0
    %v686 = vadd.f32 0.0, %v685
    %687 = vdwg.mxu0
    %v689 = vsel %vm241, %v662, 0
    %691 = vmatpush.msra.mxu0 0.0
    %692 = vmatpush.msra.mxu0 0.0
    %693 = vmatpush.msra.mxu0 0.0
    %694 = vmatpush.msra.mxu0 0.0
    %695 = vmatpush.msra.mxu0 0.0
    %696 = vmatpush.msra.mxu0 0.0
    %697 = vmatpush.msra.mxu0 0.0
    %698 = vmatpush.msra.mxu0 0.0
    %699 = vmatpush.msra.mxu0 0.0
    %700 = vmatpush.msra.mxu0 0.0
    %701 = vmatpush.msra.mxu0 0.0
    %702 = vmatpush.msra.mxu0 0.0
    %703 = vmatpush.msra.mxu0 0.0
    %704 = vmatpush.msra.mxu0 0.0
    %705 = vmatpush.msra.mxu0 %v247
    %706 = vmatpush.msra.mxu0 %v215
    %707 = vmatmul.f32.gmra.mxu0 %v689
    %v708 = vpop.f32.mrf.mxu0
    %v709 = vadd.f32 %v686, %v708
    %710 = vdwg.mxu0
    %v711 = vadd.f32 %v709, %v271
    %v712 = vmul.f32 %v711, 0.5
    %v713 = vtanh.pop %v712
    %v714 = vmul.f32 %v713, 0.5
    %v715 = vadd.f32 %v714, 0.5
    %v716 = vtanh.pop %v711
    %v717 = vmul.f32 %v715, %v581
    %719 = vrot.lane.b32.xlu0 %v716, 64
    %v720 = vpop.permute.xlu0 %719
    %v722 = vmul.f32 %v715, %v720
    %724 = vrot.lane.b32.xlu0 %v722, 32
    %v725 = vpop.permute.xlu0 %724
    %v727 = vadd.f32 %v717, %v725
    %v728 = vtanh.pop %v727
    %730 = vrot.lane.b32.xlu0 %v728, 64
    %v731 = vpop.permute.xlu0 %730
    %v733 = vmul.f32 %v715, %v731
    %s734 = scalar_lea.vmem %s0, 32
    %v735 = vld [vmem:[%s734] sm:$0xff]
    %737 = vrot.lane.b32.xlu0 %v660, 32
    %v738 = vpop.permute.xlu0 %737
    %v739 = vsel %vm135, %v738, 0
    %741 = vmatpush.msra.mxu0 0.0
    %742 = vmatpush.msra.mxu0 0.0
    %743 = vmatpush.msra.mxu0 0.0
    %744 = vmatpush.msra.mxu0 0.0
    %745 = vmatpush.msra.mxu0 0.0
    %746 = vmatpush.msra.mxu0 0.0
    %747 = vmatpush.msra.mxu0 0.0
    %748 = vmatpush.msra.mxu0 0.0
    %749 = vmatpush.msra.mxu0 0.0
    %750 = vmatpush.msra.mxu0 0.0
    %751 = vmatpush.msra.mxu0 0.0
    %752 = vmatpush.msra.mxu0 0.0
    %753 = vmatpush.msra.mxu0 %v134
    %754 = vmatpush.msra.mxu0 %v133
    %755 = vmatpush.msra.mxu0 %v132
    %756 = vmatpush.msra.mxu0 %v131
    %757 = vmatmul.f32.gmra.mxu0 %v739
    %v758 = vpop.f32.mrf.mxu0
    %v759 = vadd.f32 0.0, %v758
    %760 = vdwg.mxu0
    %v762 = vsel %vm159, %v735, 0
    %764 = vmatpush.msra.mxu0 0.0
    %765 = vmatpush.msra.mxu0 0.0
    %766 = vmatpush.msra.mxu0 0.0
    %767 = vmatpush.msra.mxu0 0.0
    %768 = vmatpush.msra.mxu0 0.0
    %769 = vmatpush.msra.mxu0 0.0
    %770 = vmatpush.msra.mxu0 0.0
    %771 = vmatpush.msra.mxu0 0.0
    %772 = vmatpush.msra.mxu0 0.0
    %773 = vmatpush.msra.mxu0 0.0
    %774 = vmatpush.msra.mxu0 0.0
    %775 = vmatpush.msra.mxu0 0.0
    %776 = vmatpush.msra.mxu0 0.0
    %777 = vmatpush.msra.mxu0 0.0
    %778 = vmatpush.msra.mxu0 %v165
    %779 = vmatpush.msra.mxu0 %v129
    %780 = vmatmul.f32.gmra.mxu0 %v762
    %v781 = vpop.f32.mrf.mxu0
    %v782 = vadd.f32 %v759, %v781
    %783 = vdwg.mxu0
    %v784 = vadd.f32 %v782, %v189
    %v785 = vmul.f32 %v784, 0.5
    %v786 = vtanh.pop %v785
    %v787 = vmul.f32 %v786, 0.5
    %v788 = vadd.f32 %v787, 0.5
    %v789 = vtanh.pop %v784
    %v790 = vmul.f32 %v788, %v654
    %792 = vrot.lane.b32.xlu0 %v789, 64
    %v793 = vpop.permute.xlu0 %792
    %v795 = vmul.f32 %v788, %v793
    %797 = vrot.lane.b32.xlu0 %v795, 32
    %v798 = vpop.permute.xlu0 %797
    %v800 = vadd.f32 %v790, %v798
    %v801 = vtanh.pop %v800
    %803 = vrot.lane.b32.xlu0 %v801, 64
    %v804 = vpop.permute.xlu0 %803
    %v806 = vmul.f32 %v788, %v804
    %s807 = scalar_lea.vmem %s1, 32
    %v808 = vld [vmem:[%s807] sm:$0xff]
    %810 = vrot.lane.b32.xlu0 %v733, 32
    %v811 = vpop.permute.xlu0 %810
    %v812 = vsel %vm135, %v811, 0
    %814 = vmatpush.msra.mxu0 0.0
    %815 = vmatpush.msra.mxu0 0.0
    %816 = vmatpush.msra.mxu0 0.0
    %817 = vmatpush.msra.mxu0 0.0
    %818 = vmatpush.msra.mxu0 0.0
    %819 = vmatpush.msra.mxu0 0.0
    %820 = vmatpush.msra.mxu0 0.0
    %821 = vmatpush.msra.mxu0 0.0
    %822 = vmatpush.msra.mxu0 0.0
    %823 = vmatpush.msra.mxu0 0.0
    %824 = vmatpush.msra.mxu0 0.0
    %825 = vmatpush.msra.mxu0 0.0
    %826 = vmatpush.msra.mxu0 %v220
    %827 = vmatpush.msra.mxu0 %v219
    %828 = vmatpush.msra.mxu0 %v218
    %829 = vmatpush.msra.mxu0 %v217
    %830 = vmatmul.f32.gmra.mxu0 %v812
    %v831 = vpop.f32.mrf.mxu0
    %v832 = vadd.f32 0.0, %v831
    %833 = vdwg.mxu0
    %v835 = vsel %vm241, %v808, 0
    %837 = vmatpush.msra.mxu0 0.0
    %838 = vmatpush.msra.mxu0 0.0
    %839 = vmatpush.msra.mxu0 0.0
    %840 = vmatpush.msra.mxu0 0.0
    %841 = vmatpush.msra.mxu0 0.0
    %842 = vmatpush.msra.mxu0 0.0
    %843 = vmatpush.msra.mxu0 0.0
    %844 = vmatpush.msra.mxu0 0.0
    %845 = vmatpush.msra.mxu0 0.0
    %846 = vmatpush.msra.mxu0 0.0
    %847 = vmatpush.msra.mxu0 0.0
    %848 = vmatpush.msra.mxu0 0.0
    %849 = vmatpush.msra.mxu0 0.0
    %850 = vmatpush.msra.mxu0 0.0
    %851 = vmatpush.msra.mxu0 %v247
    %852 = vmatpush.msra.mxu0 %v215
    %853 = vmatmul.f32.gmra.mxu0 %v835
    %v854 = vpop.f32.mrf.mxu0
    %v855 = vadd.f32 %v832, %v854
    %856 = vdwg.mxu0
    %v857 = vadd.f32 %v855, %v271
    %v858 = vmul.f32 %v857, 0.5
    %v859 = vtanh.pop %v858
    %v860 = vmul.f32 %v859, 0.5
    %v861 = vadd.f32 %v860, 0.5
    %v862 = vtanh.pop %v857
    %v863 = vmul.f32 %v861, %v727
    %865 = vrot.lane.b32.xlu0 %v862, 64
    %v866 = vpop.permute.xlu0 %865
    %v868 = vmul.f32 %v861, %v866
    %870 = vrot.lane.b32.xlu0 %v868, 32
    %v871 = vpop.permute.xlu0 %870
    %v873 = vadd.f32 %v863, %v871
    %v874 = vtanh.pop %v873
    %876 = vrot.lane.b32.xlu0 %v874, 64
    %v877 = vpop.permute.xlu0 %876
    %v879 = vmul.f32 %v861, %v877
    %s880 = scalar_lea.vmem %s0, 40
    %v881 = vld [vmem:[%s880] sm:$0xff]
    %883 = vrot.lane.b32.xlu0 %v806, 32
    %v884 = vpop.permute.xlu0 %883
    %v885 = vsel %vm135, %v884, 0
    %887 = vmatpush.msra.mxu0 0.0
    %888 = vmatpush.msra.mxu0 0.0
    %889 = vmatpush.msra.mxu0 0.0
    %890 = vmatpush.msra.mxu0 0.0
    %891 = vmatpush.msra.mxu0 0.0
    %892 = vmatpush.msra.mxu0 0.0
    %893 = vmatpush.msra.mxu0 0.0
    %894 = vmatpush.msra.mxu0 0.0
    %895 = vmatpush.msra.mxu0 0.0
    %896 = vmatpush.msra.mxu0 0.0
    %897 = vmatpush.msra.mxu0 0.0
    %898 = vmatpush.msra.mxu0 0.0
    %899 = vmatpush.msra.mxu0 %v134
    %900 = vmatpush.msra.mxu0 %v133
    %901 = vmatpush.msra.mxu0 %v132
    %902 = vmatpush.msra.mxu0 %v131
    %903 = vmatmul.f32.gmra.mxu0 %v885
    %v904 = vpop.f32.mrf.mxu0
    %v905 = vadd.f32 0.0, %v904
    %906 = vdwg.mxu0
    %v908 = vsel %vm159, %v881, 0
    %910 = vmatpush.msra.mxu0 0.0
    %911 = vmatpush.msra.mxu0 0.0
    %912 = vmatpush.msra.mxu0 0.0
    %913 = vmatpush.msra.mxu0 0.0
    %914 = vmatpush.msra.mxu0 0.0
    %915 = vmatpush.msra.mxu0 0.0
    %916 = vmatpush.msra.mxu0 0.0
    %917 = vmatpush.msra.mxu0 0.0
    %918 = vmatpush.msra.mxu0 0.0
    %919 = vmatpush.msra.mxu0 0.0
    %920 = vmatpush.msra.mxu0 0.0
    %921 = vmatpush.msra.mxu0 0.0
    %922 = vmatpush.msra.mxu0 0.0
    %923 = vmatpush.msra.mxu0 0.0
    %924 = vmatpush.msra.mxu0 %v165
    %925 = vmatpush.msra.mxu0 %v129
    %926 = vmatmul.f32.gmra.mxu0 %v908
    %v927 = vpop.f32.mrf.mxu0
    %v928 = vadd.f32 %v905, %v927
    %929 = vdwg.mxu0
    %v930 = vadd.f32 %v928, %v189
    %v931 = vmul.f32 %v930, 0.5
    %v932 = vtanh.pop %v931
    %v933 = vmul.f32 %v932, 0.5
    %v934 = vadd.f32 %v933, 0.5
    %v935 = vtanh.pop %v930
    %v936 = vmul.f32 %v934, %v800
    %938 = vrot.lane.b32.xlu0 %v935, 64
    %v939 = vpop.permute.xlu0 %938
    %v941 = vmul.f32 %v934, %v939
    %943 = vrot.lane.b32.xlu0 %v941, 32
    %v944 = vpop.permute.xlu0 %943
    %v946 = vadd.f32 %v936, %v944
    %v947 = vtanh.pop %v946
    %949 = vrot.lane.b32.xlu0 %v947, 64
    %v950 = vpop.permute.xlu0 %949
    %v952 = vmul.f32 %v934, %v950
    %s953 = scalar_lea.vmem %s1, 40
    %v954 = vld [vmem:[%s953] sm:$0xff]
    %956 = vrot.lane.b32.xlu0 %v879, 32
    %v957 = vpop.permute.xlu0 %956
    %v958 = vsel %vm135, %v957, 0
    %960 = vmatpush.msra.mxu0 0.0
    %961 = vmatpush.msra.mxu0 0.0
    %962 = vmatpush.msra.mxu0 0.0
    %963 = vmatpush.msra.mxu0 0.0
    %964 = vmatpush.msra.mxu0 0.0
    %965 = vmatpush.msra.mxu0 0.0
    %966 = vmatpush.msra.mxu0 0.0
    %967 = vmatpush.msra.mxu0 0.0
    %968 = vmatpush.msra.mxu0 0.0
    %969 = vmatpush.msra.mxu0 0.0
    %970 = vmatpush.msra.mxu0 0.0
    %971 = vmatpush.msra.mxu0 0.0
    %972 = vmatpush.msra.mxu0 %v220
    %973 = vmatpush.msra.mxu0 %v219
    %974 = vmatpush.msra.mxu0 %v218
    %975 = vmatpush.msra.mxu0 %v217
    %976 = vmatmul.f32.gmra.mxu0 %v958
    %v977 = vpop.f32.mrf.mxu0
    %v978 = vadd.f32 0.0, %v977
    %979 = vdwg.mxu0
    %v981 = vsel %vm241, %v954, 0
    %983 = vmatpush.msra.mxu0 0.0
    %984 = vmatpush.msra.mxu0 0.0
    %985 = vmatpush.msra.mxu0 0.0
    %986 = vmatpush.msra.mxu0 0.0
    %987 = vmatpush.msra.mxu0 0.0
    %988 = vmatpush.msra.mxu0 0.0
    %989 = vmatpush.msra.mxu0 0.0
    %990 = vmatpush.msra.mxu0 0.0
    %991 = vmatpush.msra.mxu0 0.0
    %992 = vmatpush.msra.mxu0 0.0
    %993 = vmatpush.msra.mxu0 0.0
    %994 = vmatpush.msra.mxu0 0.0
    %995 = vmatpush.msra.mxu0 0.0
    %996 = vmatpush.msra.mxu0 0.0
    %997 = vmatpush.msra.mxu0 %v247
    %998 = vmatpush.msra.mxu0 %v215
    %999 = vmatmul.f32.gmra.mxu0 %v981
    %v1000 = vpop.f32.mrf.mxu0
    %v1001 = vadd.f32 %v978, %v1000
    %1002 = vdwg.mxu0
    %v1003 = vadd.f32 %v1001, %v271
    %v1004 = vmul.f32 %v1003, 0.5
    %v1005 = vtanh.pop %v1004
    %v1006 = vmul.f32 %v1005, 0.5
    %v1007 = vadd.f32 %v1006, 0.5
    %v1008 = vtanh.pop %v1003
    %v1009 = vmul.f32 %v1007, %v873
    %1011 = vrot.lane.b32.xlu0 %v1008, 64
    %v1012 = vpop.permute.xlu0 %1011
    %v1014 = vmul.f32 %v1007, %v1012
    %1016 = vrot.lane.b32.xlu0 %v1014, 32
    %v1017 = vpop.permute.xlu0 %1016
    %v1019 = vadd.f32 %v1009, %v1017
    %v1020 = vtanh.pop %v1019
    %1022 = vrot.lane.b32.xlu0 %v1020, 64
    %v1023 = vpop.permute.xlu0 %1022
    %v1025 = vmul.f32 %v1007, %v1023
    %1027 = vrot.lane.b32.xlu0 %v952, 32
    %v1028 = vpop.permute.xlu0 %1027
    %1031 = vrot.lane.b32.xlu0 %v1025, 64
    %v1032 = vpop.permute.xlu0 %1031
    %v1034 = vsel %vm135, %v1028, %v1032
    %1036 = vrot.lane.b32.xlu0 %v946, 96
    %v1037 = vpop.permute.xlu0 %1036
    %v1039 = vsel %vm135, %v1037, %v1019
    %v1040 = vlaneseq
    %v1041 = vand.u32 %v1040, 127
    %v1042 = vld [vmem:[#allocation4] sm:$0xff]
    %v1043 = vld [vmem:[#allocation4 + $0x8] sm:$0xff]
    %v1044 = vld [vmem:[#allocation6] sm:$0xff]
    %v1045 = vld [vmem:[#allocation6 + $0x8] sm:$0xff]
    %v1046 = vld [vmem:[#allocation6 + $0x10] sm:$0xff]
    %v1047 = vld [vmem:[#allocation6 + $0x18] sm:$0xff]
    %v1048 = vld [vmem:[#allocation6 + $0x20] sm:$0xff]
    %v1049 = vld [vmem:[#allocation6 + $0x28] sm:$0xff]
    %v1050 = vld [vmem:[#allocation6 + $0x30] sm:$0xff]
    %v1051 = vld [vmem:[#allocation6 + $0x38] sm:$0xff]
    %v1052 = vld [vmem:[#allocation6 + $0x40] sm:$0xff]
    %v1053 = vld [vmem:[#allocation6 + $0x48] sm:$0xff]
    %v1054 = vld [vmem:[#allocation6 + $0x50] sm:$0xff]
    %v1055 = vld [vmem:[#allocation6 + $0x58] sm:$0xff]
    %v1056 = vld [vmem:[#allocation6 + $0x60] sm:$0xff]
    %v1057 = vld [vmem:[#allocation6 + $0x68] sm:$0xff]
    %v1058 = vld [vmem:[#allocation6 + $0x70] sm:$0xff]
    %v1059 = vld [vmem:[#allocation6 + $0x78] sm:$0xff]
    %vm1060 = vcmask 523264
    %v1062 = vsel %vm1060, %v1034, 0
    %1064 = vmatpush.msra.mxu0 0.0
    %1065 = vmatpush.msra.mxu0 0.0
    %1066 = vmatpush.msra.mxu0 0.0
    %1067 = vmatpush.msra.mxu0 0.0
    %1068 = vmatpush.msra.mxu0 0.0
    %1069 = vmatpush.msra.mxu0 0.0
    %1070 = vmatpush.msra.mxu0 0.0
    %1071 = vmatpush.msra.mxu0 0.0
    %1072 = vmatpush.msra.mxu0 %v1058
    %1073 = vmatpush.msra.mxu0 %v1056
    %1074 = vmatpush.msra.mxu0 %v1054
    %1075 = vmatpush.msra.mxu0 %v1052
    %1076 = vmatpush.msra.mxu0 %v1050
    %1077 = vmatpush.msra.mxu0 %v1048
    %1078 = vmatpush.msra.mxu0 %v1046
    %1079 = vmatpush.msra.mxu0 %v1044
    %1080 = vmatmul.f32.gmra.mxu0 %v1062
    %v1081 = vpop.f32.mrf.mxu0
    %v1082 = vadd.f32 0.0, %v1081
    %1083 = vdwg.mxu0
    %1084 = vmatpush.msra.mxu0 0.0
    %1085 = vmatpush.msra.mxu0 0.0
    %1086 = vmatpush.msra.mxu0 0.0
    %1087 = vmatpush.msra.mxu0 0.0
    %1088 = vmatpush.msra.mxu0 0.0
    %1089 = vmatpush.msra.mxu0 0.0
    %1090 = vmatpush.msra.mxu0 0.0
    %1091 = vmatpush.msra.mxu0 0.0
    %1092 = vmatpush.msra.mxu0 %v1059
    %1093 = vmatpush.msra.mxu0 %v1057
    %1094 = vmatpush.msra.mxu0 %v1055
    %1095 = vmatpush.msra.mxu0 %v1053
    %1096 = vmatpush.msra.mxu0 %v1051
    %1097 = vmatpush.msra.mxu0 %v1049
    %1098 = vmatpush.msra.mxu0 %v1047
    %1099 = vmatpush.msra.mxu0 %v1045
    %1100 = vmatmul.f32.gmra.mxu0 %v1062
    %v1101 = vpop.f32.mrf.mxu0
    %v1102 = vadd.f32 0.0, %v1101
    %1103 = vdwg.mxu0
    %vm1104 = vcmask 64512
    %v1105 = vsel %vm1104, %v954, 0
    %1107 = vmatpush.msra.mxu0 0.0
    %1108 = vmatpush.msra.mxu0 0.0
    %1109 = vmatpush.msra.mxu0 0.0
    %1110 = vmatpush.msra.mxu0 0.0
    %1111 = vmatpush.msra.mxu0 0.0
    %1112 = vmatpush.msra.mxu0 0.0
    %1113 = vmatpush.msra.mxu0 0.0
    %1114 = vmatpush.msra.mxu0 0.0
    %1115 = vmatpush.msra.mxu0 0.0
    %1116 = vmatpush.msra.mxu0 0.0
    %1117 = vmatpush.msra.mxu0 0.0
    %1118 = vmatpush.msra.mxu0 0.0
    %1119 = vmatpush.msra.mxu0 0.0
    %1120 = vmatpush.msra.mxu0 0.0
    %1121 = vmatpush.msra.mxu0 0.0
    %1122 = vmatpush.msra.mxu0 %v1042
    %1123 = vmatmul.f32.gmra.mxu0 %v1105
    %v1124 = vpop.f32.mrf.mxu0
    %v1125 = vadd.f32 %v1082, %v1124
    %1126 = vdwg.mxu0
    %1127 = vmatpush.msra.mxu0 0.0
    %1128 = vmatpush.msra.mxu0 0.0
    %1129 = vmatpush.msra.mxu0 0.0
    %1130 = vmatpush.msra.mxu0 0.0
    %1131 = vmatpush.msra.mxu0 0.0
    %1132 = vmatpush.msra.mxu0 0.0
    %1133 = vmatpush.msra.mxu0 0.0
    %1134 = vmatpush.msra.mxu0 0.0
    %1135 = vmatpush.msra.mxu0 0.0
    %1136 = vmatpush.msra.mxu0 0.0
    %1137 = vmatpush.msra.mxu0 0.0
    %1138 = vmatpush.msra.mxu0 0.0
    %1139 = vmatpush.msra.mxu0 0.0
    %1140 = vmatpush.msra.mxu0 0.0
    %1141 = vmatpush.msra.mxu0 0.0
    %1142 = vmatpush.msra.mxu0 %v1043
    %1143 = vmatmul.f32.gmra.mxu0 %v1105
    %v1144 = vpop.f32.mrf.mxu0
    %v1145 = vadd.f32 %v1102, %v1144
    %1146 = vdwg.mxu0
    %v1147 = vld [vmem:[%s12] sm:$0x3]
    %v1149 = vperm.slane %v1147, 0
    %v1150 = vperm.slane %v1147, 1
    %v1153 = vadd.f32 %v1125, %v1149
    %v1154 = vadd.f32 %v1145, %v1150
    %v1155 = vmul.f32 %v1153, 0.5
    %v1156 = vtanh.pop %v1155
    %v1157 = vmul.f32 %v1156, 0.5
    %v1158 = vadd.f32 %v1157, 0.5
    %v1159 = vtanh.pop %v1154
    %v1160 = vmul.f32 %v1154, 0.5
    %v1161 = vtanh.pop %v1160
    %v1162 = vmul.f32 %v1161, 0.5
    %v1163 = vadd.f32 %v1162, 0.5
    %1165 = vrot.lane.b32.xlu0 %v1039, 64
    %v1166 = vpop.permute.xlu0 %1165
    %v1168 = vmul.f32 %v1158, %v1166
    %v1169 = vmul.f32 %v1158, %v1159
    %1171 = vrot.lane.b32.xlu0 %v1169, 64
    %v1172 = vpop.permute.xlu0 %1171
    %v1174 = vadd.f32 %v1168, %v1172
    %v1175 = vtanh.pop %v1174
    %v1176 = vmul.f32 %v1163, %v1175
    %v1177 = vld [vmem:[%s13] sm:$0x3]
    %1178 = vset.pattern.permute.xlu0 9
    %1179 = vperm.xlu0 %1178, %v954
    %v1180 = vpop.permute.xlu0 %1179
    %v1183 = vperm.slane %v1177, 0
    %v1184 = vperm.slane %v1177, 1
    %v1187 = vmul.f32 %v1180, %v1183
    %v1188 = vmul.f32 %v1180, %v1184
    %v1189 = vld [vmem:[#allocation7] sm:$0xff]
    %v1190 = vld [vmem:[#allocation7 + $0x8] sm:$0xff]
    %v1191 = vld [vmem:[#allocation7 + $0x10] sm:$0xff]
    %v1192 = vld [vmem:[#allocation7 + $0x18] sm:$0xff]
    %v1193 = vld [vmem:[#allocation7 + $0x20] sm:$0xff]
    %v1194 = vld [vmem:[#allocation7 + $0x28] sm:$0xff]
    %v1195 = vld [vmem:[#allocation7 + $0x30] sm:$0xff]
    %v1196 = vld [vmem:[#allocation7 + $0x38] sm:$0xff]
    %v1197 = vld [vmem:[#allocation7 + $0x40] sm:$0xff]
    %v1198 = vld [vmem:[#allocation7 + $0x48] sm:$0xff]
    %v1199 = vld [vmem:[#allocation7 + $0x50] sm:$0xff]
    %v1200 = vld [vmem:[#allocation7 + $0x58] sm:$0xff]
    %v1201 = vld [vmem:[#allocation7 + $0x60] sm:$0xff]
    %v1202 = vld [vmem:[#allocation7 + $0x68] sm:$0xff]
    %v1203 = vld [vmem:[#allocation7 + $0x70] sm:$0xff]
    %v1204 = vld [vmem:[#allocation7 + $0x78] sm:$0xff]
    %1205 = vmatpush.msra.mxu0 0.0
    %1206 = vmatpush.msra.mxu0 0.0
    %1207 = vmatpush.msra.mxu0 0.0
    %1208 = vmatpush.msra.mxu0 0.0
    %1209 = vmatpush.msra.mxu0 0.0
    %1210 = vmatpush.msra.mxu0 0.0
    %1211 = vmatpush.msra.mxu0 0.0
    %1212 = vmatpush.msra.mxu0 0.0
    %1213 = vmatpush.msra.mxu0 %v1203
    %1214 = vmatpush.msra.mxu0 %v1201
    %1215 = vmatpush.msra.mxu0 %v1199
    %1216 = vmatpush.msra.mxu0 %v1197
    %1217 = vmatpush.msra.mxu0 %v1195
    %1218 = vmatpush.msra.mxu0 %v1193
    %1219 = vmatpush.msra.mxu0 %v1191
    %1220 = vmatpush.msra.mxu0 %v1189
    %1221 = vmatmul.f32.gmra.mxu0 %v1062
    %v1222 = vpop.f32.mrf.mxu0
    %v1223 = vadd.f32 0.0, %v1222
    %1224 = vdwg.mxu0
    %1225 = vmatpush.msra.mxu0 0.0
    %1226 = vmatpush.msra.mxu0 0.0
    %1227 = vmatpush.msra.mxu0 0.0
    %1228 = vmatpush.msra.mxu0 0.0
    %1229 = vmatpush.msra.mxu0 0.0
    %1230 = vmatpush.msra.mxu0 0.0
    %1231 = vmatpush.msra.mxu0 0.0
    %1232 = vmatpush.msra.mxu0 0.0
    %1233 = vmatpush.msra.mxu0 %v1204
    %1234 = vmatpush.msra.mxu0 %v1202
    %1235 = vmatpush.msra.mxu0 %v1200
    %1236 = vmatpush.msra.mxu0 %v1198
    %1237 = vmatpush.msra.mxu0 %v1196
    %1238 = vmatpush.msra.mxu0 %v1194
    %1239 = vmatpush.msra.mxu0 %v1192
    %1240 = vmatpush.msra.mxu0 %v1190
    %1241 = vmatmul.f32.gmra.mxu0 %v1062
    %v1242 = vpop.f32.mrf.mxu0
    %v1243 = vadd.f32 0.0, %v1242
    %1244 = vdwg.mxu0
    %v1245 = vadd.f32 %v1187, %v1223
    %v1246 = vadd.f32 %v1188, %v1243
    %v1247 = vld [vmem:[%s15] sm:$0x3]
    %v1249 = vperm.slane %v1247, 0
    %v1250 = vperm.slane %v1247, 1
    %v1253 = vadd.f32 %v1245, %v1249
    %v1254 = vadd.f32 %v1246, %v1250
    %v1255 = vmul.f32 %v1253, 0.5
    %v1256 = vtanh.pop %v1255
    %v1257 = vmul.f32 %v1256, 0.5
    %v1258 = vadd.f32 %v1257, 0.5
    %v1259 = vtanh.pop %v1254
    %v1260 = vmul.f32 %v1254, 0.5
    %v1261 = vtanh.pop %v1260
    %v1262 = vmul.f32 %v1261, 0.5
    %v1263 = vadd.f32 %v1262, 0.5
    %v1264 = vmul.f32 %v1258, %v1166
    %v1265 = vmul.f32 %v1258, %v1259
    %1267 = vrot.lane.b32.xlu0 %v1265, 64
    %v1268 = vpop.permute.xlu0 %1267
    %v1270 = vadd.f32 %v1264, %v1268
    %v1271 = vtanh.pop %v1270
    %v1272 = vmul.f32 %v1263, %v1271
    %v1273 = vld [vmem:[%s16] sm:$0xff]
    %v1274 = vld [vmem:[%s16 + $0x8] sm:$0xff]
    %v1275 = vld [vmem:[%s16 + $0x10] sm:$0xff]
    %v1276 = vld [vmem:[%s16 + $0x18] sm:$0xff]
    %v1277 = vld [vmem:[%s16 + $0x20] sm:$0xff]
    %v1278 = vld [vmem:[%s16 + $0x28] sm:$0xff]
    %v1279 = vld [vmem:[%s16 + $0x30] sm:$0xff]
    %v1280 = vld [vmem:[%s16 + $0x38] sm:$0xff]
    %v1281 = vld [vmem:[%s17] sm:$0x1]
    %v1283 = vperm.slane %v1281, 0
    %1286 = vrot.lane.b32.xlu0 %v1176, 64
    %v1287 = vpop.permute.xlu0 %1286
    %v1288 = vsel %vm1060, %v1287, 0
    %1290 = vmatpush.msra.mxu0 0.0
    %1291 = vmatpush.msra.mxu0 0.0
    %1292 = vmatpush.msra.mxu0 0.0
    %1293 = vmatpush.msra.mxu0 0.0
    %1294 = vmatpush.msra.mxu0 0.0
    %1295 = vmatpush.msra.mxu0 0.0
    %1296 = vmatpush.msra.mxu0 0.0
    %1297 = vmatpush.msra.mxu0 0.0
    %1298 = vmatpush.msra.mxu0 %v1280
    %1299 = vmatpush.msra.mxu0 %v1279
    %1300 = vmatpush.msra.mxu0 %v1278
    %1301 = vmatpush.msra.mxu0 %v1277
    %1302 = vmatpush.msra.mxu0 %v1276
    %1303 = vmatpush.msra.mxu0 %v1275
    %1304 = vmatpush.msra.mxu0 %v1274
    %1305 = vmatpush.msra.mxu0 %v1273
    %1306 = vmatmul.f32.gmra.mxu0 %v1288
    %v1307 = vpop.f32.mrf.mxu0
    %v1308 = vadd.f32 %v1283, %v1307
    %1309 = vdwg.mxu0
    %v1310 = vld [vmem:[%s18] sm:$0xff]
    %v1311 = vld [vmem:[%s18 + $0x8] sm:$0xff]
    %v1312 = vld [vmem:[%s18 + $0x10] sm:$0xff]
    %v1313 = vld [vmem:[%s18 + $0x18] sm:$0xff]
    %v1314 = vld [vmem:[%s18 + $0x20] sm:$0xff]
    %v1315 = vld [vmem:[%s18 + $0x28] sm:$0xff]
    %v1316 = vld [vmem:[%s18 + $0x30] sm:$0xff]
    %v1317 = vld [vmem:[%s18 + $0x38] sm:$0xff]
    %v1318 = vld [vmem:[%s19] sm:$0x1]
    %v1320 = vperm.slane %v1318, 0
    %1323 = vrot.lane.b32.xlu0 %v1272, 64
    %v1324 = vpop.permute.xlu0 %1323
    %v1325 = vsel %vm1060, %v1324, 0
    %1327 = vmatpush.msra.mxu0 0.0
    %1328 = vmatpush.msra.mxu0 0.0
    %1329 = vmatpush.msra.mxu0 0.0
    %1330 = vmatpush.msra.mxu0 0.0
    %1331 = vmatpush.msra.mxu0 0.0
    %1332 = vmatpush.msra.mxu0 0.0
    %1333 = vmatpush.msra.mxu0 0.0
    %1334 = vmatpush.msra.mxu0 0.0
    %1335 = vmatpush.msra.mxu0 %v1317
    %1336 = vmatpush.msra.mxu0 %v1316
    %1337 = vmatpush.msra.mxu0 %v1315
    %1338 = vmatpush.msra.mxu0 %v1314
    %1339 = vmatpush.msra.mxu0 %v1313
    %1340 = vmatpush.msra.mxu0 %v1312
    %1341 = vmatpush.msra.mxu0 %v1311
    %1342 = vmatpush.msra.mxu0 %v1310
    %1343 = vmatmul.f32.gmra.mxu0 %v1325
    %v1344 = vpop.f32.mrf.mxu0
    %v1345 = vadd.f32 %v1320, %v1344
    %1346 = vdwg.mxu0
    %1347 = vst [vmem:[%s20] sm:$0xff] %v1308
    %1348 = vst [vmem:[%s21] sm:$0xff] %v1345
    %v1349 = vld [vmem:[%s2] sm:$0xff]
    %1350 = vset.pattern.permute.xlu0 0
    %1351 = vperm.xlu0 %1350, %v1349
    %v1352 = vpop.permute.xlu0 %1351
    %vm1353 = vcmp.eq.s32.totalorder %v1041, %v1352
    %vm1354 = vcmp.ne.s32.totalorder %v1041, 0
    %vm1355 = vmand %vm1353, %vm1354
    %v1356 = vsel %vm1355, 1, 0
    %v1357 = vcvt.s32.f32 %v1356
    %v1358 = vld [vmem:[%s3] sm:$0xff]
    %v1359 = vld [vmem:[#allocation4] sm:$0xff]
    %v1360 = vld [vmem:[#allocation4 + $0x8] sm:$0xff]
    %v1361 = vld [vmem:[#allocation6] sm:$0xff]
    %v1362 = vld [vmem:[#allocation6 + $0x8] sm:$0xff]
    %v1363 = vld [vmem:[#allocation6 + $0x10] sm:$0xff]
    %v1364 = vld [vmem:[#allocation6 + $0x18] sm:$0xff]
    %v1365 = vld [vmem:[#allocation6 + $0x20] sm:$0xff]
    %v1366 = vld [vmem:[#allocation6 + $0x28] sm:$0xff]
    %v1367 = vld [vmem:[#allocation6 + $0x30] sm:$0xff]
    %v1368 = vld [vmem:[#allocation6 + $0x38] sm:$0xff]
    %v1369 = vld [vmem:[#allocation6 + $0x40] sm:$0xff]
    %v1370 = vld [vmem:[#allocation6 + $0x48] sm:$0xff]
    %v1371 = vld [vmem:[#allocation6 + $0x50] sm:$0xff]
    %v1372 = vld [vmem:[#allocation6 + $0x58] sm:$0xff]
    %v1373 = vld [vmem:[#allocation6 + $0x60] sm:$0xff]
    %v1374 = vld [vmem:[#allocation6 + $0x68] sm:$0xff]
    %v1375 = vld [vmem:[#allocation6 + $0x70] sm:$0xff]
    %v1376 = vld [vmem:[#allocation6 + $0x78] sm:$0xff]
    %1377 = vmatpush.msra.mxu0 0.0
    %1378 = vmatpush.msra.mxu0 0.0
    %1379 = vmatpush.msra.mxu0 0.0
    %1380 = vmatpush.msra.mxu0 0.0
    %1381 = vmatpush.msra.mxu0 0.0
    %1382 = vmatpush.msra.mxu0 0.0
    %1383 = vmatpush.msra.mxu0 0.0
    %1384 = vmatpush.msra.mxu0 0.0
    %1385 = vmatpush.msra.mxu0 %v1375
    %1386 = vmatpush.msra.mxu0 %v1373
    %1387 = vmatpush.msra.mxu0 %v1371
    %1388 = vmatpush.msra.mxu0 %v1369
    %1389 = vmatpush.msra.mxu0 %v1367
    %1390 = vmatpush.msra.mxu0 %v1365
    %1391 = vmatpush.msra.mxu0 %v1363
    %1392 = vmatpush.msra.mxu0 %v1361
    %1393 = vmatmul.f32.gmra.mxu0 %v1288
    %v1394 = vpop.f32.mrf.mxu0
    %v1395 = vadd.f32 0.0, %v1394
    %1396 = vdwg.mxu0
    %1397 = vmatpush.msra.mxu0 0.0
    %1398 = vmatpush.msra.mxu0 0.0
    %1399 = vmatpush.msra.mxu0 0.0
    %1400 = vmatpush.msra.mxu0 0.0
    %1401 = vmatpush.msra.mxu0 0.0
    %1402 = vmatpush.msra.mxu0 0.0
    %1403 = vmatpush.msra.mxu0 0.0
    %1404 = vmatpush.msra.mxu0 0.0
    %1405 = vmatpush.msra.mxu0 %v1376
    %1406 = vmatpush.msra.mxu0 %v1374
    %1407 = vmatpush.msra.mxu0 %v1372
    %1408 = vmatpush.msra.mxu0 %v1370
    %1409 = vmatpush.msra.mxu0 %v1368
    %1410 = vmatpush.msra.mxu0 %v1366
    %1411 = vmatpush.msra.mxu0 %v1364
    %1412 = vmatpush.msra.mxu0 %v1362
    %1413 = vmatmul.f32.gmra.mxu0 %v1288
    %v1414 = vpop.f32.mrf.mxu0
    %v1415 = vadd.f32 0.0, %v1414
    %1416 = vdwg.mxu0
    %v1418 = vsel %vm1104, %v1357, 0
    %1420 = vmatpush.msra.mxu0 0.0
    %1421 = vmatpush.msra.mxu0 0.0
    %1422 = vmatpush.msra.mxu0 0.0
    %1423 = vmatpush.msra.mxu0 0.0
    %1424 = vmatpush.msra.mxu0 0.0
    %1425 = vmatpush.msra.mxu0 0.0
    %1426 = vmatpush.msra.mxu0 0.0
    %1427 = vmatpush.msra.mxu0 0.0
    %1428 = vmatpush.msra.mxu0 0.0
    %1429 = vmatpush.msra.mxu0 0.0
    %1430 = vmatpush.msra.mxu0 0.0
    %1431 = vmatpush.msra.mxu0 0.0
    %1432 = vmatpush.msra.mxu0 0.0
    %1433 = vmatpush.msra.mxu0 0.0
    %1434 = vmatpush.msra.mxu0 0.0
    %1435 = vmatpush.msra.mxu0 %v1359
    %1436 = vmatmul.f32.gmra.mxu0 %v1418
    %v1437 = vpop.f32.mrf.mxu0
    %v1438 = vadd.f32 %v1395, %v1437
    %1439 = vdwg.mxu0
    %1440 = vmatpush.msra.mxu0 0.0
    %1441 = vmatpush.msra.mxu0 0.0
    %1442 = vmatpush.msra.mxu0 0.0
    %1443 = vmatpush.msra.mxu0 0.0
    %1444 = vmatpush.msra.mxu0 0.0
    %1445 = vmatpush.msra.mxu0 0.0
    %1446 = vmatpush.msra.mxu0 0.0
    %1447 = vmatpush.msra.mxu0 0.0
    %1448 = vmatpush.msra.mxu0 0.0
    %1449 = vmatpush.msra.mxu0 0.0
    %1450 = vmatpush.msra.mxu0 0.0
    %1451 = vmatpush.msra.mxu0 0.0
    %1452 = vmatpush.msra.mxu0 0.0
    %1453 = vmatpush.msra.mxu0 0.0
    %1454 = vmatpush.msra.mxu0 0.0
    %1455 = vmatpush.msra.mxu0 %v1360
    %1456 = vmatmul.f32.gmra.mxu0 %v1418
    %v1457 = vpop.f32.mrf.mxu0
    %v1458 = vadd.f32 %v1415, %v1457
    %1459 = vdwg.mxu0
    %v1460 = vld [vmem:[%s12] sm:$0x3]
    %v1462 = vperm.slane %v1460, 0
    %v1463 = vperm.slane %v1460, 1
    %v1466 = vadd.f32 %v1438, %v1462
    %v1467 = vadd.f32 %v1458, %v1463
    %v1468 = vmul.f32 %v1466, 0.5
    %v1469 = vtanh.pop %v1468
    %v1470 = vmul.f32 %v1469, 0.5
    %v1471 = vadd.f32 %v1470, 0.5
    %v1472 = vtanh.pop %v1467
    %v1473 = vmul.f32 %v1467, 0.5
    %v1474 = vtanh.pop %v1473
    %v1475 = vmul.f32 %v1474, 0.5
    %v1476 = vadd.f32 %v1475, 0.5
    %v1477 = vmul.f32 %v1471, %v1174
    %v1478 = vmul.f32 %v1471, %v1472
    %1480 = vrot.lane.b32.xlu0 %v1478, 64
    %v1481 = vpop.permute.xlu0 %1480
    %v1483 = vadd.f32 %v1477, %v1481
    %v1484 = vtanh.pop %v1483
    %v1485 = vmul.f32 %v1476, %v1484
    %v1486 = vld [vmem:[%s13] sm:$0x3]
    %1488 = vset.pattern.permute.xlu0 0
    %1489 = vperm.xlu0 %1488, %v1358
    %v1490 = vpop.permute.xlu0 %1489
    %v1493 = vperm.slane %v1486, 0
    %v1494 = vperm.slane %v1486, 1
    %v1497 = vmul.f32 %v1490, %v1493
    %v1498 = vmul.f32 %v1490, %v1494
    %v1499 = vld [vmem:[#allocation7] sm:$0xff]
    %v1500 = vld [vmem:[#allocation7 + $0x8] sm:$0xff]
    %v1501 = vld [vmem:[#allocation7 + $0x10] sm:$0xff]
    %v1502 = vld [vmem:[#allocation7 + $0x18] sm:$0xff]
    %v1503 = vld [vmem:[#allocation7 + $0x20] sm:$0xff]
    %v1504 = vld [vmem:[#allocation7 + $0x28] sm:$0xff]
    %v1505 = vld [vmem:[#allocation7 + $0x30] sm:$0xff]
    %v1506 = vld [vmem:[#allocation7 + $0x38] sm:$0xff]
    %v1507 = vld [vmem:[#allocation7 + $0x40] sm:$0xff]
    %v1508 = vld [vmem:[#allocation7 + $0x48] sm:$0xff]
    %v1509 = vld [vmem:[#allocation7 + $0x50] sm:$0xff]
    %v1510 = vld [vmem:[#allocation7 + $0x58] sm:$0xff]
    %v1511 = vld [vmem:[#allocation7 + $0x60] sm:$0xff]
    %v1512 = vld [vmem:[#allocation7 + $0x68] sm:$0xff]
    %v1513 = vld [vmem:[#allocation7 + $0x70] sm:$0xff]
    %v1514 = vld [vmem:[#allocation7 + $0x78] sm:$0xff]
    %1515 = vmatpush.msra.mxu0 0.0
    %1516 = vmatpush.msra.mxu0 0.0
    %1517 = vmatpush.msra.mxu0 0.0
    %1518 = vmatpush.msra.mxu0 0.0
    %1519 = vmatpush.msra.mxu0 0.0
    %1520 = vmatpush.msra.mxu0 0.0
    %1521 = vmatpush.msra.mxu0 0.0
    %1522 = vmatpush.msra.mxu0 0.0
    %1523 = vmatpush.msra.mxu0 %v1513
    %1524 = vmatpush.msra.mxu0 %v1511
    %1525 = vmatpush.msra.mxu0 %v1509
    %1526 = vmatpush.msra.mxu0 %v1507
    %1527 = vmatpush.msra.mxu0 %v1505
    %1528 = vmatpush.msra.mxu0 %v1503
    %1529 = vmatpush.msra.mxu0 %v1501
    %1530 = vmatpush.msra.mxu0 %v1499
    %1531 = vmatmul.f32.gmra.mxu0 %v1325
    %v1532 = vpop.f32.mrf.mxu0
    %v1533 = vadd.f32 0.0, %v1532
    %1534 = vdwg.mxu0
    %1535 = vmatpush.msra.mxu0 0.0
    %1536 = vmatpush.msra.mxu0 0.0
    %1537 = vmatpush.msra.mxu0 0.0
    %1538 = vmatpush.msra.mxu0 0.0
    %1539 = vmatpush.msra.mxu0 0.0
    %1540 = vmatpush.msra.mxu0 0.0
    %1541 = vmatpush.msra.mxu0 0.0
    %1542 = vmatpush.msra.mxu0 0.0
    %1543 = vmatpush.msra.mxu0 %v1514
    %1544 = vmatpush.msra.mxu0 %v1512
    %1545 = vmatpush.msra.mxu0 %v1510
    %1546 = vmatpush.msra.mxu0 %v1508
    %1547 = vmatpush.msra.mxu0 %v1506
    %1548 = vmatpush.msra.mxu0 %v1504
    %1549 = vmatpush.msra.mxu0 %v1502
    %1550 = vmatpush.msra.mxu0 %v1500
    %1551 = vmatmul.f32.gmra.mxu0 %v1325
    %v1552 = vpop.f32.mrf.mxu0
    %v1553 = vadd.f32 0.0, %v1552
    %1554 = vdwg.mxu0
    %v1555 = vadd.f32 %v1497, %v1533
    %v1556 = vadd.f32 %v1498, %v1553
    %v1557 = vld [vmem:[%s15] sm:$0x3]
    %v1559 = vperm.slane %v1557, 0
    %v1560 = vperm.slane %v1557, 1
    %v1563 = vadd.f32 %v1555, %v1559
    %v1564 = vadd.f32 %v1556, %v1560
    %v1565 = vmul.f32 %v1563, 0.5
    %v1566 = vtanh.pop %v1565
    %v1567 = vmul.f32 %v1566, 0.5
    %v1568 = vadd.f32 %v1567, 0.5
    %v1569 = vtanh.pop %v1564
    %v1570 = vmul.f32 %v1564, 0.5
    %v1571 = vtanh.pop %v1570
    %v1572 = vmul.f32 %v1571, 0.5
    %v1573 = vadd.f32 %v1572, 0.5
    %v1574 = vmul.f32 %v1568, %v1270
    %v1575 = vmul.f32 %v1568, %v1569
    %1577 = vrot.lane.b32.xlu0 %v1575, 64
    %v1578 = vpop.permute.xlu0 %1577
    %v1580 = vadd.f32 %v1574, %v1578
    %v1581 = vtanh.pop %v1580
    %v1582 = vmul.f32 %v1573, %v1581
    %v1583 = vld [vmem:[%s16] sm:$0xff]
    %v1584 = vld [vmem:[%s16 + $0x8] sm:$0xff]
    %v1585 = vld [vmem:[%s16 + $0x10] sm:$0xff]
    %v1586 = vld [vmem:[%s16 + $0x18] sm:$0xff]
    %v1587 = vld [vmem:[%s16 + $0x20] sm:$0xff]
    %v1588 = vld [vmem:[%s16 + $0x28] sm:$0xff]
    %v1589 = vld [vmem:[%s16 + $0x30] sm:$0xff]
    %v1590 = vld [vmem:[%s16 + $0x38] sm:$0xff]
    %v1591 = vld [vmem:[%s17] sm:$0x1]
    %v1593 = vperm.slane %v1591, 0
    %1596 = vrot.lane.b32.xlu0 %v1485, 64
    %v1597 = vpop.permute.xlu0 %1596
    %v1598 = vsel %vm1060, %v1597, 0
    %1600 = vmatpush.msra.mxu0 0.0
    %1601 = vmatpush.msra.mxu0 0.0
    %1602 = vmatpush.msra.mxu0 0.0
    %1603 = vmatpush.msra.mxu0 0.0
    %1604 = vmatpush.msra.mxu0 0.0
    %1605 = vmatpush.msra.mxu0 0.0
    %1606 = vmatpush.msra.mxu0 0.0
    %1607 = vmatpush.msra.mxu0 0.0
    %1608 = vmatpush.msra.mxu0 %v1590
    %1609 = vmatpush.msra.mxu0 %v1589
    %1610 = vmatpush.msra.mxu0 %v1588
    %1611 = vmatpush.msra.mxu0 %v1587
    %1612 = vmatpush.msra.mxu0 %v1586
    %1613 = vmatpush.msra.mxu0 %v1585
    %1614 = vmatpush.msra.mxu0 %v1584
    %1615 = vmatpush.msra.mxu0 %v1583
    %1616 = vmatmul.f32.gmra.mxu0 %v1598
    %v1617 = vpop.f32.mrf.mxu0
    %v1618 = vadd.f32 %v1593, %v1617
    %1619 = vdwg.mxu0
    %v1620 = vld [vmem:[%s18] sm:$0xff]
    %v1621 = vld [vmem:[%s18 + $0x8] sm:$0xff]
    %v1622 = vld [vmem:[%s18 + $0x10] sm:$0xff]
    %v1623 = vld [vmem:[%s18 + $0x18] sm:$0xff]
    %v1624 = vld [vmem:[%s18 + $0x20] sm:$0xff]
    %v1625 = vld [vmem:[%s18 + $0x28] sm:$0xff]
    %v1626 = vld [vmem:[%s18 + $0x30] sm:$0xff]
    %v1627 = vld [vmem:[%s18 + $0x38] sm:$0xff]
    %v1628 = vld [vmem:[%s19] sm:$0x1]
    %v1630 = vperm.slane %v1628, 0
    %1633 = vrot.lane.b32.xlu0 %v1582, 64
    %v1634 = vpop.permute.xlu0 %1633
    %v1635 = vsel %vm1060, %v1634, 0
    %1637 = vmatpush.msra.mxu0 0.0
    %1638 = vmatpush.msra.mxu0 0.0
    %1639 = vmatpush.msra.mxu0 0.0
    %1640 = vmatpush.msra.mxu0 0.0
    %1641 = vmatpush.msra.mxu0 0.0
    %1642 = vmatpush.msra.mxu0 0.0
    %1643 = vmatpush.msra.mxu0 0.0
    %1644 = vmatpush.msra.mxu0 0.0
    %1645 = vmatpush.msra.mxu0 %v1627
    %1646 = vmatpush.msra.mxu0 %v1626
    %1647 = vmatpush.msra.mxu0 %v1625
    %1648 = vmatpush.msra.mxu0 %v1624
    %1649 = vmatpush.msra.mxu0 %v1623
    %1650 = vmatpush.msra.mxu0 %v1622
    %1651 = vmatpush.msra.mxu0 %v1621
    %1652 = vmatpush.msra.mxu0 %v1620
    %1653 = vmatmul.f32.gmra.mxu0 %v1635
    %v1654 = vpop.f32.mrf.mxu0
    %v1655 = vadd.f32 %v1630, %v1654
    %1656 = vdwg.mxu0
    %s1657 = scalar_lea.vmem %s20, 8
    %1658 = vst [vmem:[%s1657] sm:$0xff] %v1618
    %s1659 = scalar_lea.vmem %s21, 8
    %1660 = vst [vmem:[%s1659] sm:$0xff] %v1655
    %s1661 = scalar_lea.vmem %s2, 8
    %v1662 = vld [vmem:[%s1661] sm:$0xff]
    %1663 = vset.pattern.permute.xlu0 0
    %1664 = vperm.xlu0 %1663, %v1662
    %v1665 = vpop.permute.xlu0 %1664
    %vm1666 = vcmp.eq.s32.totalorder %v1041, %v1665
    %vm1667 = vmand %vm1666, %vm1354
    %v1668 = vsel %vm1667, 1, 0
    %v1669 = vcvt.s32.f32 %v1668
    %s1670 = scalar_lea.vmem %s3, 8
    %v1671 = vld [vmem:[%s1670] sm:$0xff]
    %v1672 = vld [vmem:[#allocation4] sm:$0xff]
    %v1673 = vld [vmem:[#allocation4 + $0x8] sm:$0xff]
    %v1674 = vld [vmem:[#allocation6] sm:$0xff]
    %v1675 = vld [vmem:[#allocation6 + $0x8] sm:$0xff]
    %v1676 = vld [vmem:[#allocation6 + $0x10] sm:$0xff]
    %v1677 = vld [vmem:[#allocation6 + $0x18] sm:$0xff]
    %v1678 = vld [vmem:[#allocation6 + $0x20] sm:$0xff]
    %v1679 = vld [vmem:[#allocation6 + $0x28] sm:$0xff]
    %v1680 = vld [vmem:[#allocation6 + $0x30] sm:$0xff]
    %v1681 = vld [vmem:[#allocation6 + $0x38] sm:$0xff]
    %v1682 = vld [vmem:[#allocation6 + $0x40] sm:$0xff]
    %v1683 = vld [vmem:[#allocation6 + $0x48] sm:$0xff]
    %v1684 = vld [vmem:[#allocation6 + $0x50] sm:$0xff]
    %v1685 = vld [vmem:[#allocation6 + $0x58] sm:$0xff]
    %v1686 = vld [vmem:[#allocation6 + $0x60] sm:$0xff]
    %v1687 = vld [vmem:[#allocation6 + $0x68] sm:$0xff]
    %v1688 = vld [vmem:[#allocation6 + $0x70] sm:$0xff]
    %v1689 = vld [vmem:[#allocation6 + $0x78] sm:$0xff]
    %1690 = vmatpush.msra.mxu0 0.0
    %1691 = vmatpush.msra.mxu0 0.0
    %1692 = vmatpush.msra.mxu0 0.0
    %1693 = vmatpush.msra.mxu0 0.0
    %1694 = vmatpush.msra.mxu0 0.0
    %1695 = vmatpush.msra.mxu0 0.0
    %1696 = vmatpush.msra.mxu0 0.0
    %1697 = vmatpush.msra.mxu0 0.0
    %1698 = vmatpush.msra.mxu0 %v1688
    %1699 = vmatpush.msra.mxu0 %v1686
    %1700 = vmatpush.msra.mxu0 %v1684
    %1701 = vmatpush.msra.mxu0 %v1682
    %1702 = vmatpush.msra.mxu0 %v1680
    %1703 = vmatpush.msra.mxu0 %v1678
    %1704 = vmatpush.msra.mxu0 %v1676
    %1705 = vmatpush.msra.mxu0 %v1674
    %1706 = vmatmul.f32.gmra.mxu0 %v1598
    %v1707 = vpop.f32.mrf.mxu0
    %v1708 = vadd.f32 0.0, %v1707
    %1709 = vdwg.mxu0
    %1710 = vmatpush.msra.mxu0 0.0
    %1711 = vmatpush.msra.mxu0 0.0
    %1712 = vmatpush.msra.mxu0 0.0
    %1713 = vmatpush.msra.mxu0 0.0
    %1714 = vmatpush.msra.mxu0 0.0
    %1715 = vmatpush.msra.mxu0 0.0
    %1716 = vmatpush.msra.mxu0 0.0
    %1717 = vmatpush.msra.mxu0 0.0
    %1718 = vmatpush.msra.mxu0 %v1689
    %1719 = vmatpush.msra.mxu0 %v1687
    %1720 = vmatpush.msra.mxu0 %v1685
    %1721 = vmatpush.msra.mxu0 %v1683
    %1722 = vmatpush.msra.mxu0 %v1681
    %1723 = vmatpush.msra.mxu0 %v1679
    %1724 = vmatpush.msra.mxu0 %v1677
    %1725 = vmatpush.msra.mxu0 %v1675
    %1726 = vmatmul.f32.gmra.mxu0 %v1598
    %v1727 = vpop.f32.mrf.mxu0
    %v1728 = vadd.f32 0.0, %v1727
    %1729 = vdwg.mxu0
    %v1731 = vsel %vm1104, %v1669, 0
    %1733 = vmatpush.msra.mxu0 0.0
    %1734 = vmatpush.msra.mxu0 0.0
    %1735 = vmatpush.msra.mxu0 0.0
    %1736 = vmatpush.msra.mxu0 0.0
    %1737 = vmatpush.msra.mxu0 0.0
    %1738 = vmatpush.msra.mxu0 0.0
    %1739 = vmatpush.msra.mxu0 0.0
    %1740 = vmatpush.msra.mxu0 0.0
    %1741 = vmatpush.msra.mxu0 0.0
    %1742 = vmatpush.msra.mxu0 0.0
    %1743 = vmatpush.msra.mxu0 0.0
    %1744 = vmatpush.msra.mxu0 0.0
    %1745 = vmatpush.msra.mxu0 0.0
    %1746 = vmatpush.msra.mxu0 0.0
    %1747 = vmatpush.msra.mxu0 0.0
    %1748 = vmatpush.msra.mxu0 %v1672
    %1749 = vmatmul.f32.gmra.mxu0 %v1731
    %v1750 = vpop.f32.mrf.mxu0
    %v1751 = vadd.f32 %v1708, %v1750
    %1752 = vdwg.mxu0
    %1753 = vmatpush.msra.mxu0 0.0
    %1754 = vmatpush.msra.mxu0 0.0
    %1755 = vmatpush.msra.mxu0 0.0
    %1756 = vmatpush.msra.mxu0 0.0
    %1757 = vmatpush.msra.mxu0 0.0
    %1758 = vmatpush.msra.mxu0 0.0
    %1759 = vmatpush.msra.mxu0 0.0
    %1760 = vmatpush.msra.mxu0 0.0
    %1761 = vmatpush.msra.mxu0 0.0
    %1762 = vmatpush.msra.mxu0 0.0
    %1763 = vmatpush.msra.mxu0 0.0
    %1764 = vmatpush.msra.mxu0 0.0
    %1765 = vmatpush.msra.mxu0 0.0
    %1766 = vmatpush.msra.mxu0 0.0
    %1767 = vmatpush.msra.mxu0 0.0
    %1768 = vmatpush.msra.mxu0 %v1673
    %1769 = vmatmul.f32.gmra.mxu0 %v1731
    %v1770 = vpop.f32.mrf.mxu0
    %v1771 = vadd.f32 %v1728, %v1770
    %1772 = vdwg.mxu0
    %v1773 = vld [vmem:[%s12] sm:$0x3]
    %v1775 = vperm.slane %v1773, 0
    %v1776 = vperm.slane %v1773, 1
    %v1779 = vadd.f32 %v1751, %v1775
    %v1780 = vadd.f32 %v1771, %v1776
    %v1781 = vmul.f32 %v1779, 0.5
    %v1782 = vtanh.pop %v1781
    %v1783 = vmul.f32 %v1782, 0.5
    %v1784 = vadd.f32 %v1783, 0.5
    %v1785 = vtanh.pop %v1780
    %v1786 = vmul.f32 %v1780, 0.5
    %v1787 = vtanh.pop %v1786
    %v1788 = vmul.f32 %v1787, 0.5
    %v1789 = vadd.f32 %v1788, 0.5
    %v1790 = vmul.f32 %v1784, %v1483
    %v1791 = vmul.f32 %v1784, %v1785
    %1793 = vrot.lane.b32.xlu0 %v1791, 64
    %v1794 = vpop.permute.xlu0 %1793
    %v1796 = vadd.f32 %v1790, %v1794
    %v1797 = vtanh.pop %v1796
    %v1798 = vmul.f32 %v1789, %v1797
    %v1799 = vld [vmem:[%s13] sm:$0x3]
    %1801 = vset.pattern.permute.xlu0 0
    %1802 = vperm.xlu0 %1801, %v1671
    %v1803 = vpop.permute.xlu0 %1802
    %v1806 = vperm.slane %v1799, 0
    %v1807 = vperm.slane %v1799, 1
    %v1810 = vmul.f32 %v1803, %v1806
    %v1811 = vmul.f32 %v1803, %v1807
    %v1812 = vld [vmem:[#allocation7] sm:$0xff]
    %v1813 = vld [vmem:[#allocation7 + $0x8] sm:$0xff]
    %v1814 = vld [vmem:[#allocation7 + $0x10] sm:$0xff]
    %v1815 = vld [vmem:[#allocation7 + $0x18] sm:$0xff]
    %v1816 = vld [vmem:[#allocation7 + $0x20] sm:$0xff]
    %v1817 = vld [vmem:[#allocation7 + $0x28] sm:$0xff]
    %v1818 = vld [vmem:[#allocation7 + $0x30] sm:$0xff]
    %v1819 = vld [vmem:[#allocation7 + $0x38] sm:$0xff]
    %v1820 = vld [vmem:[#allocation7 + $0x40] sm:$0xff]
    %v1821 = vld [vmem:[#allocation7 + $0x48] sm:$0xff]
    %v1822 = vld [vmem:[#allocation7 + $0x50] sm:$0xff]
    %v1823 = vld [vmem:[#allocation7 + $0x58] sm:$0xff]
    %v1824 = vld [vmem:[#allocation7 + $0x60] sm:$0xff]
    %v1825 = vld [vmem:[#allocation7 + $0x68] sm:$0xff]
    %v1826 = vld [vmem:[#allocation7 + $0x70] sm:$0xff]
    %v1827 = vld [vmem:[#allocation7 + $0x78] sm:$0xff]
    %1828 = vmatpush.msra.mxu0 0.0
    %1829 = vmatpush.msra.mxu0 0.0
    %1830 = vmatpush.msra.mxu0 0.0
    %1831 = vmatpush.msra.mxu0 0.0
    %1832 = vmatpush.msra.mxu0 0.0
    %1833 = vmatpush.msra.mxu0 0.0
    %1834 = vmatpush.msra.mxu0 0.0
    %1835 = vmatpush.msra.mxu0 0.0
    %1836 = vmatpush.msra.mxu0 %v1826
    %1837 = vmatpush.msra.mxu0 %v1824
    %1838 = vmatpush.msra.mxu0 %v1822
    %1839 = vmatpush.msra.mxu0 %v1820
    %1840 = vmatpush.msra.mxu0 %v1818
    %1841 = vmatpush.msra.mxu0 %v1816
    %1842 = vmatpush.msra.mxu0 %v1814
    %1843 = vmatpush.msra.mxu0 %v1812
    %1844 = vmatmul.f32.gmra.mxu0 %v1635
    %v1845 = vpop.f32.mrf.mxu0
    %v1846 = vadd.f32 0.0, %v1845
    %1847 = vdwg.mxu0
    %1848 = vmatpush.msra.mxu0 0.0
    %1849 = vmatpush.msra.mxu0 0.0
    %1850 = vmatpush.msra.mxu0 0.0
    %1851 = vmatpush.msra.mxu0 0.0
    %1852 = vmatpush.msra.mxu0 0.0
    %1853 = vmatpush.msra.mxu0 0.0
    %1854 = vmatpush.msra.mxu0 0.0
    %1855 = vmatpush.msra.mxu0 0.0
    %1856 = vmatpush.msra.mxu0 %v1827
    %1857 = vmatpush.msra.mxu0 %v1825
    %1858 = vmatpush.msra.mxu0 %v1823
    %1859 = vmatpush.msra.mxu0 %v1821
    %1860 = vmatpush.msra.mxu0 %v1819
    %1861 = vmatpush.msra.mxu0 %v1817
    %1862 = vmatpush.msra.mxu0 %v1815
    %1863 = vmatpush.msra.mxu0 %v1813
    %1864 = vmatmul.f32.gmra.mxu0 %v1635
    %v1865 = vpop.f32.mrf.mxu0
    %v1866 = vadd.f32 0.0, %v1865
    %1867 = vdwg.mxu0
    %v1868 = vadd.f32 %v1810, %v1846
    %v1869 = vadd.f32 %v1811, %v1866
    %v1870 = vld [vmem:[%s15] sm:$0x3]
    %v1872 = vperm.slane %v1870, 0
    %v1873 = vperm.slane %v1870, 1
    %v1876 = vadd.f32 %v1868, %v1872
    %v1877 = vadd.f32 %v1869, %v1873
    %v1878 = vmul.f32 %v1876, 0.5
    %v1879 = vtanh.pop %v1878
    %v1880 = vmul.f32 %v1879, 0.5
    %v1881 = vadd.f32 %v1880, 0.5
    %v1882 = vtanh.pop %v1877
    %v1883 = vmul.f32 %v1877, 0.5
    %v1884 = vtanh.pop %v1883
    %v1885 = vmul.f32 %v1884, 0.5
    %v1886 = vadd.f32 %v1885, 0.5
    %v1887 = vmul.f32 %v1881, %v1580
    %v1888 = vmul.f32 %v1881, %v1882
    %1890 = vrot.lane.b32.xlu0 %v1888, 64
    %v1891 = vpop.permute.xlu0 %1890
    %v1893 = vadd.f32 %v1887, %v1891
    %v1894 = vtanh.pop %v1893
    %v1895 = vmul.f32 %v1886, %v1894
    %v1896 = vld [vmem:[%s16] sm:$0xff]
    %v1897 = vld [vmem:[%s16 + $0x8] sm:$0xff]
    %v1898 = vld [vmem:[%s16 + $0x10] sm:$0xff]
    %v1899 = vld [vmem:[%s16 + $0x18] sm:$0xff]
    %v1900 = vld [vmem:[%s16 + $0x20] sm:$0xff]
    %v1901 = vld [vmem:[%s16 + $0x28] sm:$0xff]
    %v1902 = vld [vmem:[%s16 + $0x30] sm:$0xff]
    %v1903 = vld [vmem:[%s16 + $0x38] sm:$0xff]
    %v1904 = vld [vmem:[%s17] sm:$0x1]
    %v1906 = vperm.slane %v1904, 0
    %1909 = vrot.lane.b32.xlu0 %v1798, 64
    %v1910 = vpop.permute.xlu0 %1909
    %v1911 = vsel %vm1060, %v1910, 0
    %1913 = vmatpush.msra.mxu0 0.0
    %1914 = vmatpush.msra.mxu0 0.0
    %1915 = vmatpush.msra.mxu0 0.0
    %1916 = vmatpush.msra.mxu0 0.0
    %1917 = vmatpush.msra.mxu0 0.0
    %1918 = vmatpush.msra.mxu0 0.0
    %1919 = vmatpush.msra.mxu0 0.0
    %1920 = vmatpush.msra.mxu0 0.0
    %1921 = vmatpush.msra.mxu0 %v1903
    %1922 = vmatpush.msra.mxu0 %v1902
    %1923 = vmatpush.msra.mxu0 %v1901
    %1924 = vmatpush.msra.mxu0 %v1900
    %1925 = vmatpush.msra.mxu0 %v1899
    %1926 = vmatpush.msra.mxu0 %v1898
    %1927 = vmatpush.msra.mxu0 %v1897
    %1928 = vmatpush.msra.mxu0 %v1896
    %1929 = vmatmul.f32.gmra.mxu0 %v1911
    %v1930 = vpop.f32.mrf.mxu0
    %v1931 = vadd.f32 %v1906, %v1930
    %1932 = vdwg.mxu0
    %v1933 = vld [vmem:[%s18] sm:$0xff]
    %v1934 = vld [vmem:[%s18 + $0x8] sm:$0xff]
    %v1935 = vld [vmem:[%s18 + $0x10] sm:$0xff]
    %v1936 = vld [vmem:[%s18 + $0x18] sm:$0xff]
    %v1937 = vld [vmem:[%s18 + $0x20] sm:$0xff]
    %v1938 = vld [vmem:[%s18 + $0x28] sm:$0xff]
    %v1939 = vld [vmem:[%s18 + $0x30] sm:$0xff]
    %v1940 = vld [vmem:[%s18 + $0x38] sm:$0xff]
    %v1941 = vld [vmem:[%s19] sm:$0x1]
    %v1943 = vperm.slane %v1941, 0
    %1946 = vrot.lane.b32.xlu0 %v1895, 64
    %v1947 = vpop.permute.xlu0 %1946
    %v1948 = vsel %vm1060, %v1947, 0
    %1950 = vmatpush.msra.mxu0 0.0
    %1951 = vmatpush.msra.mxu0 0.0
    %1952 = vmatpush.msra.mxu0 0.0
    %1953 = vmatpush.msra.mxu0 0.0
    %1954 = vmatpush.msra.mxu0 0.0
    %1955 = vmatpush.msra.mxu0 0.0
    %1956 = vmatpush.msra.mxu0 0.0
    %1957 = vmatpush.msra.mxu0 0.0
    %1958 = vmatpush.msra.mxu0 %v1940
    %1959 = vmatpush.msra.mxu0 %v1939
    %1960 = vmatpush.msra.mxu0 %v1938
    %1961 = vmatpush.msra.mxu0 %v1937
    %1962 = vmatpush.msra.mxu0 %v1936
    %1963 = vmatpush.msra.mxu0 %v1935
    %1964 = vmatpush.msra.mxu0 %v1934
    %1965 = vmatpush.msra.mxu0 %v1933
    %1966 = vmatmul.f32.gmra.mxu0 %v1948
    %v1967 = vpop.f32.mrf.mxu0
    %v1968 = vadd.f32 %v1943, %v1967
    %1969 = vdwg.mxu0
    %s1970 = scalar_lea.vmem %s20, 16
    %1971 = vst [vmem:[%s1970] sm:$0xff] %v1931
    %s1972 = scalar_lea.vmem %s21, 16
    %1973 = vst [vmem:[%s1972] sm:$0xff] %v1968
    %s1974 = scalar_lea.vmem %s2, 16
    %v1975 = vld [vmem:[%s1974] sm:$0xff]
    %1976 = vset.pattern.permute.xlu0 0
    %1977 = vperm.xlu0 %1976, %v1975
    %v1978 = vpop.permute.xlu0 %1977
    %vm1979 = vcmp.eq.s32.totalorder %v1041, %v1978
    %vm1980 = vmand %vm1979, %vm1354
    %v1981 = vsel %vm1980, 1, 0
    %v1982 = vcvt.s32.f32 %v1981
    %s1983 = scalar_lea.vmem %s3, 16
    %v1984 = vld [vmem:[%s1983] sm:$0xff]
    %v1985 = vld [vmem:[#allocation4] sm:$0xff]
    %v1986 = vld [vmem:[#allocation4 + $0x8] sm:$0xff]
    %v1987 = vld [vmem:[#allocation6] sm:$0xff]
    %v1988 = vld [vmem:[#allocation6 + $0x8] sm:$0xff]
    %v1989 = vld [vmem:[#allocation6 + $0x10] sm:$0xff]
    %v1990 = vld [vmem:[#allocation6 + $0x18] sm:$0xff]
    %v1991 = vld [vmem:[#allocation6 + $0x20] sm:$0xff]
    %v1992 = vld [vmem:[#allocation6 + $0x28] sm:$0xff]
    %v1993 = vld [vmem:[#allocation6 + $0x30] sm:$0xff]
    %v1994 = vld [vmem:[#allocation6 + $0x38] sm:$0xff]
    %v1995 = vld [vmem:[#allocation6 + $0x40] sm:$0xff]
    %v1996 = vld [vmem:[#allocation6 + $0x48] sm:$0xff]
    %v1997 = vld [vmem:[#allocation6 + $0x50] sm:$0xff]
    %v1998 = vld [vmem:[#allocation6 + $0x58] sm:$0xff]
    %v1999 = vld [vmem:[#allocation6 + $0x60] sm:$0xff]
    %v2000 = vld [vmem:[#allocation6 + $0x68] sm:$0xff]
    %v2001 = vld [vmem:[#allocation6 + $0x70] sm:$0xff]
    %v2002 = vld [vmem:[#allocation6 + $0x78] sm:$0xff]
    %2003 = vmatpush.msra.mxu0 0.0
    %2004 = vmatpush.msra.mxu0 0.0
    %2005 = vmatpush.msra.mxu0 0.0
    %2006 = vmatpush.msra.mxu0 0.0
    %2007 = vmatpush.msra.mxu0 0.0
    %2008 = vmatpush.msra.mxu0 0.0
    %2009 = vmatpush.msra.mxu0 0.0
    %2010 = vmatpush.msra.mxu0 0.0
    %2011 = vmatpush.msra.mxu0 %v2001
    %2012 = vmatpush.msra.mxu0 %v1999
    %2013 = vmatpush.msra.mxu0 %v1997
    %2014 = vmatpush.msra.mxu0 %v1995
    %2015 = vmatpush.msra.mxu0 %v1993
    %2016 = vmatpush.msra.mxu0 %v1991
    %2017 = vmatpush.msra.mxu0 %v1989
    %2018 = vmatpush.msra.mxu0 %v1987
    %2019 = vmatmul.f32.gmra.mxu0 %v1911
    %v2020 = vpop.f32.mrf.mxu0
    %v2021 = vadd.f32 0.0, %v2020
    %2022 = vdwg.mxu0
    %2023 = vmatpush.msra.mxu0 0.0
    %2024 = vmatpush.msra.mxu0 0.0
    %2025 = vmatpush.msra.mxu0 0.0
    %2026 = vmatpush.msra.mxu0 0.0
    %2027 = vmatpush.msra.mxu0 0.0
    %2028 = vmatpush.msra.mxu0 0.0
    %2029 = vmatpush.msra.mxu0 0.0
    %2030 = vmatpush.msra.mxu0 0.0
    %2031 = vmatpush.msra.mxu0 %v2002
    %2032 = vmatpush.msra.mxu0 %v2000
    %2033 = vmatpush.msra.mxu0 %v1998
    %2034 = vmatpush.msra.mxu0 %v1996
    %2035 = vmatpush.msra.mxu0 %v1994
    %2036 = vmatpush.msra.mxu0 %v1992
    %2037 = vmatpush.msra.mxu0 %v1990
    %2038 = vmatpush.msra.mxu0 %v1988
    %2039 = vmatmul.f32.gmra.mxu0 %v1911
    %v2040 = vpop.f32.mrf.mxu0
    %v2041 = vadd.f32 0.0, %v2040
    %2042 = vdwg.mxu0
    %v2044 = vsel %vm1104, %v1982, 0
    %2046 = vmatpush.msra.mxu0 0.0
    %2047 = vmatpush.msra.mxu0 0.0
    %2048 = vmatpush.msra.mxu0 0.0
    %2049 = vmatpush.msra.mxu0 0.0
    %2050 = vmatpush.msra.mxu0 0.0
    %2051 = vmatpush.msra.mxu0 0.0
    %2052 = vmatpush.msra.mxu0 0.0
    %2053 = vmatpush.msra.mxu0 0.0
    %2054 = vmatpush.msra.mxu0 0.0
    %2055 = vmatpush.msra.mxu0 0.0
    %2056 = vmatpush.msra.mxu0 0.0
    %2057 = vmatpush.msra.mxu0 0.0
    %2058 = vmatpush.msra.mxu0 0.0
    %2059 = vmatpush.msra.mxu0 0.0
    %2060 = vmatpush.msra.mxu0 0.0
    %2061 = vmatpush.msra.mxu0 %v1985
    %2062 = vmatmul.f32.gmra.mxu0 %v2044
    %v2063 = vpop.f32.mrf.mxu0
    %v2064 = vadd.f32 %v2021, %v2063
    %2065 = vdwg.mxu0
    %2066 = vmatpush.msra.mxu0 0.0
    %2067 = vmatpush.msra.mxu0 0.0
    %2068 = vmatpush.msra.mxu0 0.0
    %2069 = vmatpush.msra.mxu0 0.0
    %2070 = vmatpush.msra.mxu0 0.0
    %2071 = vmatpush.msra.mxu0 0.0
    %2072 = vmatpush.msra.mxu0 0.0
    %2073 = vmatpush.msra.mxu0 0.0
    %2074 = vmatpush.msra.mxu0 0.0
    %2075 = vmatpush.msra.mxu0 0.0
    %2076 = vmatpush.msra.mxu0 0.0
    %2077 = vmatpush.msra.mxu0 0.0
    %2078 = vmatpush.msra.mxu0 0.0
    %2079 = vmatpush.msra.mxu0 0.0
    %2080 = vmatpush.msra.mxu0 0.0
    %2081 = vmatpush.msra.mxu0 %v1986
    %2082 = vmatmul.f32.gmra.mxu0 %v2044
    %v2083 = vpop.f32.mrf.mxu0
    %v2084 = vadd.f32 %v2041, %v2083
    %2085 = vdwg.mxu0
    %v2086 = vld [vmem:[%s12] sm:$0x3]
    %v2088 = vperm.slane %v2086, 0
    %v2089 = vperm.slane %v2086, 1
    %v2092 = vadd.f32 %v2064, %v2088
    %v2093 = vadd.f32 %v2084, %v2089
    %v2094 = vmul.f32 %v2092, 0.5
    %v2095 = vtanh.pop %v2094
    %v2096 = vmul.f32 %v2095, 0.5
    %v2097 = vadd.f32 %v2096, 0.5
    %v2098 = vtanh.pop %v2093
    %v2099 = vmul.f32 %v2093, 0.5
    %v2100 = vtanh.pop %v2099
    %v2101 = vmul.f32 %v2100, 0.5
    %v2102 = vadd.f32 %v2101, 0.5
    %v2103 = vmul.f32 %v2097, %v1796
    %v2104 = vmul.f32 %v2097, %v2098
    %2106 = vrot.lane.b32.xlu0 %v2104, 64
    %v2107 = vpop.permute.xlu0 %2106
    %v2109 = vadd.f32 %v2103, %v2107
    %v2110 = vtanh.pop %v2109
    %v2111 = vmul.f32 %v2102, %v2110
    %v2112 = vld [vmem:[%s13] sm:$0x3]
    %2114 = vset.pattern.permute.xlu0 0
    %2115 = vperm.xlu0 %2114, %v1984
    %v2116 = vpop.permute.xlu0 %2115
    %v2119 = vperm.slane %v2112, 0
    %v2120 = vperm.slane %v2112, 1
    %v2123 = vmul.f32 %v2116, %v2119
    %v2124 = vmul.f32 %v2116, %v2120
    %v2125 = vld [vmem:[#allocation7] sm:$0xff]
    %v2126 = vld [vmem:[#allocation7 + $0x8] sm:$0xff]
    %v2127 = vld [vmem:[#allocation7 + $0x10] sm:$0xff]
    %v2128 = vld [vmem:[#allocation7 + $0x18] sm:$0xff]
    %v2129 = vld [vmem:[#allocation7 + $0x20] sm:$0xff]
    %v2130 = vld [vmem:[#allocation7 + $0x28] sm:$0xff]
    %v2131 = vld [vmem:[#allocation7 + $0x30] sm:$0xff]
    %v2132 = vld [vmem:[#allocation7 + $0x38] sm:$0xff]
    %v2133 = vld [vmem:[#allocation7 + $0x40] sm:$0xff]
    %v2134 = vld [vmem:[#allocation7 + $0x48] sm:$0xff]
    %v2135 = vld [vmem:[#allocation7 + $0x50] sm:$0xff]
    %v2136 = vld [vmem:[#allocation7 + $0x58] sm:$0xff]
    %v2137 = vld [vmem:[#allocation7 + $0x60] sm:$0xff]
    %v2138 = vld [vmem:[#allocation7 + $0x68] sm:$0xff]
    %v2139 = vld [vmem:[#allocation7 + $0x70] sm:$0xff]
    %v2140 = vld [vmem:[#allocation7 + $0x78] sm:$0xff]
    %2141 = vmatpush.msra.mxu0 0.0
    %2142 = vmatpush.msra.mxu0 0.0
    %2143 = vmatpush.msra.mxu0 0.0
    %2144 = vmatpush.msra.mxu0 0.0
    %2145 = vmatpush.msra.mxu0 0.0
    %2146 = vmatpush.msra.mxu0 0.0
    %2147 = vmatpush.msra.mxu0 0.0
    %2148 = vmatpush.msra.mxu0 0.0
    %2149 = vmatpush.msra.mxu0 %v2139
    %2150 = vmatpush.msra.mxu0 %v2137
    %2151 = vmatpush.msra.mxu0 %v2135
    %2152 = vmatpush.msra.mxu0 %v2133
    %2153 = vmatpush.msra.mxu0 %v2131
    %2154 = vmatpush.msra.mxu0 %v2129
    %2155 = vmatpush.msra.mxu0 %v2127
    %2156 = vmatpush.msra.mxu0 %v2125
    %2157 = vmatmul.f32.gmra.mxu0 %v1948
    %v2158 = vpop.f32.mrf.mxu0
    %v2159 = vadd.f32 0.0, %v2158
    %2160 = vdwg.mxu0
    %2161 = vmatpush.msra.mxu0 0.0
    %2162 = vmatpush.msra.mxu0 0.0
    %2163 = vmatpush.msra.mxu0 0.0
    %2164 = vmatpush.msra.mxu0 0.0
    %2165 = vmatpush.msra.mxu0 0.0
    %2166 = vmatpush.msra.mxu0 0.0
    %2167 = vmatpush.msra.mxu0 0.0
    %2168 = vmatpush.msra.mxu0 0.0
    %2169 = vmatpush.msra.mxu0 %v2140
    %2170 = vmatpush.msra.mxu0 %v2138
    %2171 = vmatpush.msra.mxu0 %v2136
    %2172 = vmatpush.msra.mxu0 %v2134
    %2173 = vmatpush.msra.mxu0 %v2132
    %2174 = vmatpush.msra.mxu0 %v2130
    %2175 = vmatpush.msra.mxu0 %v2128
    %2176 = vmatpush.msra.mxu0 %v2126
    %2177 = vmatmul.f32.gmra.mxu0 %v1948
    %v2178 = vpop.f32.mrf.mxu0
    %v2179 = vadd.f32 0.0, %v2178
    %2180 = vdwg.mxu0
    %v2181 = vadd.f32 %v2123, %v2159
    %v2182 = vadd.f32 %v2124, %v2179
    %v2183 = vld [vmem:[%s15] sm:$0x3]
    %v2185 = vperm.slane %v2183, 0
    %v2186 = vperm.slane %v2183, 1
    %v2189 = vadd.f32 %v2181, %v2185
    %v2190 = vadd.f32 %v2182, %v2186
    %v2191 = vmul.f32 %v2189, 0.5
    %v2192 = vtanh.pop %v2191
    %v2193 = vmul.f32 %v2192, 0.5
    %v2194 = vadd.f32 %v2193, 0.5
    %v2195 = vtanh.pop %v2190
    %v2196 = vmul.f32 %v2190, 0.5
    %v2197 = vtanh.pop %v2196
    %v2198 = vmul.f32 %v2197, 0.5
    %v2199 = vadd.f32 %v2198, 0.5
    %v2200 = vmul.f32 %v2194, %v1893
    %v2201 = vmul.f32 %v2194, %v2195
    %2203 = vrot.lane.b32.xlu0 %v2201, 64
    %v2204 = vpop.permute.xlu0 %2203
    %v2206 = vadd.f32 %v2200, %v2204
    %v2207 = vtanh.pop %v2206
    %v2208 = vmul.f32 %v2199, %v2207
    %v2209 = vld [vmem:[%s16] sm:$0xff]
    %v2210 = vld [vmem:[%s16 + $0x8] sm:$0xff]
    %v2211 = vld [vmem:[%s16 + $0x10] sm:$0xff]
    %v2212 = vld [vmem:[%s16 + $0x18] sm:$0xff]
    %v2213 = vld [vmem:[%s16 + $0x20] sm:$0xff]
    %v2214 = vld [vmem:[%s16 + $0x28] sm:$0xff]
    %v2215 = vld [vmem:[%s16 + $0x30] sm:$0xff]
    %v2216 = vld [vmem:[%s16 + $0x38] sm:$0xff]
    %v2217 = vld [vmem:[%s17] sm:$0x1]
    %v2219 = vperm.slane %v2217, 0
    %2222 = vrot.lane.b32.xlu0 %v2111, 64
    %v2223 = vpop.permute.xlu0 %2222
    %v2224 = vsel %vm1060, %v2223, 0
    %2226 = vmatpush.msra.mxu0 0.0
    %2227 = vmatpush.msra.mxu0 0.0
    %2228 = vmatpush.msra.mxu0 0.0
    %2229 = vmatpush.msra.mxu0 0.0
    %2230 = vmatpush.msra.mxu0 0.0
    %2231 = vmatpush.msra.mxu0 0.0
    %2232 = vmatpush.msra.mxu0 0.0
    %2233 = vmatpush.msra.mxu0 0.0
    %2234 = vmatpush.msra.mxu0 %v2216
    %2235 = vmatpush.msra.mxu0 %v2215
    %2236 = vmatpush.msra.mxu0 %v2214
    %2237 = vmatpush.msra.mxu0 %v2213
    %2238 = vmatpush.msra.mxu0 %v2212
    %2239 = vmatpush.msra.mxu0 %v2211
    %2240 = vmatpush.msra.mxu0 %v2210
    %2241 = vmatpush.msra.mxu0 %v2209
    %2242 = vmatmul.f32.gmra.mxu0 %v2224
    %v2243 = vpop.f32.mrf.mxu0
    %v2244 = vadd.f32 %v2219, %v2243
    %2245 = vdwg.mxu0
    %v2246 = vld [vmem:[%s18] sm:$0xff]
    %v2247 = vld [vmem:[%s18 + $0x8] sm:$0xff]
    %v2248 = vld [vmem:[%s18 + $0x10] sm:$0xff]
    %v2249 = vld [vmem:[%s18 + $0x18] sm:$0xff]
    %v2250 = vld [vmem:[%s18 + $0x20] sm:$0xff]
    %v2251 = vld [vmem:[%s18 + $0x28] sm:$0xff]
    %v2252 = vld [vmem:[%s18 + $0x30] sm:$0xff]
    %v2253 = vld [vmem:[%s18 + $0x38] sm:$0xff]
    %v2254 = vld [vmem:[%s19] sm:$0x1]
    %v2256 = vperm.slane %v2254, 0
    %2259 = vrot.lane.b32.xlu0 %v2208, 64
    %v2260 = vpop.permute.xlu0 %2259
    %v2261 = vsel %vm1060, %v2260, 0
    %2263 = vmatpush.msra.mxu0 0.0
    %2264 = vmatpush.msra.mxu0 0.0
    %2265 = vmatpush.msra.mxu0 0.0
    %2266 = vmatpush.msra.mxu0 0.0
    %2267 = vmatpush.msra.mxu0 0.0
    %2268 = vmatpush.msra.mxu0 0.0
    %2269 = vmatpush.msra.mxu0 0.0
    %2270 = vmatpush.msra.mxu0 0.0
    %2271 = vmatpush.msra.mxu0 %v2253
    %2272 = vmatpush.msra.mxu0 %v2252
    %2273 = vmatpush.msra.mxu0 %v2251
    %2274 = vmatpush.msra.mxu0 %v2250
    %2275 = vmatpush.msra.mxu0 %v2249
    %2276 = vmatpush.msra.mxu0 %v2248
    %2277 = vmatpush.msra.mxu0 %v2247
    %2278 = vmatpush.msra.mxu0 %v2246
    %2279 = vmatmul.f32.gmra.mxu0 %v2261
    %v2280 = vpop.f32.mrf.mxu0
    %v2281 = vadd.f32 %v2256, %v2280
    %2282 = vdwg.mxu0
    %s2283 = scalar_lea.vmem %s20, 24
    %2284 = vst [vmem:[%s2283] sm:$0xff] %v2244
    %s2285 = scalar_lea.vmem %s21, 24
    %2286 = vst [vmem:[%s2285] sm:$0xff] %v2281
    %s2287 = scalar_lea.vmem %s2, 24
    %v2288 = vld [vmem:[%s2287] sm:$0xff]
    %2289 = vset.pattern.permute.xlu0 0
    %2290 = vperm.xlu0 %2289, %v2288
    %v2291 = vpop.permute.xlu0 %2290
    %vm2292 = vcmp.eq.s32.totalorder %v1041, %v2291
    %vm2293 = vmand %vm2292, %vm1354
    %v2294 = vsel %vm2293, 1, 0
    %v2295 = vcvt.s32.f32 %v2294
    %s2296 = scalar_lea.vmem %s3, 24
    %v2297 = vld [vmem:[%s2296] sm:$0xff]
    %v2298 = vld [vmem:[#allocation4] sm:$0xff]
    %v2299 = vld [vmem:[#allocation4 + $0x8] sm:$0xff]
    %v2300 = vld [vmem:[#allocation6] sm:$0xff]
    %v2301 = vld [vmem:[#allocation6 + $0x8] sm:$0xff]
    %v2302 = vld [vmem:[#allocation6 + $0x10] sm:$0xff]
    %v2303 = vld [vmem:[#allocation6 + $0x18] sm:$0xff]
    %v2304 = vld [vmem:[#allocation6 + $0x20] sm:$0xff]
    %v2305 = vld [vmem:[#allocation6 + $0x28] sm:$0xff]
    %v2306 = vld [vmem:[#allocation6 + $0x30] sm:$0xff]
    %v2307 = vld [vmem:[#allocation6 + $0x38] sm:$0xff]
    %v2308 = vld [vmem:[#allocation6 + $0x40] sm:$0xff]
    %v2309 = vld [vmem:[#allocation6 + $0x48] sm:$0xff]
    %v2310 = vld [vmem:[#allocation6 + $0x50] sm:$0xff]
    %v2311 = vld [vmem:[#allocation6 + $0x58] sm:$0xff]
    %v2312 = vld [vmem:[#allocation6 + $0x60] sm:$0xff]
    %v2313 = vld [vmem:[#allocation6 + $0x68] sm:$0xff]
    %v2314 = vld [vmem:[#allocation6 + $0x70] sm:$0xff]
    %v2315 = vld [vmem:[#allocation6 + $0x78] sm:$0xff]
    %2316 = vmatpush.msra.mxu0 0.0
    %2317 = vmatpush.msra.mxu0 0.0
    %2318 = vmatpush.msra.mxu0 0.0
    %2319 = vmatpush.msra.mxu0 0.0
    %2320 = vmatpush.msra.mxu0 0.0
    %2321 = vmatpush.msra.mxu0 0.0
    %2322 = vmatpush.msra.mxu0 0.0
    %2323 = vmatpush.msra.mxu0 0.0
    %2324 = vmatpush.msra.mxu0 %v2314
    %2325 = vmatpush.msra.mxu0 %v2312
    %2326 = vmatpush.msra.mxu0 %v2310
    %2327 = vmatpush.msra.mxu0 %v2308
    %2328 = vmatpush.msra.mxu0 %v2306
    %2329 = vmatpush.msra.mxu0 %v2304
    %2330 = vmatpush.msra.mxu0 %v2302
    %2331 = vmatpush.msra.mxu0 %v2300
    %2332 = vmatmul.f32.gmra.mxu0 %v2224
    %v2333 = vpop.f32.mrf.mxu0
    %v2334 = vadd.f32 0.0, %v2333
    %2335 = vdwg.mxu0
    %2336 = vmatpush.msra.mxu0 0.0
    %2337 = vmatpush.msra.mxu0 0.0
    %2338 = vmatpush.msra.mxu0 0.0
    %2339 = vmatpush.msra.mxu0 0.0
    %2340 = vmatpush.msra.mxu0 0.0
    %2341 = vmatpush.msra.mxu0 0.0
    %2342 = vmatpush.msra.mxu0 0.0
    %2343 = vmatpush.msra.mxu0 0.0
    %2344 = vmatpush.msra.mxu0 %v2315
    %2345 = vmatpush.msra.mxu0 %v2313
    %2346 = vmatpush.msra.mxu0 %v2311
    %2347 = vmatpush.msra.mxu0 %v2309
    %2348 = vmatpush.msra.mxu0 %v2307
    %2349 = vmatpush.msra.mxu0 %v2305
    %2350 = vmatpush.msra.mxu0 %v2303
    %2351 = vmatpush.msra.mxu0 %v2301
    %2352 = vmatmul.f32.gmra.mxu0 %v2224
    %v2353 = vpop.f32.mrf.mxu0
    %v2354 = vadd.f32 0.0, %v2353
    %2355 = vdwg.mxu0
    %v2357 = vsel %vm1104, %v2295, 0
    %2359 = vmatpush.msra.mxu0 0.0
    %2360 = vmatpush.msra.mxu0 0.0
    %2361 = vmatpush.msra.mxu0 0.0
    %2362 = vmatpush.msra.mxu0 0.0
    %2363 = vmatpush.msra.mxu0 0.0
    %2364 = vmatpush.msra.mxu0 0.0
    %2365 = vmatpush.msra.mxu0 0.0
    %2366 = vmatpush.msra.mxu0 0.0
    %2367 = vmatpush.msra.mxu0 0.0
    %2368 = vmatpush.msra.mxu0 0.0
    %2369 = vmatpush.msra.mxu0 0.0
    %2370 = vmatpush.msra.mxu0 0.0
    %2371 = vmatpush.msra.mxu0 0.0
    %2372 = vmatpush.msra.mxu0 0.0
    %2373 = vmatpush.msra.mxu0 0.0
    %2374 = vmatpush.msra.mxu0 %v2298
    %2375 = vmatmul.f32.gmra.mxu0 %v2357
    %v2376 = vpop.f32.mrf.mxu0
    %v2377 = vadd.f32 %v2334, %v2376
    %2378 = vdwg.mxu0
    %2379 = vmatpush.msra.mxu0 0.0
    %2380 = vmatpush.msra.mxu0 0.0
    %2381 = vmatpush.msra.mxu0 0.0
    %2382 = vmatpush.msra.mxu0 0.0
    %2383 = vmatpush.msra.mxu0 0.0
    %2384 = vmatpush.msra.mxu0 0.0
    %2385 = vmatpush.msra.mxu0 0.0
    %2386 = vmatpush.msra.mxu0 0.0
    %2387 = vmatpush.msra.mxu0 0.0
    %2388 = vmatpush.msra.mxu0 0.0
    %2389 = vmatpush.msra.mxu0 0.0
    %2390 = vmatpush.msra.mxu0 0.0
    %2391 = vmatpush.msra.mxu0 0.0
    %2392 = vmatpush.msra.mxu0 0.0
    %2393 = vmatpush.msra.mxu0 0.0
    %2394 = vmatpush.msra.mxu0 %v2299
    %2395 = vmatmul.f32.gmra.mxu0 %v2357
    %v2396 = vpop.f32.mrf.mxu0
    %v2397 = vadd.f32 %v2354, %v2396
    %2398 = vdwg.mxu0
    %v2399 = vld [vmem:[%s12] sm:$0x3]
    %v2401 = vperm.slane %v2399, 0
    %v2402 = vperm.slane %v2399, 1
    %v2405 = vadd.f32 %v2377, %v2401
    %v2406 = vadd.f32 %v2397, %v2402
    %v2407 = vmul.f32 %v2405, 0.5
    %v2408 = vtanh.pop %v2407
    %v2409 = vmul.f32 %v2408, 0.5
    %v2410 = vadd.f32 %v2409, 0.5
    %v2411 = vtanh.pop %v2406
    %v2412 = vmul.f32 %v2406, 0.5
    %v2413 = vtanh.pop %v2412
    %v2414 = vmul.f32 %v2413, 0.5
    %v2415 = vadd.f32 %v2414, 0.5
    %v2416 = vmul.f32 %v2410, %v2109
    %v2417 = vmul.f32 %v2410, %v2411
    %2419 = vrot.lane.b32.xlu0 %v2417, 64
    %v2420 = vpop.permute.xlu0 %2419
    %v2422 = vadd.f32 %v2416, %v2420
    %v2423 = vtanh.pop %v2422
    %v2424 = vmul.f32 %v2415, %v2423
    %v2425 = vld [vmem:[%s13] sm:$0x3]
    %2427 = vset.pattern.permute.xlu0 0
    %2428 = vperm.xlu0 %2427, %v2297
    %v2429 = vpop.permute.xlu0 %2428
    %v2432 = vperm.slane %v2425, 0
    %v2433 = vperm.slane %v2425, 1
    %v2436 = vmul.f32 %v2429, %v2432
    %v2437 = vmul.f32 %v2429, %v2433
    %v2438 = vld [vmem:[#allocation7] sm:$0xff]
    %v2439 = vld [vmem:[#allocation7 + $0x8] sm:$0xff]
    %v2440 = vld [vmem:[#allocation7 + $0x10] sm:$0xff]
    %v2441 = vld [vmem:[#allocation7 + $0x18] sm:$0xff]
    %v2442 = vld [vmem:[#allocation7 + $0x20] sm:$0xff]
    %v2443 = vld [vmem:[#allocation7 + $0x28] sm:$0xff]
    %v2444 = vld [vmem:[#allocation7 + $0x30] sm:$0xff]
    %v2445 = vld [vmem:[#allocation7 + $0x38] sm:$0xff]
    %v2446 = vld [vmem:[#allocation7 + $0x40] sm:$0xff]
    %v2447 = vld [vmem:[#allocation7 + $0x48] sm:$0xff]
    %v2448 = vld [vmem:[#allocation7 + $0x50] sm:$0xff]
    %v2449 = vld [vmem:[#allocation7 + $0x58] sm:$0xff]
    %v2450 = vld [vmem:[#allocation7 + $0x60] sm:$0xff]
    %v2451 = vld [vmem:[#allocation7 + $0x68] sm:$0xff]
    %v2452 = vld [vmem:[#allocation7 + $0x70] sm:$0xff]
    %v2453 = vld [vmem:[#allocation7 + $0x78] sm:$0xff]
    %2454 = vmatpush.msra.mxu0 0.0
    %2455 = vmatpush.msra.mxu0 0.0
    %2456 = vmatpush.msra.mxu0 0.0
    %2457 = vmatpush.msra.mxu0 0.0
    %2458 = vmatpush.msra.mxu0 0.0
    %2459 = vmatpush.msra.mxu0 0.0
    %2460 = vmatpush.msra.mxu0 0.0
    %2461 = vmatpush.msra.mxu0 0.0
    %2462 = vmatpush.msra.mxu0 %v2452
    %2463 = vmatpush.msra.mxu0 %v2450
    %2464 = vmatpush.msra.mxu0 %v2448
    %2465 = vmatpush.msra.mxu0 %v2446
    %2466 = vmatpush.msra.mxu0 %v2444
    %2467 = vmatpush.msra.mxu0 %v2442
    %2468 = vmatpush.msra.mxu0 %v2440
    %2469 = vmatpush.msra.mxu0 %v2438
    %2470 = vmatmul.f32.gmra.mxu0 %v2261
    %v2471 = vpop.f32.mrf.mxu0
    %v2472 = vadd.f32 0.0, %v2471
    %2473 = vdwg.mxu0
    %2474 = vmatpush.msra.mxu0 0.0
    %2475 = vmatpush.msra.mxu0 0.0
    %2476 = vmatpush.msra.mxu0 0.0
    %2477 = vmatpush.msra.mxu0 0.0
    %2478 = vmatpush.msra.mxu0 0.0
    %2479 = vmatpush.msra.mxu0 0.0
    %2480 = vmatpush.msra.mxu0 0.0
    %2481 = vmatpush.msra.mxu0 0.0
    %2482 = vmatpush.msra.mxu0 %v2453
    %2483 = vmatpush.msra.mxu0 %v2451
    %2484 = vmatpush.msra.mxu0 %v2449
    %2485 = vmatpush.msra.mxu0 %v2447
    %2486 = vmatpush.msra.mxu0 %v2445
    %2487 = vmatpush.msra.mxu0 %v2443
    %2488 = vmatpush.msra.mxu0 %v2441
    %2489 = vmatpush.msra.mxu0 %v2439
    %2490 = vmatmul.f32.gmra.mxu0 %v2261
    %v2491 = vpop.f32.mrf.mxu0
    %v2492 = vadd.f32 0.0, %v2491
    %2493 = vdwg.mxu0
    %v2494 = vadd.f32 %v2436, %v2472
    %v2495 = vadd.f32 %v2437, %v2492
    %v2496 = vld [vmem:[%s15] sm:$0x3]
    %v2498 = vperm.slane %v2496, 0
    %v2499 = vperm.slane %v2496, 1
    %v2502 = vadd.f32 %v2494, %v2498
    %v2503 = vadd.f32 %v2495, %v2499
    %v2504 = vmul.f32 %v2502, 0.5
    %v2505 = vtanh.pop %v2504
    %v2506 = vmul.f32 %v2505, 0.5
    %v2507 = vadd.f32 %v2506, 0.5
    %v2508 = vtanh.pop %v2503
    %v2509 = vmul.f32 %v2503, 0.5
    %v2510 = vtanh.pop %v2509
    %v2511 = vmul.f32 %v2510, 0.5
    %v2512 = vadd.f32 %v2511, 0.5
    %v2513 = vmul.f32 %v2507, %v2206
    %v2514 = vmul.f32 %v2507, %v2508
    %2516 = vrot.lane.b32.xlu0 %v2514, 64
    %v2517 = vpop.permute.xlu0 %2516
    %v2519 = vadd.f32 %v2513, %v2517
    %v2520 = vtanh.pop %v2519
    %v2521 = vmul.f32 %v2512, %v2520
    %v2522 = vld [vmem:[%s16] sm:$0xff]
    %v2523 = vld [vmem:[%s16 + $0x8] sm:$0xff]
    %v2524 = vld [vmem:[%s16 + $0x10] sm:$0xff]
    %v2525 = vld [vmem:[%s16 + $0x18] sm:$0xff]
    %v2526 = vld [vmem:[%s16 + $0x20] sm:$0xff]
    %v2527 = vld [vmem:[%s16 + $0x28] sm:$0xff]
    %v2528 = vld [vmem:[%s16 + $0x30] sm:$0xff]
    %v2529 = vld [vmem:[%s16 + $0x38] sm:$0xff]
    %v2530 = vld [vmem:[%s17] sm:$0x1]
    %v2532 = vperm.slane %v2530, 0
    %2535 = vrot.lane.b32.xlu0 %v2424, 64
    %v2536 = vpop.permute.xlu0 %2535
    %v2537 = vsel %vm1060, %v2536, 0
    %2539 = vmatpush.msra.mxu0 0.0
    %2540 = vmatpush.msra.mxu0 0.0
    %2541 = vmatpush.msra.mxu0 0.0
    %2542 = vmatpush.msra.mxu0 0.0
    %2543 = vmatpush.msra.mxu0 0.0
    %2544 = vmatpush.msra.mxu0 0.0
    %2545 = vmatpush.msra.mxu0 0.0
    %2546 = vmatpush.msra.mxu0 0.0
    %2547 = vmatpush.msra.mxu0 %v2529
    %2548 = vmatpush.msra.mxu0 %v2528
    %2549 = vmatpush.msra.mxu0 %v2527
    %2550 = vmatpush.msra.mxu0 %v2526
    %2551 = vmatpush.msra.mxu0 %v2525
    %2552 = vmatpush.msra.mxu0 %v2524
    %2553 = vmatpush.msra.mxu0 %v2523
    %2554 = vmatpush.msra.mxu0 %v2522
    %2555 = vmatmul.f32.gmra.mxu0 %v2537
    %v2556 = vpop.f32.mrf.mxu0
    %v2557 = vadd.f32 %v2532, %v2556
    %2558 = vdwg.mxu0
    %v2559 = vld [vmem:[%s18] sm:$0xff]
    %v2560 = vld [vmem:[%s18 + $0x8] sm:$0xff]
    %v2561 = vld [vmem:[%s18 + $0x10] sm:$0xff]
    %v2562 = vld [vmem:[%s18 + $0x18] sm:$0xff]
    %v2563 = vld [vmem:[%s18 + $0x20] sm:$0xff]
    %v2564 = vld [vmem:[%s18 + $0x28] sm:$0xff]
    %v2565 = vld [vmem:[%s18 + $0x30] sm:$0xff]
    %v2566 = vld [vmem:[%s18 + $0x38] sm:$0xff]
    %v2567 = vld [vmem:[%s19] sm:$0x1]
    %v2569 = vperm.slane %v2567, 0
    %2572 = vrot.lane.b32.xlu0 %v2521, 64
    %v2573 = vpop.permute.xlu0 %2572
    %v2574 = vsel %vm1060, %v2573, 0
    %2576 = vmatpush.msra.mxu0 0.0
    %2577 = vmatpush.msra.mxu0 0.0
    %2578 = vmatpush.msra.mxu0 0.0
    %2579 = vmatpush.msra.mxu0 0.0
    %2580 = vmatpush.msra.mxu0 0.0
    %2581 = vmatpush.msra.mxu0 0.0
    %2582 = vmatpush.msra.mxu0 0.0
    %2583 = vmatpush.msra.mxu0 0.0
    %2584 = vmatpush.msra.mxu0 %v2566
    %2585 = vmatpush.msra.mxu0 %v2565
    %2586 = vmatpush.msra.mxu0 %v2564
    %2587 = vmatpush.msra.mxu0 %v2563
    %2588 = vmatpush.msra.mxu0 %v2562
    %2589 = vmatpush.msra.mxu0 %v2561
    %2590 = vmatpush.msra.mxu0 %v2560
    %2591 = vmatpush.msra.mxu0 %v2559
    %2592 = vmatmul.f32.gmra.mxu0 %v2574
    %v2593 = vpop.f32.mrf.mxu0
    %v2594 = vadd.f32 %v2569, %v2593
    %2595 = vdwg.mxu0
    %s2596 = scalar_lea.vmem %s20, 32
    %2597 = vst [vmem:[%s2596] sm:$0xff] %v2557
    %s2598 = scalar_lea.vmem %s21, 32
    %2599 = vst [vmem:[%s2598] sm:$0xff] %v2594
    // Predicated region
    $region98: #{seq2seq_cat_forward.1} parent=1 // pred_check
      _
    $region99: #{seq2seq_cat_forward.1} parent=1 // pred_check_branch
      %2601 = sbr.rel (0) target = $region101
    $region100: #{seq2seq_cat_forward.1} parent=1 // pred_region
      _
    $region101: #{seq2seq_cat_forward.1} parent=1 // pred_fallthru
      _
    // Predicated region
    $region102: #{seq2seq_cat_forward.1} parent=1 // pred_check
      _
    $region103: #{seq2seq_cat_forward.1} parent=1 // pred_check_branch
      %2603 = sbr.rel (0) target = $region105
    $region104: #{seq2seq_cat_forward.1} parent=1 // pred_region
      _
    $region105: #{seq2seq_cat_forward.1} parent=1 // pred_fallthru
      _
    // Predicated region
    $region106: #{seq2seq_cat_forward.1} parent=1 // pred_check
      _
    $region107: #{seq2seq_cat_forward.1} parent=1 // pred_check_branch
      %2605 = sbr.rel (0) target = $region109
    $region108: #{seq2seq_cat_forward.1} parent=1 // pred_region
      _
    $region109: #{seq2seq_cat_forward.1} parent=1 // pred_fallthru
      _
    // Predicated region
    $region110: #{seq2seq_cat_forward.1} parent=1 // pred_check
      _
    $region111: #{seq2seq_cat_forward.1} parent=1 // pred_check_branch
      %2607 = sbr.rel (0) target = $region113
    $region112: #{seq2seq_cat_forward.1} parent=1 // pred_region
      _
    $region113: #{seq2seq_cat_forward.1} parent=1 // pred_fallthru
      _
    %2608 = vsyncpa [#allocation3], 1
    %2609 = vsyncpa [#allocation5], 1
    %2610 = vsyncpa [#allocation8], 1

</llo_original>
